<compile_context>
chip_gen: v5e
topology: v5e:2x2
jax: 0.10.0
libtpu: 0.0.40
codegen_flags: <defaults>
</compile_context>

<pallas_src>
from collections import namedtuple
from functools import partial

import jax
import jax.numpy as jnp
from jax.experimental import pallas as pl
from jax.experimental.pallas import tpu as pltpu

Args = namedtuple(
    "Args",
    ["embed_num", "embed_dim", "attr_dim", "hidden_size", "num_layers",
     "user_num", "product_num", "decoder_dropout", "sum_max_len", "repetition"],
)

NEG_INF = -1e30


def _round_up(x, m):
    return ((x + m - 1) // m) * m


def _pick_vmem_limit():
    """Generation-aware scoped-VMEM budget (~56 MiB on v7x, ~100 MiB on v5e/v6e)."""
    try:
        cap = int(pltpu.get_tpu_info().vmem_capacity_bytes)
    except Exception:
        cap = 64 * 1024 * 1024
    return int(min(100 * 1024 * 1024, (cap * 7) // 8))


_VMEM_LIMIT = _pick_vmem_limit()


def _detect_resident_mode():
    """Feature-detect pipeline_mode=pl.Buffered(1) (single-buffered resident blocks)."""
    try:
        def _k(x_ref, o_ref):
            o_ref[...] = x_ref[...] + 1.0

        f = pl.pallas_call(
            _k,
            out_shape=jax.ShapeDtypeStruct((16, 128), jnp.float32),
            grid=(2,),
            in_specs=[pl.BlockSpec((8, 128), lambda i: (0, 0),
                                   pipeline_mode=pl.Buffered(1))],
            out_specs=pl.BlockSpec((8, 128), lambda i: (i, 0)),
        )
        jax.block_until_ready(f(jnp.zeros((16, 128), jnp.float32)[:8]))
        return pl.Buffered(1)
    except Exception:
        return None


_RESIDENT_MODE = _detect_resident_mode()


def _res_spec(shape):
    """Constant-index (resident) BlockSpec; single-buffered when supported."""
    zeros = (0,) * len(shape)
    imap = lambda t: zeros
    if _RESIDENT_MODE is not None:
        return pl.BlockSpec(shape, imap, pipeline_mode=_RESIDENT_MODE)
    return pl.BlockSpec(shape, imap)


# ----------------------------- generic linear kernel ------------------------


def _make_linear_kernel(act):
    def kernel(x_ref, w_ref, b_ref, o_ref):
        y = jnp.dot(x_ref[...].astype(jnp.bfloat16), w_ref[...],
                    preferred_element_type=jnp.float32) + b_ref[...]
        if act == "tanh":
            y = jnp.tanh(y)
        o_ref[...] = y
    return kernel


def pallas_linear(x, w, b=None, act="none", tile_m=512):
    """y = act(x @ W + b): bf16 MXU operands, f32 accumulation, M-tiled ('parallel')."""
    m, k = x.shape
    n = w.shape[1]
    if b is None:
        b = jnp.zeros((n,), jnp.float32)
    tm = tile_m if (m % tile_m == 0) else m
    return pl.pallas_call(
        _make_linear_kernel(act),
        out_shape=jax.ShapeDtypeStruct((m, n), jnp.float32),
        grid_spec=pltpu.PrefetchScalarGridSpec(
            num_scalar_prefetch=0, grid=(m // tm,),
            in_specs=[pl.BlockSpec((tm, k), lambda i: (i, 0)),
                      pl.BlockSpec((k, n), lambda i: (0, 0)),
                      pl.BlockSpec((1, n), lambda i: (0, 0))],
            out_specs=pl.BlockSpec((tm, n), lambda i: (i, 0))),
        compiler_params=pltpu.CompilerParams(
            dimension_semantics=("parallel",), vmem_limit_bytes=_VMEM_LIMIT),
    )(x.astype(jnp.float32), w.astype(jnp.bfloat16),
      b.reshape(1, n).astype(jnp.float32))


# ----------------------------- fused encoder bi-GRU --------------------------


def _encoder_rnn_kernel(gi_ref, whh_ref, bhh_ref, out_ref, h_sc):
    t = pl.program_id(1)

    @pl.when(t == 0)
    def _():
        h_sc[...] = jnp.zeros_like(h_sc)

    H = h_sc.shape[-1]
    h = h_sc[...]
    gh = jnp.dot(h.astype(jnp.bfloat16), whh_ref[0],
                 preferred_element_type=jnp.float32) + bhh_ref[0]
    gi = gi_ref[0, 0]
    r = jax.nn.sigmoid(gi[:, :H] + gh[:, :H])
    z = jax.nn.sigmoid(gi[:, H:2 * H] + gh[:, H:2 * H])
    n = jnp.tanh(gi[:, 2 * H:] + r * gh[:, 2 * H:])
    h_new = (1.0 - z) * n + z * h
    h_sc[...] = h_new
    out_ref[0, 0] = h_new


def pallas_encoder_rnn(gi_stack, whh_stack, bhh_stack):
    """Bi-GRU recurrence. grid=(direction, time): direction is 'parallel' (v7x: one
    direction per TensorCore), time is the serial recurrence ('arbitrary')."""
    _, S, B, H3 = gi_stack.shape
    H = H3 // 3

    def rev(d, t):                      # forward: t ; backward: S-1-t
        return (d, d * (S - 1) + t * (1 - 2 * d), 0, 0)

    out = pl.pallas_call(
        _encoder_rnn_kernel,
        out_shape=jax.ShapeDtypeStruct((2, S, B, H), jnp.float32),
        grid_spec=pltpu.PrefetchScalarGridSpec(
            num_scalar_prefetch=0, grid=(2, S),
            in_specs=[pl.BlockSpec((1, 1, B, H3), rev),
                      pl.BlockSpec((1, H, H3), lambda d, t: (d, 0, 0)),
                      pl.BlockSpec((1, 1, H3), lambda d, t: (d, 0, 0))],
            out_specs=pl.BlockSpec((1, 1, B, H), rev),
            scratch_shapes=[pltpu.VMEM((B, H), jnp.float32)]),
        compiler_params=pltpu.CompilerParams(
            dimension_semantics=("parallel", "arbitrary"),
            vmem_limit_bytes=_VMEM_LIMIT),
    )(gi_stack, whh_stack, bhh_stack)
    return out[0], out[1]


# ----------------------------- fused decoder loop ----------------------------


def _make_decoder_loop_kernel(L):
    n_in = 18 + 4 * (L - 1)

    def kernel(*refs):
        (gi0_ref, h0_ref, enc_ref, pkc_ref, cmask_ref,
         uvemb_ref, pku_ref, umask_ref,
         wq_all_ref, evc_ref, evu_ref, wc_all_ref, wu_all_ref, ue_gp_ref,
         genw_ref, vmask_ref, whh0_ref, bhh0_ref) = refs[:18]
        layer_refs = refs[18:n_in]
        out_ref = refs[n_in]
        hid_sc = refs[n_in + 1]

        t = pl.program_id(0)
        H = whh0_ref.shape[0]

        @pl.when(t == 0)
        def _():
            hid_sc[...] = h0_ref[...]

        def mx(a, w_ref):
            return jnp.dot(a.astype(jnp.bfloat16), w_ref[...],
                           preferred_element_type=jnp.float32)

        def gru(gi, gh, h):
            r = jax.nn.sigmoid(gi[:, :H] + gh[:, :H])
            z = jax.nn.sigmoid(gi[:, H:2 * H] + gh[:, H:2 * H])
            n = jnp.tanh(gi[:, 2 * H:] + r * gh[:, 2 * H:])
            return (1.0 - z) * n + z * h

        # --- decoder GRU stack (layer-0 input projection precomputed outside the loop) ---
        h_prev = hid_sc[0]
        h_new = gru(gi0_ref[0], mx(h_prev, whh0_ref) + bhh0_ref[...], h_prev)
        hid_sc[0] = h_new
        inp = h_new
        for l in range(1, L):
            wih_r, bih_r, whh_r, bhh_r = layer_refs[4 * (l - 1):4 * l]
            h_prev = hid_sc[l]
            h_new = gru(mx(inp, wih_r) + bih_r[...],
                        mx(h_prev, whh_r) + bhh_r[...], h_prev)
            hid_sc[l] = h_new
            inp = h_new
        query = inp                                               # (B, H)

        # --- one fused projection of the query: [attn_c.wq | attn_u.wq | ch_wq | gp_wq] ---
        yq = mx(query, wq_all_ref)                                # (B, 3H+1)
        qp_c, qp_u, rest_q = yq[:, :H], yq[:, H:2 * H], yq[:, 2 * H:]

        # --- Bahdanau attention (additive masks; context on the MXU) ---
        def attend(qp, pk_ref, val_ref, ev_ref, addmask, exact):
            e = jnp.tanh(qp[:, None, :] + pk_ref[...])            # (B, Sx, H) f32
            scores = jnp.sum(e * ev_ref[...][None, :, :], axis=-1) + addmask
            m = jnp.max(scores, axis=-1, keepdims=True)
            p = jnp.exp(scores - m)
            s = jnp.sum(p, axis=-1, keepdims=True)
            probs = p / s if exact else p * pl.reciprocal(s, approx=True)
            ctx = jnp.einsum("bqs,bsv->bqv",
                             probs[:, None, :].astype(jnp.bfloat16), val_ref[...],
                             preferred_element_type=jnp.float32)[:, 0, :]
            return ctx, probs

        ctx_c, _ = attend(qp_c, pkc_ref, enc_ref, evc_ref, cmask_ref[...], False)
        ctx_u, probs_u = attend(qp_u, pku_ref, uvemb_ref, evu_ref, umask_ref[...], True)

        # --- fused context_hidden / gen_p pre-activations ---
        # ue_gp already holds the loop-invariant user_embed@ch_we and the gen_p bias.
        pre = rest_q + mx(ctx_c, wc_all_ref) + mx(ctx_u, wu_all_ref) + ue_gp_ref[...]
        context_hidden = jnp.tanh(pre[:, :H])
        copy_p = jax.nn.sigmoid(pre[:, H:H + 1])                  # (B,1) never leaves VMEM
        # dropout_layer: eval mode (identity)

        # --- generation distribution over the lane-dense padded vocab (additive mask) ---
        logits = mx(context_hidden, genw_ref) + vmask_ref[...]    # (B, EN_PAD)
        m = jnp.max(logits, axis=-1, keepdims=True)
        pe = jnp.exp(logits - m)
        gen_prob = pe / jnp.sum(pe, axis=-1, keepdims=True)       # exact: feeds the NLL

        # single lane-dense output slab: [(1-p)*gen | p*copy], both pieces 128-aligned
        out_ref[0] = jnp.concatenate(
            [(1.0 - copy_p) * gen_prob, copy_p * probs_u], axis=-1)

    return kernel


def pallas_decoder_loop(gi0_dec, h0, enc_hidden, proj_key_c, cmask,
                        user_vocab_emb, proj_key_u, umask, user_embed,
                        p, embed_num):
    T, B, H3 = gi0_dec.shape
    H = H3 // 3
    L = h0.shape[0]
    S = enc_hidden.shape[1]
    SvP, E = user_vocab_emb.shape[1], user_vocab_emb.shape[2]
    EN_PAD = _round_up(embed_num, 128)
    VP = EN_PAD + SvP

    bf16 = lambda x: x.astype(jnp.bfloat16)
    ch_w, gp_w, gp_b = p["context_hidden_w"], p["gen_p_w"], p["gen_p_b"]
    ch_wq, ch_wc = ch_w[:H], ch_w[H:3 * H]
    ch_wu, ch_we = ch_w[3 * H:3 * H + E], ch_w[3 * H + E:]
    gp_wc, gp_wq, gp_wu = gp_w[:2 * H], gp_w[2 * H:3 * H], gp_w[3 * H:]

    # per-step matmuls fused by shared LHS (query / ctx_c / ctx_u), bf16 residents
    wq_all = bf16(jnp.concatenate([p["attn_c"]["wq"], p["attn_u"]["wq"], ch_wq, gp_wq], 1))
    wc_all = bf16(jnp.concatenate([ch_wc, gp_wc], axis=1))
    wu_all = bf16(jnp.concatenate([ch_wu, gp_wu], axis=1))
    # loop-invariant user-embedding contribution + gen_p bias, hoisted out of the T-loop
    ue_gp = jnp.concatenate(
        [user_embed.astype(jnp.float32) @ ch_we,
         jnp.broadcast_to(gp_b.reshape(1, 1), (B, 1))], axis=1).astype(jnp.float32)

    genw_pad = jnp.zeros((H, EN_PAD), jnp.bfloat16).at[:, :embed_num].set(
        bf16(p["generator_w"]))
    vmask = jnp.where(jnp.arange(EN_PAD) < embed_num, 0.0, NEG_INF
                      ).astype(jnp.float32).reshape(1, EN_PAD)

    dec_layers = p["dec_gru"]
    inputs = [gi0_dec, h0, enc_hidden, proj_key_c, cmask,
              user_vocab_emb, proj_key_u, umask,
              wq_all, bf16(p["attn_c"]["ev"]), bf16(p["attn_u"]["ev"]),
              wc_all, wu_all, ue_gp, genw_pad, vmask,
              bf16(dec_layers[0]["whh"]), dec_layers[0]["bhh"].reshape(1, -1)]
    in_specs = [pl.BlockSpec((1, B, H3), lambda t: (t, 0, 0)),
                _res_spec((L, B, H)), _res_spec((B, S, 2 * H)), _res_spec((B, S, H)),
                _res_spec((B, S)), _res_spec((B, SvP, E)), _res_spec((B, SvP, H)),
                _res_spec((1, SvP)), _res_spec((H, 3 * H + 1)),
                _res_spec((1, H)), _res_spec((1, H)),
                _res_spec((2 * H, H + 1)), _res_spec((E, H + 1)), _res_spec((B, H + 1)),
                _res_spec((H, EN_PAD)), _res_spec((1, EN_PAD)),
                _res_spec((H, H3)), _res_spec((1, H3))]
    for lp in dec_layers[1:]:
        inputs += [bf16(lp["wih"]), lp["bih"].reshape(1, -1),
                   bf16(lp["whh"]), lp["bhh"].reshape(1, -1)]
        in_specs += [_res_spec((H, H3)), _res_spec((1, H3)),
                     _res_spec((H, H3)), _res_spec((1, H3))]

    # coarse advisory cost estimate for the XLA scheduler
    mm = 2 * B * ((2 * L - 1) * 3 * H * H + H * (3 * H + 1) + 2 * H * (H + 1)
                  + E * (H + 1) + H * EN_PAD + S * 3 * H + SvP * (H + E))
    tr = B * ((S + SvP) * (H + 1) + EN_PAD + (3 * H + 1) * L + H + 2)
    bytes_acc = int(sum(int(x.size) * x.dtype.itemsize for x in inputs) + T * B * VP * 4)

    slab = pl.pallas_call(
        _make_decoder_loop_kernel(L),
        out_shape=jax.ShapeDtypeStruct((T, B, VP), jnp.float32),
        grid_spec=pltpu.PrefetchScalarGridSpec(
            num_scalar_prefetch=0, grid=(T,),
            in_specs=in_specs,
            out_specs=pl.BlockSpec((1, B, VP), lambda t: (t, 0, 0)),
            scratch_shapes=[pltpu.VMEM((L, B, H), jnp.float32)]),
        compiler_params=pltpu.CompilerParams(
            dimension_semantics=("arbitrary",), vmem_limit_bytes=_VMEM_LIMIT),
        cost_estimate=pl.CostEstimate(flops=int(T * mm), transcendentals=int(T * tr),
                                      bytes_accessed=bytes_acc),
    )(*inputs)
    return slab, EN_PAD


# ----------------------------- parameters ------------------------------------


def init_params(key, a):
    H, E = a.hidden_size, a.embed_dim
    it = iter(jax.random.split(key, 40))

    def rnd(shape, scale=0.1):
        return jax.random.normal(next(it), shape, dtype=jnp.float32) * scale

    p = {}
    p["embed"] = rnd((a.embed_num, E))
    p["u_emb"] = rnd((a.user_num, a.attr_dim))
    p["p_emb"] = rnd((a.product_num, a.attr_dim))   # TODO(synk): unused in this path
    for d in ("enc_fwd", "enc_bwd"):
        p[d] = dict(wih=rnd((E, 3 * H)), whh=rnd((H, 3 * H)),
                    bih=rnd((3 * H,)), bhh=rnd((3 * H,)))
    p["bridge_w"] = rnd((2 * H, H))
    p["bridge_b"] = rnd((H,))
    dec = []
    in_dim = E
    for _ in range(a.num_layers):
        dec.append(dict(wih=rnd((in_dim, 3 * H)), whh=rnd((H, 3 * H)),
                        bih=rnd((3 * H,)), bhh=rnd((3 * H,))))
        in_dim = H
    p["dec_gru"] = dec
    p["attn_c"] = dict(wq=rnd((H, H)), wk=rnd((2 * H, H)), ev=rnd((1, H)))
    p["attn_u"] = dict(wq=rnd((H, H)), wk=rnd((E, H)), ev=rnd((1, H)))
    p["context_hidden_w"] = rnd((3 * H + 2 * E, H))          # bias=False
    p["gen_p_w"] = rnd((3 * H + E, 1))
    p["gen_p_b"] = rnd((1,))
    p["generator_w"] = rnd((H, a.embed_num))                  # bias=False
    return p


# ----------------------------- model ------------------------------------------


def run_encoder(p, a, src_embed):
    """Simplified encoder: fused bi-GRU (single pallas_call) + tanh bridge."""
    B, S, E = src_embed.shape
    H = a.hidden_size
    # big-M precompute of the input-gate projections for both directions at once
    wih_cat = jnp.concatenate([p["enc_fwd"]["wih"], p["enc_bwd"]["wih"]], axis=1)
    bih_cat = jnp.concatenate([p["enc_fwd"]["bih"], p["enc_bwd"]["bih"]], axis=0)
    gi = pallas_linear(src_embed.reshape(B * S, E), wih_cat, bih_cat).reshape(B, S, 6 * H)
    gi_stack = jnp.stack([gi[..., :3 * H].transpose(1, 0, 2),
                          gi[..., 3 * H:].transpose(1, 0, 2)], axis=0)    # (2,S,B,3H)
    whh_stack = jnp.stack([p["enc_fwd"]["whh"], p["enc_bwd"]["whh"]],
                          axis=0).astype(jnp.bfloat16)
    bhh_stack = jnp.stack([p["enc_fwd"]["bhh"], p["enc_bwd"]["bhh"]],
                          axis=0).reshape(2, 1, 3 * H)

    fwd, bwd = pallas_encoder_rnn(gi_stack, whh_stack, bhh_stack)
    encoder_hidden = jnp.concatenate([fwd, bwd], axis=-1).transpose(1, 0, 2)  # (B,S,2H)
    bridge_in = jnp.concatenate([fwd[S - 1], bwd[0]], axis=-1)                # (B,2H)
    h0 = pallas_linear(bridge_in, p["bridge_w"], p["bridge_b"], act="tanh")
    hidden = jnp.stack([h0] * a.num_layers, axis=0)                           # (L,B,H)
    return hidden, encoder_hidden


@partial(jax.jit, static_argnums=(1, 9))
def batch_nll_loss(p, a, src, src_user, u_review, specific_vocab,
                   src_, tgt_, tgt, vocab_size, src_lens):
    """Generator.batchNLLLoss (test=False / teacher-forcing path)."""
    T = a.sum_max_len
    B, S = src.shape
    H, E = a.hidden_size, a.embed_dim
    Sv = specific_vocab.shape[1]
    SvP = _round_up(Sv, 128)

    # lengths handled purely via the additive mask (full static S); no host sync.
    cmask = jnp.where(src != 0, 0.0, NEG_INF).astype(jnp.float32)       # (B,S)
    # TODO(synk): u_review / p_emb paths unused (encoder internals not in the reference).

    src_embed = jnp.take(p["embed"], src_, axis=0)                      # (B,S,E)
    user_embed = jnp.take(p["u_emb"], src_user, axis=0)                 # (B,attr_dim)
    hidden, encoder_hidden = run_encoder(p, a, src_embed)

    # ---- loop-invariant hoists (big-M matmuls, once per sequence) ----
    proj_key_c = pallas_linear(encoder_hidden.reshape(B * S, 2 * H),
                               p["attn_c"]["wk"]).reshape(B, S, H)
    # user-vocab tensors padded to a 128-aligned Sv so copy probs land in the lane-dense
    # output slab (no narrow masked stores); padded positions are masked to -inf.
    user_vocab_emb = jnp.take(p["embed"], specific_vocab, axis=0)       # (B,Sv,E)
    user_vocab_emb = jnp.pad(user_vocab_emb, ((0, 0), (0, SvP - Sv), (0, 0)))
    proj_key_u = pallas_linear(user_vocab_emb.reshape(B * SvP, E),
                               p["attn_u"]["wk"]).reshape(B, SvP, H)
    umask = jnp.where(jnp.arange(SvP) < Sv, 0.0, NEG_INF
                      ).astype(jnp.float32).reshape(1, SvP)

    # teacher-forced decoder inputs are known up front -> precompute layer-0 gi
    tgt_embed = jnp.take(p["embed"], tgt_, axis=0)                      # (B,T,E)
    init_prev_embed = jnp.broadcast_to(p["embed"][1][None, None, :], (B, 1, E))
    dec_in = jnp.concatenate([init_prev_embed, tgt_embed[:, :T - 1]], axis=1)
    gi0_dec = pallas_linear(dec_in.reshape(B * T, E),
                            p["dec_gru"][0]["wih"],
                            p["dec_gru"][0]["bih"]).reshape(B, T, 3 * H).transpose(1, 0, 2)

    # ---- fused decoder loop (single pallas_call over all T steps) ----
    slab, EN_PAD = pallas_decoder_loop(
        gi0_dec, hidden,
        encoder_hidden.astype(jnp.bfloat16), proj_key_c.astype(jnp.bfloat16), cmask,
        user_vocab_emb.astype(jnp.bfloat16), proj_key_u.astype(jnp.bfloat16), umask,
        user_embed, p, a.embed_num)

    slab = slab.transpose(1, 0, 2)                                      # (B,T,VP)
    wgen = slab[:, :, :a.embed_num]                                     # (1-p)*gen_prob
    wattn = slab[:, :, EN_PAD:EN_PAD + Sv]                              # p*attn_probs

    # mix_prob assembled on the extended (copy) vocabulary
    pre = jnp.zeros((B, T, vocab_size), jnp.float32).at[:, :, :a.embed_num].set(wgen)
    b_idx = jnp.arange(B)[:, None, None]
    t_idx = jnp.arange(T)[None, :, None]
    v_idx = specific_vocab[:, None, :]
    pre_output_vectors = pre.at[b_idx, t_idx, v_idx].add(wattn)         # (B,T,V)

    # NLLLoss(ignore_index=0, reduction='sum') / len(src_lens)
    logp = jnp.log(pre_output_vectors.reshape(-1, vocab_size) + 1e-20)
    trg = tgt.reshape(-1)
    picked = jnp.take_along_axis(logp, trg[:, None], axis=1)[:, 0]
    valid = (trg != 0).astype(jnp.float32)
    loss_t = -jnp.sum(picked * valid) / src_lens.shape[0]
    return loss_t, pre_output_vectors


# ----------------------------- main ------------------------------------------

if __name__ == "__main__":
    args = Args(embed_num=40, embed_dim=16, attr_dim=16, hidden_size=32,
                num_layers=1, user_num=6, product_num=6,
                decoder_dropout=0.1, sum_max_len=4, repetition=False)

    B, S, Sv = 2, 8, 6
    vocab_size = 48   # extended (copy) vocabulary > embed_num

    key = jax.random.PRNGKey(0)
    kp, k1, k2, k3, k4, k5 = jax.random.split(key, 6)
    params = init_params(kp, args)

    src = jax.random.randint(k1, (B, S), 1, args.embed_num, dtype=jnp.int32)
    src_user = jax.random.randint(k2, (B,), 0, args.user_num, dtype=jnp.int32)
    specific_vocab = jax.random.randint(k3, (B, Sv), 1, args.embed_num, dtype=jnp.int32)
    tgt = jax.random.randint(k4, (B, args.sum_max_len), 1, vocab_size, dtype=jnp.int32)
    tgt_ = jnp.where(tgt >= args.embed_num, 3, tgt)          # UNK extended-vocab tokens
    u_review = jax.random.randint(k5, (B, 3, 5), 0, args.embed_num, dtype=jnp.int32)
    src_ = src
    src_lens = jnp.full((B,), S, jnp.int32)

    loss_t, pre_output_vectors = batch_nll_loss(
        params, args, src, src_user, u_review, specific_vocab,
        src_, tgt_, tgt, vocab_size, src_lens)

    jax.block_until_ready((loss_t, pre_output_vectors))
    assert pre_output_vectors.shape == (B, args.sum_max_len, vocab_size)
    assert bool(jnp.isfinite(loss_t))
    print("KERNEL_OK")
</pallas_src>

<mosaic_0001>
module attributes {stable_mosaic.version = 11 : i64} {
  func.func @_k(%arg0: i32, %arg1: memref<8x128xf32, #tpu.memory_space<vmem>>, %arg2: memref<8x128xf32, #tpu.memory_space<vmem>>) attributes {dimension_semantics = [#tpu.dimension_semantics<arbitrary>], iteration_bounds = array<i64: 2>, scalar_prefetch = 0 : i64, scratch_operands = 0 : i64, tpu.core_type = #tpu.core_type<tc>, window_params = [{pipeline_mode = #tpu.pipeline_mode<synchronous>, transform_indices = @transform_0, window_bounds = array<i64: 8, 128>}, {transform_indices = @transform_1, window_bounds = array<i64: 8, 128>}]} {
    %c0 = arith.constant 0 : index
    %c0_0 = arith.constant 0 : index
    %0 = vector.load %arg1[%c0, %c0_0] : memref<8x128xf32, #tpu.memory_space<vmem>>, vector<8x128xf32>
    %cst = arith.constant 1.000000e+00 : f32
    %1 = vector.broadcast %cst : f32 to vector<8x128xf32>
    %2 = arith.addf %0, %1 : vector<8x128xf32>
    %c0_1 = arith.constant 0 : index
    %c0_2 = arith.constant 0 : index
    %3 = vector.load %arg2[%c0_1, %c0_2] : memref<8x128xf32, #tpu.memory_space<vmem>>, vector<8x128xf32>
    tpu.vector_store %arg2[%c0_1, %c0_2], %2 {strides = array<i32>} : memref<8x128xf32, #tpu.memory_space<vmem>>, vector<8x128xf32>,
    return
  }
  func.func @transform_0(%arg0: i32) -> (i32, i32) {
    %c0_i32 = arith.constant 0 : i32
    %c0_i32_0 = arith.constant 0 : i32
    %c0_i32_1 = arith.constant 0 : i32
    return %c0_i32, %c0_i32_0 : i32, i32
  }
  func.func @transform_1(%arg0: i32) -> (i32, i32) {
    %c0_i32 = arith.constant 0 : i32
    %c0_i32_0 = arith.constant 0 : i32
    return %arg0, %c0_i32 : i32, i32
  }
}

module attributes {stable_mosaic.version = 11 : i64} {
  func.func @kernel(%arg0: i32, %arg1: memref<16x16xf32, #tpu.memory_space<vmem>>, %arg2: memref<16x192xbf16, #tpu.memory_space<vmem>>, %arg3: memref<1x192xf32, #tpu.memory_space<vmem>>, %arg4: memref<16x192xf32, #tpu.memory_space<vmem>>) attributes {dimension_semantics = [#tpu.dimension_semantics<parallel>], iteration_bounds = array<i64: 1>, scalar_prefetch = 0 : i64, scratch_operands = 0 : i64, tpu.core_type = #tpu.core_type<tc>, window_params = [{transform_indices = @transform_0, window_bounds = array<i64: 16, 16>}, {pipeline_mode = #tpu.pipeline_mode<synchronous>, transform_indices = @transform_1, window_bounds = array<i64: 16, 192>}, {pipeline_mode = #tpu.pipeline_mode<synchronous>, transform_indices = @transform_2, window_bounds = array<i64: 1, 192>}, {transform_indices = @transform_3, window_bounds = array<i64: 16, 192>}]} {
    %c0 = arith.constant 0 : index
    %c0_0 = arith.constant 0 : index
    %0 = vector.load %arg1[%c0, %c0_0] : memref<16x16xf32, #tpu.memory_space<vmem>>, vector<16x16xf32>
    %1 = arith.truncf %0 : vector<16x16xf32> to vector<16x16xbf16>
    %c0_1 = arith.constant 0 : index
    %c0_2 = arith.constant 0 : index
    %2 = vector.load %arg2[%c0_1, %c0_2] : memref<16x192xbf16, #tpu.memory_space<vmem>>, vector<16x192xbf16>
    %cst = arith.constant dense<0.000000e+00> : vector<16x192xf32>
    %3 = tpu.matmul %1, %2, %cst {dimension_numbers = #tpu.dot_dimension_numbers<[1], [0], [0], [1], [0, 0, 1, 1], [], []>} : vector<16x16xbf16>, vector<16x192xbf16>, vector<16x192xf32> -> vector<16x192xf32>
    %c0_3 = arith.constant 0 : index
    %c0_4 = arith.constant 0 : index
    %4 = vector.load %arg3[%c0_3, %c0_4] : memref<1x192xf32, #tpu.memory_space<vmem>>, vector<1x192xf32>
    %5 = vector.broadcast %4 : vector<1x192xf32> to vector<16x192xf32>
    %6 = arith.addf %3, %5 : vector<16x192xf32>
    %c0_5 = arith.constant 0 : index
    %c0_6 = arith.constant 0 : index
    %7 = vector.load %arg4[%c0_5, %c0_6] : memref<16x192xf32, #tpu.memory_space<vmem>>, vector<16x192xf32>
    tpu.vector_store %arg4[%c0_5, %c0_6], %6 {strides = array<i32>} : memref<16x192xf32, #tpu.memory_space<vmem>>, vector<16x192xf32>,
    return
  }
  func.func @transform_0(%arg0: i32) -> (i32, i32) {
    %c0_i32 = arith.constant 0 : i32
    %c0_i32_0 = arith.constant 0 : i32
    return %arg0, %c0_i32 : i32, i32
  }
  func.func @transform_1(%arg0: i32) -> (i32, i32) {
    %c0_i32 = arith.constant 0 : i32
    %c0_i32_0 = arith.constant 0 : i32
    %c0_i32_1 = arith.constant 0 : i32
    return %c0_i32, %c0_i32_0 : i32, i32
  }
  func.func @transform_2(%arg0: i32) -> (i32, i32) {
    %c0_i32 = arith.constant 0 : i32
    %c0_i32_0 = arith.constant 0 : i32
    %c0_i32_1 = arith.constant 0 : i32
    return %c0_i32, %c0_i32_0 : i32, i32
  }
  func.func @transform_3(%arg0: i32) -> (i32, i32) {
    %c0_i32 = arith.constant 0 : i32
    %c0_i32_0 = arith.constant 0 : i32
    return %arg0, %c0_i32 : i32, i32
  }
}

module attributes {stable_mosaic.version = 11 : i64} {
  func.func @kernel(%arg0: i32, %arg1: memref<16x64xf32, #tpu.memory_space<vmem>>, %arg2: memref<64x32xbf16, #tpu.memory_space<vmem>>, %arg3: memref<1x32xf32, #tpu.memory_space<vmem>>, %arg4: memref<16x32xf32, #tpu.memory_space<vmem>>) attributes {dimension_semantics = [#tpu.dimension_semantics<parallel>], iteration_bounds = array<i64: 1>, scalar_prefetch = 0 : i64, scratch_operands = 0 : i64, tpu.core_type = #tpu.core_type<tc>, window_params = [{transform_indices = @transform_0, window_bounds = array<i64: 16, 64>}, {pipeline_mode = #tpu.pipeline_mode<synchronous>, transform_indices = @transform_1, window_bounds = array<i64: 64, 32>}, {pipeline_mode = #tpu.pipeline_mode<synchronous>, transform_indices = @transform_2, window_bounds = array<i64: 1, 32>}, {transform_indices = @transform_3, window_bounds = array<i64: 16, 32>}]} {
    %c0 = arith.constant 0 : index
    %c0_0 = arith.constant 0 : index
    %0 = vector.load %arg1[%c0, %c0_0] : memref<16x64xf32, #tpu.memory_space<vmem>>, vector<16x64xf32>
    %1 = arith.truncf %0 : vector<16x64xf32> to vector<16x64xbf16>
    %c0_1 = arith.constant 0 : index
    %c0_2 = arith.constant 0 : index
    %2 = vector.load %arg2[%c0_1, %c0_2] : memref<64x32xbf16, #tpu.memory_space<vmem>>, vector<64x32xbf16>
    %cst = arith.constant dense<0.000000e+00> : vector<16x32xf32>
    %3 = tpu.matmul %1, %2, %cst {dimension_numbers = #tpu.dot_dimension_numbers<[1], [0], [0], [1], [0, 0, 1, 1], [], []>} : vector<16x64xbf16>, vector<64x32xbf16>, vector<16x32xf32> -> vector<16x32xf32>
    %c0_3 = arith.constant 0 : index
    %c0_4 = arith.constant 0 : index
    %4 = vector.load %arg3[%c0_3, %c0_4] : memref<1x32xf32, #tpu.memory_space<vmem>>, vector<1x32xf32>
    %5 = vector.broadcast %4 : vector<1x32xf32> to vector<16x32xf32>
    %6 = arith.addf %3, %5 : vector<16x32xf32>
    %c0_5 = arith.constant 0 : index
    %c0_6 = arith.constant 0 : index
    %7 = vector.load %arg4[%c0_5, %c0_6] : memref<16x32xf32, #tpu.memory_space<vmem>>, vector<16x32xf32>
    tpu.vector_store %arg4[%c0_5, %c0_6], %6 {strides = array<i32>} : memref<16x32xf32, #tpu.memory_space<vmem>>, vector<16x32xf32>,
    return
  }
  func.func @transform_0(%arg0: i32) -> (i32, i32) {
    %c0_i32 = arith.constant 0 : i32
    %c0_i32_0 = arith.constant 0 : i32
    return %arg0, %c0_i32 : i32, i32
  }
  func.func @transform_1(%arg0: i32) -> (i32, i32) {
    %c0_i32 = arith.constant 0 : i32
    %c0_i32_0 = arith.constant 0 : i32
    %c0_i32_1 = arith.constant 0 : i32
    return %c0_i32, %c0_i32_0 : i32, i32
  }
  func.func @transform_2(%arg0: i32) -> (i32, i32) {
    %c0_i32 = arith.constant 0 : i32
    %c0_i32_0 = arith.constant 0 : i32
    %c0_i32_1 = arith.constant 0 : i32
    return %c0_i32, %c0_i32_0 : i32, i32
  }
  func.func @transform_3(%arg0: i32) -> (i32, i32) {
    %c0_i32 = arith.constant 0 : i32
    %c0_i32_0 = arith.constant 0 : i32
    return %arg0, %c0_i32 : i32, i32
  }
}

module attributes {stable_mosaic.version = 11 : i64} {
  func.func @_encoder_rnn_kernel(%arg0: i32, %arg1: i32, %arg2: memref<1x1x2x96xf32, #tpu.memory_space<vmem>>, %arg3: memref<1x32x96xbf16, #tpu.memory_space<vmem>>, %arg4: memref<1x1x96xf32, #tpu.memory_space<vmem>>, %arg5: memref<1x1x2x32xf32, #tpu.memory_space<vmem>>, %arg6: memref<2x32xf32, #tpu.memory_space<vmem>>) attributes {dimension_semantics = [#tpu.dimension_semantics<parallel>, #tpu.dimension_semantics<arbitrary>], iteration_bounds = array<i64: 2, 8>, scalar_prefetch = 0 : i64, scratch_operands = 1 : i64, tpu.core_type = #tpu.core_type<tc>, window_params = [{transform_indices = @transform_0, window_bounds = array<i64: 1, 1, 2, 96>}, {transform_indices = @transform_1, window_bounds = array<i64: 1, 32, 96>}, {transform_indices = @transform_2, window_bounds = array<i64: 1, 1, 96>}, {transform_indices = @transform_3, window_bounds = array<i64: 1, 1, 2, 32>}]} {
    %c0_i32 = arith.constant 0 : i32
    %0 = arith.cmpi eq, %arg1, %c0_i32 : i32
    %1 = arith.extui %0 : i1 to i32
    %c0_i32_0 = arith.constant 0 : i32
    %2 = arith.cmpi ne, %1, %c0_i32_0 : i32
    scf.if %2 {
      %cst_21 = arith.constant 0.000000e+00 : f32
      %44 = vector.broadcast %cst_21 : f32 to vector<2x32xf32>
      %c0_22 = arith.constant 0 : index
      %c0_23 = arith.constant 0 : index
      %45 = vector.load %arg6[%c0_22, %c0_23] : memref<2x32xf32, #tpu.memory_space<vmem>>, vector<2x32xf32>
      tpu.vector_store %arg6[%c0_22, %c0_23], %44 {strides = array<i32>} : memref<2x32xf32, #tpu.memory_space<vmem>>, vector<2x32xf32>,
    } else {
    }
    %c0 = arith.constant 0 : index
    %c0_1 = arith.constant 0 : index
    %3 = vector.load %arg6[%c0, %c0_1] : memref<2x32xf32, #tpu.memory_space<vmem>>, vector<2x32xf32>
    %4 = arith.truncf %3 : vector<2x32xf32> to vector<2x32xbf16>
    %c0_2 = arith.constant 0 : index
    %c0_3 = arith.constant 0 : index
    %c0_4 = arith.constant 0 : index
    %5 = vector.load %arg3[%c0_2, %c0_3, %c0_4] : memref<1x32x96xbf16, #tpu.memory_space<vmem>>, vector<1x32x96xbf16>
    %6 = vector.shape_cast %5 : vector<1x32x96xbf16> to vector<32x96xbf16>
    %cst = arith.constant dense<0.000000e+00> : vector<2x96xf32>
    %7 = tpu.matmul %4, %6, %cst {dimension_numbers = #tpu.dot_dimension_numbers<[1], [0], [0], [1], [0, 0, 1, 1], [], []>} : vector<2x32xbf16>, vector<32x96xbf16>, vector<2x96xf32> -> vector<2x96xf32>
    %c0_5 = arith.constant 0 : index
    %c0_6 = arith.constant 0 : index
    %c0_7 = arith.constant 0 : index
    %8 = vector.load %arg4[%c0_5, %c0_6, %c0_7] : memref<1x1x96xf32, #tpu.memory_space<vmem>>, vector<1x1x96xf32>
    %9 = vector.shape_cast %8 : vector<1x1x96xf32> to vector<1x96xf32>
    %10 = vector.broadcast %9 : vector<1x96xf32> to vector<2x96xf32>
    %11 = arith.addf %7, %10 : vector<2x96xf32>
    %c0_8 = arith.constant 0 : index
    %c0_9 = arith.constant 0 : index
    %c0_10 = arith.constant 0 : index
    %c0_11 = arith.constant 0 : index
    %12 = vector.load %arg2[%c0_8, %c0_9, %c0_10, %c0_11] : memref<1x1x2x96xf32, #tpu.memory_space<vmem>>, vector<1x1x2x96xf32>
    %13 = vector.shape_cast %12 : vector<1x1x2x96xf32> to vector<2x96xf32>
    %14 = vector.extract_strided_slice %13 {offsets = [0, 0], sizes = [2, 32], strides = [1, 1]} : vector<2x96xf32> to vector<2x32xf32>
    %15 = vector.extract_strided_slice %11 {offsets = [0, 0], sizes = [2, 32], strides = [1, 1]} : vector<2x96xf32> to vector<2x32xf32>
    %16 = arith.addf %14, %15 : vector<2x32xf32>
    %17 = arith.negf %16 : vector<2x32xf32>
    %18 = math.exp %17 : vector<2x32xf32>
    %cst_12 = arith.constant 1.000000e+00 : f32
    %19 = vector.broadcast %cst_12 : f32 to vector<2x32xf32>
    %20 = arith.addf %19, %18 : vector<2x32xf32>
    %21 = arith.divf %19, %20 : vector<2x32xf32>
    %22 = vector.extract_strided_slice %13 {offsets = [0, 32], sizes = [2, 32], strides = [1, 1]} : vector<2x96xf32> to vector<2x32xf32>
    %23 = vector.extract_strided_slice %11 {offsets = [0, 32], sizes = [2, 32], strides = [1, 1]} : vector<2x96xf32> to vector<2x32xf32>
    %24 = arith.addf %22, %23 : vector<2x32xf32>
    %25 = arith.negf %24 : vector<2x32xf32>
    %26 = math.exp %25 : vector<2x32xf32>
    %cst_13 = arith.constant 1.000000e+00 : f32
    %27 = vector.broadcast %cst_13 : f32 to vector<2x32xf32>
    %28 = arith.addf %27, %26 : vector<2x32xf32>
    %29 = arith.divf %27, %28 : vector<2x32xf32>
    %30 = vector.extract_strided_slice %13 {offsets = [0, 64], sizes = [2, 32], strides = [1, 1]} : vector<2x96xf32> to vector<2x32xf32>
    %31 = vector.extract_strided_slice %11 {offsets = [0, 64], sizes = [2, 32], strides = [1, 1]} : vector<2x96xf32> to vector<2x32xf32>
    %32 = arith.mulf %21, %31 : vector<2x32xf32>
    %33 = arith.addf %30, %32 : vector<2x32xf32>
    %34 = math.tanh %33 : vector<2x32xf32>
    %cst_14 = arith.constant 1.000000e+00 : f32
    %35 = vector.broadcast %cst_14 : f32 to vector<2x32xf32>
    %36 = arith.subf %35, %29 : vector<2x32xf32>
    %37 = arith.mulf %36, %34 : vector<2x32xf32>
    %38 = arith.mulf %29, %3 : vector<2x32xf32>
    %39 = arith.addf %37, %38 : vector<2x32xf32>
    %c0_15 = arith.constant 0 : index
    %c0_16 = arith.constant 0 : index
    %40 = vector.load %arg6[%c0_15, %c0_16] : memref<2x32xf32, #tpu.memory_space<vmem>>, vector<2x32xf32>
    tpu.vector_store %arg6[%c0_15, %c0_16], %39 {strides = array<i32>} : memref<2x32xf32, #tpu.memory_space<vmem>>, vector<2x32xf32>,
    %c0_17 = arith.constant 0 : index
    %c0_18 = arith.constant 0 : index
    %c0_19 = arith.constant 0 : index
    %c0_20 = arith.constant 0 : index
    %41 = vector.load %arg5[%c0_17, %c0_18, %c0_19, %c0_20] : memref<1x1x2x32xf32, #tpu.memory_space<vmem>>, vector<1x1x2x32xf32>
    %42 = vector.shape_cast %41 : vector<1x1x2x32xf32> to vector<2x32xf32>
    %43 = vector.shape_cast %39 : vector<2x32xf32> to vector<1x1x2x32xf32>
    tpu.vector_store %arg5[%c0_17, %c0_18, %c0_19, %c0_20], %43 {strides = array<i32>} : memref<1x1x2x32xf32, #tpu.memory_space<vmem>>, vector<1x1x2x32xf32>,
    return
  }
  func.func @transform_0(%arg0: i32, %arg1: i32) -> (i32, i32, i32, i32) {
    %c7_i32 = arith.constant 7 : i32
    %0 = arith.muli %arg0, %c7_i32 : i32
    %c2_i32 = arith.constant 2 : i32
    %1 = arith.muli %c2_i32, %arg0 : i32
    %c1_i32 = arith.constant 1 : i32
    %2 = arith.subi %c1_i32, %1 : i32
    %3 = arith.muli %arg1, %2 : i32
    %4 = arith.addi %0, %3 : i32
    %c0_i32 = arith.constant 0 : i32
    %c0_i32_0 = arith.constant 0 : i32
    %c0_i32_1 = arith.constant 0 : i32
    return %arg0, %4, %c0_i32, %c0_i32_0 : i32, i32, i32, i32
  }
  func.func @transform_1(%arg0: i32, %arg1: i32) -> (i32, i32, i32) {
    %c0_i32 = arith.constant 0 : i32
    %c0_i32_0 = arith.constant 0 : i32
    %c0_i32_1 = arith.constant 0 : i32
    return %arg0, %c0_i32, %c0_i32_0 : i32, i32, i32
  }
  func.func @transform_2(%arg0: i32, %arg1: i32) -> (i32, i32, i32) {
    %c0_i32 = arith.constant 0 : i32
    %c0_i32_0 = arith.constant 0 : i32
    %c0_i32_1 = arith.constant 0 : i32
    return %arg0, %c0_i32, %c0_i32_0 : i32, i32, i32
  }
  func.func @transform_3(%arg0: i32, %arg1: i32) -> (i32, i32, i32, i32) {
    %c7_i32 = arith.constant 7 : i32
    %0 = arith.muli %arg0, %c7_i32 : i32
    %c2_i32 = arith.constant 2 : i32
    %1 = arith.muli %c2_i32, %arg0 : i32
    %c1_i32 = arith.constant 1 : i32
    %2 = arith.subi %c1_i32, %1 : i32
    %3 = arith.muli %arg1, %2 : i32
    %4 = arith.addi %0, %3 : i32
    %c0_i32 = arith.constant 0 : i32
    %c0_i32_0 = arith.constant 0 : i32
    %c0_i32_1 = arith.constant 0 : i32
    return %arg0, %4, %c0_i32, %c0_i32_0 : i32, i32, i32, i32
  }
}

module attributes {stable_mosaic.version = 11 : i64} {
  func.func @kernel(%arg0: i32, %arg1: memref<2x64xf32, #tpu.memory_space<vmem>>, %arg2: memref<64x32xbf16, #tpu.memory_space<vmem>>, %arg3: memref<1x32xf32, #tpu.memory_space<vmem>>, %arg4: memref<2x32xf32, #tpu.memory_space<vmem>>) attributes {dimension_semantics = [#tpu.dimension_semantics<parallel>], iteration_bounds = array<i64: 1>, scalar_prefetch = 0 : i64, scratch_operands = 0 : i64, tpu.core_type = #tpu.core_type<tc>, window_params = [{transform_indices = @transform_0, window_bounds = array<i64: 2, 64>}, {pipeline_mode = #tpu.pipeline_mode<synchronous>, transform_indices = @transform_1, window_bounds = array<i64: 64, 32>}, {pipeline_mode = #tpu.pipeline_mode<synchronous>, transform_indices = @transform_2, window_bounds = array<i64: 1, 32>}, {transform_indices = @transform_3, window_bounds = array<i64: 2, 32>}]} {
    %c0 = arith.constant 0 : index
    %c0_0 = arith.constant 0 : index
    %0 = vector.load %arg1[%c0, %c0_0] : memref<2x64xf32, #tpu.memory_space<vmem>>, vector<2x64xf32>
    %1 = arith.truncf %0 : vector<2x64xf32> to vector<2x64xbf16>
    %c0_1 = arith.constant 0 : index
    %c0_2 = arith.constant 0 : index
    %2 = vector.load %arg2[%c0_1, %c0_2] : memref<64x32xbf16, #tpu.memory_space<vmem>>, vector<64x32xbf16>
    %cst = arith.constant dense<0.000000e+00> : vector<2x32xf32>
    %3 = tpu.matmul %1, %2, %cst {dimension_numbers = #tpu.dot_dimension_numbers<[1], [0], [0], [1], [0, 0, 1, 1], [], []>} : vector<2x64xbf16>, vector<64x32xbf16>, vector<2x32xf32> -> vector<2x32xf32>
    %c0_3 = arith.constant 0 : index
    %c0_4 = arith.constant 0 : index
    %4 = vector.load %arg3[%c0_3, %c0_4] : memref<1x32xf32, #tpu.memory_space<vmem>>, vector<1x32xf32>
    %5 = vector.broadcast %4 : vector<1x32xf32> to vector<2x32xf32>
    %6 = arith.addf %3, %5 : vector<2x32xf32>
    %7 = math.tanh %6 : vector<2x32xf32>
    %c0_5 = arith.constant 0 : index
    %c0_6 = arith.constant 0 : index
    %8 = vector.load %arg4[%c0_5, %c0_6] : memref<2x32xf32, #tpu.memory_space<vmem>>, vector<2x32xf32>
    tpu.vector_store %arg4[%c0_5, %c0_6], %7 {strides = array<i32>} : memref<2x32xf32, #tpu.memory_space<vmem>>, vector<2x32xf32>,
    return
  }
  func.func @transform_0(%arg0: i32) -> (i32, i32) {
    %c0_i32 = arith.constant 0 : i32
    %c0_i32_0 = arith.constant 0 : i32
    return %arg0, %c0_i32 : i32, i32
  }
  func.func @transform_1(%arg0: i32) -> (i32, i32) {
    %c0_i32 = arith.constant 0 : i32
    %c0_i32_0 = arith.constant 0 : i32
    %c0_i32_1 = arith.constant 0 : i32
    return %c0_i32, %c0_i32_0 : i32, i32
  }
  func.func @transform_2(%arg0: i32) -> (i32, i32) {
    %c0_i32 = arith.constant 0 : i32
    %c0_i32_0 = arith.constant 0 : i32
    %c0_i32_1 = arith.constant 0 : i32
    return %c0_i32, %c0_i32_0 : i32, i32
  }
  func.func @transform_3(%arg0: i32) -> (i32, i32) {
    %c0_i32 = arith.constant 0 : i32
    %c0_i32_0 = arith.constant 0 : i32
    return %arg0, %c0_i32 : i32, i32
  }
}

module attributes {stable_mosaic.version = 11 : i64} {
  func.func @kernel(%arg0: i32, %arg1: memref<256x16xf32, #tpu.memory_space<vmem>>, %arg2: memref<16x32xbf16, #tpu.memory_space<vmem>>, %arg3: memref<1x32xf32, #tpu.memory_space<vmem>>, %arg4: memref<256x32xf32, #tpu.memory_space<vmem>>) attributes {dimension_semantics = [#tpu.dimension_semantics<parallel>], iteration_bounds = array<i64: 1>, scalar_prefetch = 0 : i64, scratch_operands = 0 : i64, tpu.core_type = #tpu.core_type<tc>, window_params = [{transform_indices = @transform_0, window_bounds = array<i64: 256, 16>}, {pipeline_mode = #tpu.pipeline_mode<synchronous>, transform_indices = @transform_1, window_bounds = array<i64: 16, 32>}, {pipeline_mode = #tpu.pipeline_mode<synchronous>, transform_indices = @transform_2, window_bounds = array<i64: 1, 32>}, {transform_indices = @transform_3, window_bounds = array<i64: 256, 32>}]} {
    %c0 = arith.constant 0 : index
    %c0_0 = arith.constant 0 : index
    %0 = vector.load %arg1[%c0, %c0_0] : memref<256x16xf32, #tpu.memory_space<vmem>>, vector<256x16xf32>
    %1 = arith.truncf %0 : vector<256x16xf32> to vector<256x16xbf16>
    %c0_1 = arith.constant 0 : index
    %c0_2 = arith.constant 0 : index
    %2 = vector.load %arg2[%c0_1, %c0_2] : memref<16x32xbf16, #tpu.memory_space<vmem>>, vector<16x32xbf16>
    %cst = arith.constant dense<0.000000e+00> : vector<256x32xf32>
    %3 = tpu.matmul %1, %2, %cst {dimension_numbers = #tpu.dot_dimension_numbers<[1], [0], [0], [1], [0, 0, 1, 1], [], []>} : vector<256x16xbf16>, vector<16x32xbf16>, vector<256x32xf32> -> vector<256x32xf32>
    %c0_3 = arith.constant 0 : index
    %c0_4 = arith.constant 0 : index
    %4 = vector.load %arg3[%c0_3, %c0_4] : memref<1x32xf32, #tpu.memory_space<vmem>>, vector<1x32xf32>
    %5 = vector.broadcast %4 : vector<1x32xf32> to vector<256x32xf32>
    %6 = arith.addf %3, %5 : vector<256x32xf32>
    %c0_5 = arith.constant 0 : index
    %c0_6 = arith.constant 0 : index
    %7 = vector.load %arg4[%c0_5, %c0_6] : memref<256x32xf32, #tpu.memory_space<vmem>>, vector<256x32xf32>
    tpu.vector_store %arg4[%c0_5, %c0_6], %6 {strides = array<i32>} : memref<256x32xf32, #tpu.memory_space<vmem>>, vector<256x32xf32>,
    return
  }
  func.func @transform_0(%arg0: i32) -> (i32, i32) {
    %c0_i32 = arith.constant 0 : i32
    %c0_i32_0 = arith.constant 0 : i32
    return %arg0, %c0_i32 : i32, i32
  }
  func.func @transform_1(%arg0: i32) -> (i32, i32) {
    %c0_i32 = arith.constant 0 : i32
    %c0_i32_0 = arith.constant 0 : i32
    %c0_i32_1 = arith.constant 0 : i32
    return %c0_i32, %c0_i32_0 : i32, i32
  }
  func.func @transform_2(%arg0: i32) -> (i32, i32) {
    %c0_i32 = arith.constant 0 : i32
    %c0_i32_0 = arith.constant 0 : i32
    %c0_i32_1 = arith.constant 0 : i32
    return %c0_i32, %c0_i32_0 : i32, i32
  }
  func.func @transform_3(%arg0: i32) -> (i32, i32) {
    %c0_i32 = arith.constant 0 : i32
    %c0_i32_0 = arith.constant 0 : i32
    return %arg0, %c0_i32 : i32, i32
  }
}

module attributes {stable_mosaic.version = 11 : i64} {
  func.func @kernel(%arg0: i32, %arg1: memref<8x16xf32, #tpu.memory_space<vmem>>, %arg2: memref<16x96xbf16, #tpu.memory_space<vmem>>, %arg3: memref<1x96xf32, #tpu.memory_space<vmem>>, %arg4: memref<8x96xf32, #tpu.memory_space<vmem>>) attributes {dimension_semantics = [#tpu.dimension_semantics<parallel>], iteration_bounds = array<i64: 1>, scalar_prefetch = 0 : i64, scratch_operands = 0 : i64, tpu.core_type = #tpu.core_type<tc>, window_params = [{transform_indices = @transform_0, window_bounds = array<i64: 8, 16>}, {pipeline_mode = #tpu.pipeline_mode<synchronous>, transform_indices = @transform_1, window_bounds = array<i64: 16, 96>}, {pipeline_mode = #tpu.pipeline_mode<synchronous>, transform_indices = @transform_2, window_bounds = array<i64: 1, 96>}, {transform_indices = @transform_3, window_bounds = array<i64: 8, 96>}]} {
    %c0 = arith.constant 0 : index
    %c0_0 = arith.constant 0 : index
    %0 = vector.load %arg1[%c0, %c0_0] : memref<8x16xf32, #tpu.memory_space<vmem>>, vector<8x16xf32>
    %1 = arith.truncf %0 : vector<8x16xf32> to vector<8x16xbf16>
    %c0_1 = arith.constant 0 : index
    %c0_2 = arith.constant 0 : index
    %2 = vector.load %arg2[%c0_1, %c0_2] : memref<16x96xbf16, #tpu.memory_space<vmem>>, vector<16x96xbf16>
    %cst = arith.constant dense<0.000000e+00> : vector<8x96xf32>
    %3 = tpu.matmul %1, %2, %cst {dimension_numbers = #tpu.dot_dimension_numbers<[1], [0], [0], [1], [0, 0, 1, 1], [], []>} : vector<8x16xbf16>, vector<16x96xbf16>, vector<8x96xf32> -> vector<8x96xf32>
    %c0_3 = arith.constant 0 : index
    %c0_4 = arith.constant 0 : index
    %4 = vector.load %arg3[%c0_3, %c0_4] : memref<1x96xf32, #tpu.memory_space<vmem>>, vector<1x96xf32>
    %5 = vector.broadcast %4 : vector<1x96xf32> to vector<8x96xf32>
    %6 = arith.addf %3, %5 : vector<8x96xf32>
    %c0_5 = arith.constant 0 : index
    %c0_6 = arith.constant 0 : index
    %7 = vector.load %arg4[%c0_5, %c0_6] : memref<8x96xf32, #tpu.memory_space<vmem>>, vector<8x96xf32>
    tpu.vector_store %arg4[%c0_5, %c0_6], %6 {strides = array<i32>} : memref<8x96xf32, #tpu.memory_space<vmem>>, vector<8x96xf32>,
    return
  }
  func.func @transform_0(%arg0: i32) -> (i32, i32) {
    %c0_i32 = arith.constant 0 : i32
    %c0_i32_0 = arith.constant 0 : i32
    return %arg0, %c0_i32 : i32, i32
  }
  func.func @transform_1(%arg0: i32) -> (i32, i32) {
    %c0_i32 = arith.constant 0 : i32
    %c0_i32_0 = arith.constant 0 : i32
    %c0_i32_1 = arith.constant 0 : i32
    return %c0_i32, %c0_i32_0 : i32, i32
  }
  func.func @transform_2(%arg0: i32) -> (i32, i32) {
    %c0_i32 = arith.constant 0 : i32
    %c0_i32_0 = arith.constant 0 : i32
    %c0_i32_1 = arith.constant 0 : i32
    return %c0_i32, %c0_i32_0 : i32, i32
  }
  func.func @transform_3(%arg0: i32) -> (i32, i32) {
    %c0_i32 = arith.constant 0 : i32
    %c0_i32_0 = arith.constant 0 : i32
    return %arg0, %c0_i32 : i32, i32
  }
}

module attributes {stable_mosaic.version = 11 : i64} {
  func.func @kernel(%arg0: i32, %arg1: memref<1x2x96xf32, #tpu.memory_space<vmem>>, %arg2: memref<1x2x32xf32, #tpu.memory_space<vmem>>, %arg3: memref<2x8x64xbf16, #tpu.memory_space<vmem>>, %arg4: memref<2x8x32xbf16, #tpu.memory_space<vmem>>, %arg5: memref<2x8xf32, #tpu.memory_space<vmem>>, %arg6: memref<2x128x16xbf16, #tpu.memory_space<vmem>>, %arg7: memref<2x128x32xbf16, #tpu.memory_space<vmem>>, %arg8: memref<1x128xf32, #tpu.memory_space<vmem>>, %arg9: memref<32x97xbf16, #tpu.memory_space<vmem>>, %arg10: memref<1x32xbf16, #tpu.memory_space<vmem>>, %arg11: memref<1x32xbf16, #tpu.memory_space<vmem>>, %arg12: memref<64x33xbf16, #tpu.memory_space<vmem>>, %arg13: memref<16x33xbf16, #tpu.memory_space<vmem>>, %arg14: memref<2x33xf32, #tpu.memory_space<vmem>>, %arg15: memref<32x128xbf16, #tpu.memory_space<vmem>>, %arg16: memref<1x128xf32, #tpu.memory_space<vmem>>, %arg17: memref<32x96xbf16, #tpu.memory_space<vmem>>, %arg18: memref<1x96xf32, #tpu.memory_space<vmem>>, %arg19: memref<1x2x256xf32, #tpu.memory_space<vmem>>, %arg20: memref<1x2x32xf32, #tpu.memory_space<vmem>>) attributes {dimension_semantics = [#tpu.dimension_semantics<arbitrary>], iteration_bounds = array<i64: 4>, scalar_prefetch = 0 : i64, scratch_operands = 1 : i64, tpu.core_type = #tpu.core_type<tc>, window_params = [{transform_indices = @transform_0, window_bounds = array<i64: 1, 2, 96>}, {pipeline_mode = #tpu.pipeline_mode<synchronous>, transform_indices = @transform_1, window_bounds = array<i64: 1, 2, 32>}, {pipeline_mode = #tpu.pipeline_mode<synchronous>, transform_indices = @transform_2, window_bounds = array<i64: 2, 8, 64>}, {pipeline_mode = #tpu.pipeline_mode<synchronous>, transform_indices = @transform_3, window_bounds = array<i64: 2, 8, 32>}, {pipeline_mode = #tpu.pipeline_mode<synchronous>, transform_indices = @transform_4, window_bounds = array<i64: 2, 8>}, {pipeline_mode = #tpu.pipeline_mode<synchronous>, transform_indices = @transform_5, window_bounds = array<i64: 2, 128, 16>}, {pipeline_mode = #tpu.pipeline_mode<synchronous>, transform_indices = @transform_6, window_bounds = array<i64: 2, 128, 32>}, {pipeline_mode = #tpu.pipeline_mode<synchronous>, transform_indices = @transform_7, window_bounds = array<i64: 1, 128>}, {pipeline_mode = #tpu.pipeline_mode<synchronous>, transform_indices = @transform_8, window_bounds = array<i64: 32, 97>}, {pipeline_mode = #tpu.pipeline_mode<synchronous>, transform_indices = @transform_9, window_bounds = array<i64: 1, 32>}, {pipeline_mode = #tpu.pipeline_mode<synchronous>, transform_indices = @transform_10, window_bounds = array<i64: 1, 32>}, {pipeline_mode = #tpu.pipeline_mode<synchronous>, transform_indices = @transform_11, window_bounds = array<i64: 64, 33>}, {pipeline_mode = #tpu.pipeline_mode<synchronous>, transform_indices = @transform_12, window_bounds = array<i64: 16, 33>}, {pipeline_mode = #tpu.pipeline_mode<synchronous>, transform_indices = @transform_13, window_bounds = array<i64: 2, 33>}, {pipeline_mode = #tpu.pipeline_mode<synchronous>, transform_indices = @transform_14, window_bounds = array<i64: 32, 128>}, {pipeline_mode = #tpu.pipeline_mode<synchronous>, transform_indices = @transform_15, window_bounds = array<i64: 1, 128>}, {pipeline_mode = #tpu.pipeline_mode<synchronous>, transform_indices = @transform_16, window_bounds = array<i64: 32, 96>}, {pipeline_mode = #tpu.pipeline_mode<synchronous>, transform_indices = @transform_17, window_bounds = array<i64: 1, 96>}, {transform_indices = @transform_18, window_bounds = array<i64: 1, 2, 256>}]} {
    %c0_i32 = arith.constant 0 : i32
    %0 = arith.cmpi eq, %arg0, %c0_i32 : i32
    %1 = arith.extui %0 : i1 to i32
    %c0_i32_0 = arith.constant 0 : i32
    %2 = arith.cmpi ne, %1, %c0_i32_0 : i32
    scf.if %2 {
      %c0_67 = arith.constant 0 : index
      %c0_68 = arith.constant 0 : index
      %c0_69 = arith.constant 0 : index
      %149 = vector.load %arg2[%c0_67, %c0_68, %c0_69] : memref<1x2x32xf32, #tpu.memory_space<vmem>>, vector<1x2x32xf32>
      %c0_70 = arith.constant 0 : index
      %c0_71 = arith.constant 0 : index
      %c0_72 = arith.constant 0 : index
      %150 = vector.load %arg20[%c0_70, %c0_71, %c0_72] : memref<1x2x32xf32, #tpu.memory_space<vmem>>, vector<1x2x32xf32>
      tpu.vector_store %arg20[%c0_70, %c0_71, %c0_72], %149 {strides = array<i32>} : memref<1x2x32xf32, #tpu.memory_space<vmem>>, vector<1x2x32xf32>,
    } else {
    }
    %c0 = arith.constant 0 : index
    %c0_1 = arith.constant 0 : index
    %c0_2 = arith.constant 0 : index
    %3 = vector.load %arg20[%c0, %c0_1, %c0_2] : memref<1x2x32xf32, #tpu.memory_space<vmem>>, vector<1x2x32xf32>
    %4 = vector.shape_cast %3 : vector<1x2x32xf32> to vector<2x32xf32>
    %c0_3 = arith.constant 0 : index
    %c0_4 = arith.constant 0 : index
    %c0_5 = arith.constant 0 : index
    %5 = vector.load %arg1[%c0_3, %c0_4, %c0_5] : memref<1x2x96xf32, #tpu.memory_space<vmem>>, vector<1x2x96xf32>
    %6 = vector.shape_cast %5 : vector<1x2x96xf32> to vector<2x96xf32>
    %7 = arith.truncf %4 : vector<2x32xf32> to vector<2x32xbf16>
    %c0_6 = arith.constant 0 : index
    %c0_7 = arith.constant 0 : index
    %8 = vector.load %arg17[%c0_6, %c0_7] : memref<32x96xbf16, #tpu.memory_space<vmem>>, vector<32x96xbf16>
    %cst = arith.constant dense<0.000000e+00> : vector<2x96xf32>
    %9 = tpu.matmul %7, %8, %cst {dimension_numbers = #tpu.dot_dimension_numbers<[1], [0], [0], [1], [0, 0, 1, 1], [], []>} : vector<2x32xbf16>, vector<32x96xbf16>, vector<2x96xf32> -> vector<2x96xf32>
    %c0_8 = arith.constant 0 : index
    %c0_9 = arith.constant 0 : index
    %10 = vector.load %arg18[%c0_8, %c0_9] : memref<1x96xf32, #tpu.memory_space<vmem>>, vector<1x96xf32>
    %11 = vector.broadcast %10 : vector<1x96xf32> to vector<2x96xf32>
    %12 = arith.addf %9, %11 : vector<2x96xf32>
    %13 = vector.extract_strided_slice %6 {offsets = [0, 0], sizes = [2, 32], strides = [1, 1]} : vector<2x96xf32> to vector<2x32xf32>
    %14 = vector.extract_strided_slice %12 {offsets = [0, 0], sizes = [2, 32], strides = [1, 1]} : vector<2x96xf32> to vector<2x32xf32>
    %15 = arith.addf %13, %14 : vector<2x32xf32>
    %16 = arith.negf %15 : vector<2x32xf32>
    %17 = math.exp %16 : vector<2x32xf32>
    %cst_10 = arith.constant 1.000000e+00 : f32
    %18 = vector.broadcast %cst_10 : f32 to vector<2x32xf32>
    %19 = arith.addf %18, %17 : vector<2x32xf32>
    %20 = arith.divf %18, %19 : vector<2x32xf32>
    %21 = vector.extract_strided_slice %6 {offsets = [0, 32], sizes = [2, 32], strides = [1, 1]} : vector<2x96xf32> to vector<2x32xf32>
    %22 = vector.extract_strided_slice %12 {offsets = [0, 32], sizes = [2, 32], strides = [1, 1]} : vector<2x96xf32> to vector<2x32xf32>
    %23 = arith.addf %21, %22 : vector<2x32xf32>
    %24 = arith.negf %23 : vector<2x32xf32>
    %25 = math.exp %24 : vector<2x32xf32>
    %cst_11 = arith.constant 1.000000e+00 : f32
    %26 = vector.broadcast %cst_11 : f32 to vector<2x32xf32>
    %27 = arith.addf %26, %25 : vector<2x32xf32>
    %28 = arith.divf %26, %27 : vector<2x32xf32>
    %29 = vector.extract_strided_slice %6 {offsets = [0, 64], sizes = [2, 32], strides = [1, 1]} : vector<2x96xf32> to vector<2x32xf32>
    %30 = vector.extract_strided_slice %12 {offsets = [0, 64], sizes = [2, 32], strides = [1, 1]} : vector<2x96xf32> to vector<2x32xf32>
    %31 = arith.mulf %20, %30 : vector<2x32xf32>
    %32 = arith.addf %29, %31 : vector<2x32xf32>
    %33 = math.tanh %32 : vector<2x32xf32>
    %cst_12 = arith.constant 1.000000e+00 : f32
    %34 = vector.broadcast %cst_12 : f32 to vector<2x32xf32>
    %35 = arith.subf %34, %28 : vector<2x32xf32>
    %36 = arith.mulf %35, %33 : vector<2x32xf32>
    %37 = arith.mulf %28, %4 : vector<2x32xf32>
    %38 = arith.addf %36, %37 : vector<2x32xf32>
    %c0_13 = arith.constant 0 : index
    %c0_14 = arith.constant 0 : index
    %c0_15 = arith.constant 0 : index
    %39 = vector.load %arg20[%c0_13, %c0_14, %c0_15] : memref<1x2x32xf32, #tpu.memory_space<vmem>>, vector<1x2x32xf32>
    %40 = vector.shape_cast %39 : vector<1x2x32xf32> to vector<2x32xf32>
    %41 = vector.shape_cast %38 : vector<2x32xf32> to vector<1x2x32xf32>
    tpu.vector_store %arg20[%c0_13, %c0_14, %c0_15], %41 {strides = array<i32>} : memref<1x2x32xf32, #tpu.memory_space<vmem>>, vector<1x2x32xf32>,
    %42 = arith.truncf %38 : vector<2x32xf32> to vector<2x32xbf16>
    %c0_16 = arith.constant 0 : index
    %c0_17 = arith.constant 0 : index
    %43 = vector.load %arg9[%c0_16, %c0_17] : memref<32x97xbf16, #tpu.memory_space<vmem>>, vector<32x97xbf16>
    %cst_18 = arith.constant dense<0.000000e+00> : vector<2x97xf32>
    %44 = tpu.matmul %42, %43, %cst_18 {dimension_numbers = #tpu.dot_dimension_numbers<[1], [0], [0], [1], [0, 0, 1, 1], [], []>} : vector<2x32xbf16>, vector<32x97xbf16>, vector<2x97xf32> -> vector<2x97xf32>
    %45 = vector.extract_strided_slice %44 {offsets = [0, 0], sizes = [2, 32], strides = [1, 1]} : vector<2x97xf32> to vector<2x32xf32>
    %46 = vector.extract_strided_slice %44 {offsets = [0, 32], sizes = [2, 32], strides = [1, 1]} : vector<2x97xf32> to vector<2x32xf32>
    %47 = vector.extract_strided_slice %44 {offsets = [0, 64], sizes = [2, 33], strides = [1, 1]} : vector<2x97xf32> to vector<2x33xf32>
    %c0_19 = arith.constant 0 : index
    %c0_20 = arith.constant 0 : index
    %48 = vector.load %arg5[%c0_19, %c0_20] : memref<2x8xf32, #tpu.memory_space<vmem>>, vector<2x8xf32>
    %49 = vector.shape_cast %45 : vector<2x32xf32> to vector<2x1x32xf32>
    %c0_21 = arith.constant 0 : index
    %c0_22 = arith.constant 0 : index
    %c0_23 = arith.constant 0 : index
    %50 = vector.load %arg4[%c0_21, %c0_22, %c0_23] : memref<2x8x32xbf16, #tpu.memory_space<vmem>>, vector<2x8x32xbf16>
    %51 = arith.extf %50 : vector<2x8x32xbf16> to vector<2x8x32xf32>
    %52 = vector.broadcast %49 : vector<2x1x32xf32> to vector<2x8x32xf32>
    %53 = arith.addf %52, %51 : vector<2x8x32xf32>
    %54 = math.tanh %53 : vector<2x8x32xf32>
    %c0_24 = arith.constant 0 : index
    %c0_25 = arith.constant 0 : index
    %55 = vector.load %arg10[%c0_24, %c0_25] : memref<1x32xbf16, #tpu.memory_space<vmem>>, vector<1x32xbf16>
    %56 = vector.shape_cast %55 : vector<1x32xbf16> to vector<1x1x32xbf16>
    %57 = arith.extf %56 : vector<1x1x32xbf16> to vector<1x1x32xf32>
    %58 = vector.broadcast %57 : vector<1x1x32xf32> to vector<2x8x32xf32>
    %59 = arith.mulf %54, %58 : vector<2x8x32xf32>
    %cst_26 = arith.constant dense<0.000000e+00> : vector<2x8xf32>
    %60 = vector.multi_reduction <add>, %59, %cst_26 [2] : vector<2x8x32xf32> to vector<2x8xf32>
    %61 = arith.addf %60, %48 : vector<2x8xf32>
    %cst_27 = arith.constant dense<0xFF800000> : vector<2xf32>
    %62 = vector.multi_reduction <maximumf>, %61, %cst_27 [1] : vector<2x8xf32> to vector<2xf32>
    %63 = vector.shape_cast %62 : vector<2xf32> to vector<2x1xf32>
    %64 = vector.broadcast %63 : vector<2x1xf32> to vector<2x8xf32>
    %65 = arith.subf %61, %64 : vector<2x8xf32>
    %66 = math.exp %65 : vector<2x8xf32>
    %cst_28 = arith.constant dense<0.000000e+00> : vector<2xf32>
    %67 = vector.multi_reduction <add>, %66, %cst_28 [1] : vector<2x8xf32> to vector<2xf32>
    %68 = vector.shape_cast %67 : vector<2xf32> to vector<2x1xf32>
    %69 = tpu.reciprocal %68 {approx = true} : vector<2x1xf32> -> vector<2x1xf32>
    %70 = vector.broadcast %69 : vector<2x1xf32> to vector<2x8xf32>
    %71 = arith.mulf %66, %70 : vector<2x8xf32>
    %72 = vector.shape_cast %71 : vector<2x8xf32> to vector<2x1x8xf32>
    %73 = arith.truncf %72 : vector<2x1x8xf32> to vector<2x1x8xbf16>
    %c0_29 = arith.constant 0 : index
    %c0_30 = arith.constant 0 : index
    %c0_31 = arith.constant 0 : index
    %74 = vector.load %arg3[%c0_29, %c0_30, %c0_31] : memref<2x8x64xbf16, #tpu.memory_space<vmem>>, vector<2x8x64xbf16>
    "tpu.trace_start"() <{level = 10 : i32, message = "bqs,bsv->bqv"}> : () -> ()
    %cst_32 = arith.constant dense<0.000000e+00> : vector<2x1x64xf32>
    %75 = tpu.matmul %73, %74, %cst_32 {dimension_numbers = #tpu.dot_dimension_numbers<[2], [1], [1], [2], [0, 0, 0, 1, 1, 2], [0], [0]>} : vector<2x1x8xbf16>, vector<2x8x64xbf16>, vector<2x1x64xf32> -> vector<2x1x64xf32>
    "tpu.trace_stop"() : () -> ()
    %76 = vector.shape_cast %75 : vector<2x1x64xf32> to vector<2x64xf32>
    %c0_33 = arith.constant 0 : index
    %c0_34 = arith.constant 0 : index
    %77 = vector.load %arg8[%c0_33, %c0_34] : memref<1x128xf32, #tpu.memory_space<vmem>>, vector<1x128xf32>
    %78 = vector.shape_cast %46 : vector<2x32xf32> to vector<2x1x32xf32>
    %c0_35 = arith.constant 0 : index
    %c0_36 = arith.constant 0 : index
    %c0_37 = arith.constant 0 : index
    %79 = vector.load %arg7[%c0_35, %c0_36, %c0_37] : memref<2x128x32xbf16, #tpu.memory_space<vmem>>, vector<2x128x32xbf16>
    %80 = arith.extf %79 : vector<2x128x32xbf16> to vector<2x128x32xf32>
    %81 = vector.broadcast %78 : vector<2x1x32xf32> to vector<2x128x32xf32>
    %82 = arith.addf %81, %80 : vector<2x128x32xf32>
    %83 = math.tanh %82 : vector<2x128x32xf32>
    %c0_38 = arith.constant 0 : index
    %c0_39 = arith.constant 0 : index
    %84 = vector.load %arg11[%c0_38, %c0_39] : memref<1x32xbf16, #tpu.memory_space<vmem>>, vector<1x32xbf16>
    %85 = vector.shape_cast %84 : vector<1x32xbf16> to vector<1x1x32xbf16>
    %86 = arith.extf %85 : vector<1x1x32xbf16> to vector<1x1x32xf32>
    %87 = vector.broadcast %86 : vector<1x1x32xf32> to vector<2x128x32xf32>
    %88 = arith.mulf %83, %87 : vector<2x128x32xf32>
    %cst_40 = arith.constant dense<0.000000e+00> : vector<2x128xf32>
    %89 = vector.multi_reduction <add>, %88, %cst_40 [2] : vector<2x128x32xf32> to vector<2x128xf32>
    %90 = vector.broadcast %77 : vector<1x128xf32> to vector<2x128xf32>
    %91 = arith.addf %89, %90 : vector<2x128xf32>
    %cst_41 = arith.constant dense<0xFF800000> : vector<2xf32>
    %92 = vector.multi_reduction <maximumf>, %91, %cst_41 [1] : vector<2x128xf32> to vector<2xf32>
    %93 = vector.shape_cast %92 : vector<2xf32> to vector<2x1xf32>
    %94 = vector.broadcast %93 : vector<2x1xf32> to vector<2x128xf32>
    %95 = arith.subf %91, %94 : vector<2x128xf32>
    %96 = math.exp %95 : vector<2x128xf32>
    %cst_42 = arith.constant dense<0.000000e+00> : vector<2xf32>
    %97 = vector.multi_reduction <add>, %96, %cst_42 [1] : vector<2x128xf32> to vector<2xf32>
    %98 = vector.shape_cast %97 : vector<2xf32> to vector<2x1xf32>
    %99 = vector.broadcast %98 : vector<2x1xf32> to vector<2x128xf32>
    %100 = arith.divf %96, %99 : vector<2x128xf32>
    %101 = vector.shape_cast %100 : vector<2x128xf32> to vector<2x1x128xf32>
    %102 = arith.truncf %101 : vector<2x1x128xf32> to vector<2x1x128xbf16>
    %c0_43 = arith.constant 0 : index
    %c0_44 = arith.constant 0 : index
    %c0_45 = arith.constant 0 : index
    %103 = vector.load %arg6[%c0_43, %c0_44, %c0_45] : memref<2x128x16xbf16, #tpu.memory_space<vmem>>, vector<2x128x16xbf16>
    "tpu.trace_start"() <{level = 10 : i32, message = "bqs,bsv->bqv"}> : () -> ()
    %cst_46 = arith.constant dense<0.000000e+00> : vector<2x1x16xf32>
    %104 = tpu.matmul %102, %103, %cst_46 {dimension_numbers = #tpu.dot_dimension_numbers<[2], [1], [1], [2], [0, 0, 0, 1, 1, 2], [0], [0]>} : vector<2x1x128xbf16>, vector<2x128x16xbf16>, vector<2x1x16xf32> -> vector<2x1x16xf32>
    "tpu.trace_stop"() : () -> ()
    %105 = vector.shape_cast %104 : vector<2x1x16xf32> to vector<2x16xf32>
    %106 = arith.truncf %76 : vector<2x64xf32> to vector<2x64xbf16>
    %c0_47 = arith.constant 0 : index
    %c0_48 = arith.constant 0 : index
    %107 = vector.load %arg12[%c0_47, %c0_48] : memref<64x33xbf16, #tpu.memory_space<vmem>>, vector<64x33xbf16>
    %cst_49 = arith.constant dense<0.000000e+00> : vector<2x33xf32>
    %108 = tpu.matmul %106, %107, %cst_49 {dimension_numbers = #tpu.dot_dimension_numbers<[1], [0], [0], [1], [0, 0, 1, 1], [], []>} : vector<2x64xbf16>, vector<64x33xbf16>, vector<2x33xf32> -> vector<2x33xf32>
    %109 = arith.addf %47, %108 : vector<2x33xf32>
    %110 = arith.truncf %105 : vector<2x16xf32> to vector<2x16xbf16>
    %c0_50 = arith.constant 0 : index
    %c0_51 = arith.constant 0 : index
    %111 = vector.load %arg13[%c0_50, %c0_51] : memref<16x33xbf16, #tpu.memory_space<vmem>>, vector<16x33xbf16>
    %cst_52 = arith.constant dense<0.000000e+00> : vector<2x33xf32>
    %112 = tpu.matmul %110, %111, %cst_52 {dimension_numbers = #tpu.dot_dimension_numbers<[1], [0], [0], [1], [0, 0, 1, 1], [], []>} : vector<2x16xbf16>, vector<16x33xbf16>, vector<2x33xf32> -> vector<2x33xf32>
    %113 = arith.addf %109, %112 : vector<2x33xf32>
    %c0_53 = arith.constant 0 : index
    %c0_54 = arith.constant 0 : index
    %114 = vector.load %arg14[%c0_53, %c0_54] : memref<2x33xf32, #tpu.memory_space<vmem>>, vector<2x33xf32>
    %115 = arith.addf %113, %114 : vector<2x33xf32>
    %116 = vector.extract_strided_slice %115 {offsets = [0, 0], sizes = [2, 32], strides = [1, 1]} : vector<2x33xf32> to vector<2x32xf32>
    %117 = math.tanh %116 : vector<2x32xf32>
    %118 = vector.extract_strided_slice %115 {offsets = [0, 32], sizes = [2, 1], strides = [1, 1]} : vector<2x33xf32> to vector<2x1xf32>
    %119 = arith.negf %118 : vector<2x1xf32>
    %120 = math.exp %119 : vector<2x1xf32>
    %cst_55 = arith.constant 1.000000e+00 : f32
    %121 = vector.broadcast %cst_55 : f32 to vector<2x1xf32>
    %122 = arith.addf %121, %120 : vector<2x1xf32>
    %123 = arith.divf %121, %122 : vector<2x1xf32>
    %124 = arith.truncf %117 : vector<2x32xf32> to vector<2x32xbf16>
    %c0_56 = arith.constant 0 : index
    %c0_57 = arith.constant 0 : index
    %125 = vector.load %arg15[%c0_56, %c0_57] : memref<32x128xbf16, #tpu.memory_space<vmem>>, vector<32x128xbf16>
    %cst_58 = arith.constant dense<0.000000e+00> : vector<2x128xf32>
    %126 = tpu.matmul %124, %125, %cst_58 {dimension_numbers = #tpu.dot_dimension_numbers<[1], [0], [0], [1], [0, 0, 1, 1], [], []>} : vector<2x32xbf16>, vector<32x128xbf16>, vector<2x128xf32> -> vector<2x128xf32>
    %c0_59 = arith.constant 0 : index
    %c0_60 = arith.constant 0 : index
    %127 = vector.load %arg16[%c0_59, %c0_60] : memref<1x128xf32, #tpu.memory_space<vmem>>, vector<1x128xf32>
    %128 = vector.broadcast %127 : vector<1x128xf32> to vector<2x128xf32>
    %129 = arith.addf %126, %128 : vector<2x128xf32>
    %cst_61 = arith.constant dense<0xFF800000> : vector<2xf32>
    %130 = vector.multi_reduction <maximumf>, %129, %cst_61 [1] : vector<2x128xf32> to vector<2xf32>
    %131 = vector.shape_cast %130 : vector<2xf32> to vector<2x1xf32>
    %132 = vector.broadcast %131 : vector<2x1xf32> to vector<2x128xf32>
    %133 = arith.subf %129, %132 : vector<2x128xf32>
    %134 = math.exp %133 : vector<2x128xf32>
    %cst_62 = arith.constant dense<0.000000e+00> : vector<2xf32>
    %135 = vector.multi_reduction <add>, %134, %cst_62 [1] : vector<2x128xf32> to vector<2xf32>
    %136 = vector.shape_cast %135 : vector<2xf32> to vector<2x1xf32>
    %137 = vector.broadcast %136 : vector<2x1xf32> to vector<2x128xf32>
    %138 = arith.divf %134, %137 : vector<2x128xf32>
    %cst_63 = arith.constant 1.000000e+00 : f32
    %139 = vector.broadcast %cst_63 : f32 to vector<2x1xf32>
    %140 = arith.subf %139, %123 : vector<2x1xf32>
    %141 = vector.broadcast %140 : vector<2x1xf32> to vector<2x128xf32>
    %142 = arith.mulf %141, %138 : vector<2x128xf32>
    %143 = vector.broadcast %123 : vector<2x1xf32> to vector<2x128xf32>
    %144 = arith.mulf %143, %100 : vector<2x128xf32>
    %145 = tpu.concatenate %142, %144 in 1 : vector<2x128xf32>, vector<2x128xf32> -> vector<2x256xf32>
    %c0_64 = arith.constant 0 : index
    %c0_65 = arith.constant 0 : index
    %c0_66 = arith.constant 0 : index
    %146 = vector.load %arg19[%c0_64, %c0_65, %c0_66] : memref<1x2x256xf32, #tpu.memory_space<vmem>>, vector<1x2x256xf32>
    %147 = vector.shape_cast %146 : vector<1x2x256xf32> to vector<2x256xf32>
    %148 = vector.shape_cast %145 : vector<2x256xf32> to vector<1x2x256xf32>
    tpu.vector_store %arg19[%c0_64, %c0_65, %c0_66], %148 {strides = array<i32>} : memref<1x2x256xf32, #tpu.memory_space<vmem>>, vector<1x2x256xf32>,
    return
  }
  func.func @transform_0(%arg0: i32) -> (i32, i32, i32) {
    %c0_i32 = arith.constant 0 : i32
    %c0_i32_0 = arith.constant 0 : i32
    %c0_i32_1 = arith.constant 0 : i32
    return %arg0, %c0_i32, %c0_i32_0 : i32, i32, i32
  }
  func.func @transform_1(%arg0: i32) -> (i32, i32, i32) {
    %c0_i32 = arith.constant 0 : i32
    %c0_i32_0 = arith.constant 0 : i32
    %c0_i32_1 = arith.constant 0 : i32
    %c0_i32_2 = arith.constant 0 : i32
    return %c0_i32, %c0_i32_0, %c0_i32_1 : i32, i32, i32
  }
  func.func @transform_2(%arg0: i32) -> (i32, i32, i32) {
    %c0_i32 = arith.constant 0 : i32
    %c0_i32_0 = arith.constant 0 : i32
    %c0_i32_1 = arith.constant 0 : i32
    %c0_i32_2 = arith.constant 0 : i32
    return %c0_i32, %c0_i32_0, %c0_i32_1 : i32, i32, i32
  }
  func.func @transform_3(%arg0: i32) -> (i32, i32, i32) {
    %c0_i32 = arith.constant 0 : i32
    %c0_i32_0 = arith.constant 0 : i32
    %c0_i32_1 = arith.constant 0 : i32
    %c0_i32_2 = arith.constant 0 : i32
    return %c0_i32, %c0_i32_0, %c0_i32_1 : i32, i32, i32
  }
  func.func @transform_4(%arg0: i32) -> (i32, i32) {
    %c0_i32 = arith.constant 0 : i32
    %c0_i32_0 = arith.constant 0 : i32
    %c0_i32_1 = arith.constant 0 : i32
    return %c0_i32, %c0_i32_0 : i32, i32
  }
  func.func @transform_5(%arg0: i32) -> (i32, i32, i32) {
    %c0_i32 = arith.constant 0 : i32
    %c0_i32_0 = arith.constant 0 : i32
    %c0_i32_1 = arith.constant 0 : i32
    %c0_i32_2 = arith.constant 0 : i32
    return %c0_i32, %c0_i32_0, %c0_i32_1 : i32, i32, i32
  }
  func.func @transform_6(%arg0: i32) -> (i32, i32, i32) {
    %c0_i32 = arith.constant 0 : i32
    %c0_i32_0 = arith.constant 0 : i32
    %c0_i32_1 = arith.constant 0 : i32
    %c0_i32_2 = arith.constant 0 : i32
    return %c0_i32, %c0_i32_0, %c0_i32_1 : i32, i32, i32
  }
  func.func @transform_7(%arg0: i32) -> (i32, i32) {
    %c0_i32 = arith.constant 0 : i32
    %c0_i32_0 = arith.constant 0 : i32
    %c0_i32_1 = arith.constant 0 : i32
    return %c0_i32, %c0_i32_0 : i32, i32
  }
  func.func @transform_8(%arg0: i32) -> (i32, i32) {
    %c0_i32 = arith.constant 0 : i32
    %c0_i32_0 = arith.constant 0 : i32
    %c0_i32_1 = arith.constant 0 : i32
    return %c0_i32, %c0_i32_0 : i32, i32
  }
  func.func @transform_9(%arg0: i32) -> (i32, i32) {
    %c0_i32 = arith.constant 0 : i32
    %c0_i32_0 = arith.constant 0 : i32
    %c0_i32_1 = arith.constant 0 : i32
    return %c0_i32, %c0_i32_0 : i32, i32
  }
  func.func @transform_10(%arg0: i32) -> (i32, i32) {
    %c0_i32 = arith.constant 0 : i32
    %c0_i32_0 = arith.constant 0 : i32
    %c0_i32_1 = arith.constant 0 : i32
    return %c0_i32, %c0_i32_0 : i32, i32
  }
  func.func @transform_11(%arg0: i32) -> (i32, i32) {
    %c0_i32 = arith.constant 0 : i32
    %c0_i32_0 = arith.constant 0 : i32
    %c0_i32_1 = arith.constant 0 : i32
    return %c0_i32, %c0_i32_0 : i32, i32
  }
  func.func @transform_12(%arg0: i32) -> (i32, i32) {
    %c0_i32 = arith.constant 0 : i32
    %c0_i32_0 = arith.constant 0 : i32
    %c0_i32_1 = arith.constant 0 : i32
    return %c0_i32, %c0_i32_0 : i32, i32
  }
  func.func @transform_13(%arg0: i32) -> (i32, i32) {
    %c0_i32 = arith.constant 0 : i32
    %c0_i32_0 = arith.constant 0 : i32
    %c0_i32_1 = arith.constant 0 : i32
    return %c0_i32, %c0_i32_0 : i32, i32
  }
  func.func @transform_14(%arg0: i32) -> (i32, i32) {
    %c0_i32 = arith.constant 0 : i32
    %c0_i32_0 = arith.constant 0 : i32
    %c0_i32_1 = arith.constant 0 : i32
    return %c0_i32, %c0_i32_0 : i32, i32
  }
  func.func @transform_15(%arg0: i32) -> (i32, i32) {
    %c0_i32 = arith.constant 0 : i32
    %c0_i32_0 = arith.constant 0 : i32
    %c0_i32_1 = arith.constant 0 : i32
    return %c0_i32, %c0_i32_0 : i32, i32
  }
  func.func @transform_16(%arg0: i32) -> (i32, i32) {
    %c0_i32 = arith.constant 0 : i32
    %c0_i32_0 = arith.constant 0 : i32
    %c0_i32_1 = arith.constant 0 : i32
    return %c0_i32, %c0_i32_0 : i32, i32
  }
  func.func @transform_17(%arg0: i32) -> (i32, i32) {
    %c0_i32 = arith.constant 0 : i32
    %c0_i32_0 = arith.constant 0 : i32
    %c0_i32_1 = arith.constant 0 : i32
    return %c0_i32, %c0_i32_0 : i32, i32
  }
  func.func @transform_18(%arg0: i32) -> (i32, i32, i32) {
    %c0_i32 = arith.constant 0 : i32
    %c0_i32_0 = arith.constant 0 : i32
    %c0_i32_1 = arith.constant 0 : i32
    return %arg0, %c0_i32, %c0_i32_0 : i32, i32, i32
  }
}

</mosaic_0001>

<llo_original>
// kernel: tpu_custom_call.1
$region0: #{tpu_custom_call.1}
  #allocation0 [shape = 'u32[]', space=smem, size = 0x4, offset = 0x4, fixed_abs, tag = 'smem constant byte address 0x4 - core index']
  #allocation1 [shape = 'u32[72,128]{1,0:T(1,128)}', space=vmem, size = 0x9000, scoped, tag = 'internal scratch']
  %s0 = inlined_call_operand.hbm [shape: f32[8,128], index: 0, kind: input, shape index: {}]
  %s1 = inlined_call_operand.hbm [shape: f32[16,128], index: 1, kind: output, shape index: {}]
  %s2 = sld [smem:[#allocation0]]
  $region41: #{tpu_custom_call.1} parent=0
    _
  %s4 = ssub.s32 1, %s2
  %s5 = scalar_select 0, %s4, %s2
  $region1: #{tpu_custom_call.1} parent=0
    #allocation2 [shape = 'u8[4096]{0}', space=vmem, size = 0x1000, scoped, tag = 'input window, operand 0, single buffered']
    #allocation3 [shape = 's32[2]{0}', space=sflag, size = 0x8, scoped, tag = 'scoped memory for tpu_custom_call.1']
    #allocation4 [shape = 's32[2]{0}', space=sflag, size = 0x8, scoped, tag = 'scoped memory for tpu_custom_call.1']
    #allocation5 [shape = 'u8[8192]{0}', space=vmem, size = 0x2000, scoped, tag = 'output window, operand 0']
    %6 = vsyncpa [#allocation3], 0
    %7 = vsyncpa [#allocation4], 0
    %s8 = scalar_lea.sflag [#allocation4], 1
    %9 = vsyncpa %s8, 0
    loop: start=0, step=1, limit=4
    $region2: #{tpu_custom_call.1} parent=1 // loop_pre_header
      _
    $region3: #{tpu_custom_call.1} parent=1 // loop_header
      %s11 = sphi 0, %s15
      %p12 = scmp.ge.s32.totalorder %s11, 4
      %s19 = sphi 0, %s19
      %s21 = sphi 0, %s19
      %s22 = sphi 0, %s21
      %s36 = sphi 0, %s22
      %s42 = sphi 0, %s44
      %s45 = sphi 0, %s42
      %s46 = sphi 0, %s45
      %s62 = sphi 0, %s46
    $region4: #{tpu_custom_call.1} parent=1 // loop_header_branch
      %14 = sbr.rel (%p12) target = $region8
    $region5: #{tpu_custom_call.1} parent=1 // loop_body
      %s16 = ssub.s32 %s11, 1
      %s17 = ssub.s32 %s11, 2
      %s18 = sadd.s32 %s11, 1
      %s20 = sadd.s32 %s19, 1
      %p23 = scmp.eq.s32.totalorder %s11, 1
      %p24 = scmp.ne.s32.totalorder %s19, %s21
      %p25 = scmp.eq.s32.totalorder %s11, 0
      %p26 = por %p24, %p25
      %p27 = scmp.ne.s32.totalorder %s19, %s21
      %p28 = scmp.eq.s32.totalorder %s16, 1
      %p29 = por %p27, %p28
      %p30 = scmp.ne.s32.totalorder %s21, %s22
      %p31 = scmp.eq.s32.totalorder %s16, 0
      %p32 = por %p30, %p31
      %p33 = scmp.ne.s32.totalorder %s21, %s22
      %p34 = scmp.eq.s32.totalorder %s17, 1
      %p35 = por %p33, %p34
      %p37 = scmp.ne.s32.totalorder %s22, %s36
      %p38 = scmp.eq.s32.totalorder %s17, 0
      %p39 = por %p37, %p38
      %s40 = ssub.s32 %s11, %s18
      %p41 = scmp.eq.s32.totalorder %s40, 0
      %s43 = sadd.s32 %s42, 1
      %s44 = scalar_select %p41, %s42, %s43
      %p47 = pneg %p41
      %p48 = scmp.eq.s32.totalorder %s11, 1
      %p49 = por %p47, %p48
      %p50 = scmp.ne.s32.totalorder %s42, %s45
      %p51 = scmp.eq.s32.totalorder %s11, 0
      %p52 = por %p50, %p51
      %p53 = scmp.ne.s32.totalorder %s42, %s45
      %p54 = scmp.eq.s32.totalorder %s16, 1
      %p55 = por %p53, %p54
      %p56 = scmp.ne.s32.totalorder %s45, %s46
      %p57 = scmp.eq.s32.totalorder %s16, 0
      %p58 = por %p56, %p57
      %p59 = scmp.ne.s32.totalorder %s45, %s46
      %p60 = scmp.eq.s32.totalorder %s17, 1
      %p61 = por %p59, %p60
      %p63 = scmp.ne.s32.totalorder %s46, %s62
      %p64 = scmp.eq.s32.totalorder %s17, 0
      %p65 = por %p63, %p64
      %p66 = scmp.le.s32.totalorder 1, %s11
      %p67 = scmp.lt.s32.totalorder %s11, 3
      %p68 = pnand %p66, %p67
      %p69 = pneg %p68
      // Predicated region
      $region9: #{tpu_custom_call.1} parent=5 // pred_check
        _
      $region10: #{tpu_custom_call.1} parent=5 // pred_check_branch
        %71 = sbr.rel (%p68) target = $region12
      $region11: #{tpu_custom_call.1} parent=5 // pred_region
        %s72 = ssub.s32 %s11, 1
        // Predicated region
        $region13: #{tpu_custom_call.1} parent=11 // pred_check
          %p73 = pneg %p32
        $region14: #{tpu_custom_call.1} parent=11 // pred_check_branch
          %75 = sbr.rel (%p73) target = $region16
        $region15: #{tpu_custom_call.1} parent=11 // pred_region
          %77 = vsyncadd [#allocation3], 0
          %s79 = sshll.u32 %s0, 4
          %s80 = int_to_ptr.hbm [resolvable:$true] %s79
          %s81 = sshll.u32 [#allocation2], 4
          %s82 = int_to_ptr.vmem [resolvable:$true] %s81
          %84 = dma.hbm_to_vmem [thread:$0]  %s80, 128, %s82, [#allocation3]
        $region16: #{tpu_custom_call.1} parent=11 // pred_fallthru
          _
      $region12: #{tpu_custom_call.1} parent=5 // pred_fallthru
        _
      %p85 = scmp.lt.s32.totalorder %s11, 2
      // Predicated region
      $region17: #{tpu_custom_call.1} parent=5 // pred_check
        %p86 = pneg %p85
      $region18: #{tpu_custom_call.1} parent=5 // pred_check_branch
        %88 = sbr.rel (%p86) target = $region20
      $region19: #{tpu_custom_call.1} parent=5 // pred_region
        _
      $region20: #{tpu_custom_call.1} parent=5 // pred_fallthru
        _
      %p89 = scmp.le.s32.totalorder 1, %s11
      %p90 = scmp.lt.s32.totalorder %s11, 3
      %p91 = pnand %p89, %p90
      %p92 = pneg %p91
      // Predicated region
      $region21: #{tpu_custom_call.1} parent=5 // pred_check
        _
      $region22: #{tpu_custom_call.1} parent=5 // pred_check_branch
        %94 = sbr.rel (%p91) target = $region24
      $region23: #{tpu_custom_call.1} parent=5 // pred_region
        %s95 = ssub.s32 %s11, 1
        // Predicated region
        $region25: #{tpu_custom_call.1} parent=23 // pred_check
          %p96 = pneg %p32
        $region26: #{tpu_custom_call.1} parent=23 // pred_check_branch
          %98 = sbr.rel (%p96) target = $region28
        $region27: #{tpu_custom_call.1} parent=23 // pred_region
          %100 = dma.done [#allocation3], 128
        $region28: #{tpu_custom_call.1} parent=23 // pred_fallthru
          _
        %p101 = pneg %p32
        %p102 = pneg %p29
        %p103 = pneg %p58
        %p104 = pneg %p55
        %s105 = sand.u32 %s45, 1
        %s106 = scalar_lea.sflag [#allocation4], %s105
        %s107 = sand.u32 %s45, 1
        %s108 = smul.addr %s107, 8
        %s109 = scalar_lea.vmem [#allocation5], %s108
        %v110 = vld [vmem:[#allocation2] sm:$0xff]
        %v111 = vadd.f32 %v110, 1.0
        %112 = vst [vmem:[%s109] sm:$0xff] %v111
        %s113 = sand.u32 %s45, 1
        %s114 = scalar_lea.sflag [#allocation4], %s113
        %s115 = sand.u32 %s45, 1
        %s116 = smul.addr %s115, 8
        %s117 = scalar_lea.vmem [#allocation5], %s116
        // Predicated region
        $region29: #{tpu_custom_call.1} parent=23 // pred_check
          %p118 = pneg %p55
        $region30: #{tpu_custom_call.1} parent=23 // pred_check_branch
          %120 = sbr.rel (%p118) target = $region32
        $region31: #{tpu_custom_call.1} parent=23 // pred_region
          %122 = vsyncadd %s114, 0
          %s123 = smul.addr %s16, 8
          %s124 = scalar_lea.hbm %s1, %s123
          %s126 = sshll.u32 %s117, 4
          %s127 = int_to_ptr.vmem [resolvable:$true] %s126
          %s128 = sshll.u32 %s124, 4
          %s129 = int_to_ptr.hbm [resolvable:$true] %s128
          %131 = dma.vmem_to_hbm [thread:$0]  %s127, 128, %s129, %s114
        $region32: #{tpu_custom_call.1} parent=23 // pred_fallthru
          _
      $region24: #{tpu_custom_call.1} parent=5 // pred_fallthru
        _
      %p132 = scmp.le.s32.totalorder 2, %s11
      // Predicated region
      $region33: #{tpu_custom_call.1} parent=5 // pred_check
        %p133 = pneg %p132
      $region34: #{tpu_custom_call.1} parent=5 // pred_check_branch
        %135 = sbr.rel (%p133) target = $region36
      $region35: #{tpu_custom_call.1} parent=5 // pred_region
        %s136 = ssub.s32 %s11, 2
        // Predicated region
        $region37: #{tpu_custom_call.1} parent=35 // pred_check
          %p137 = pneg %p61
        $region38: #{tpu_custom_call.1} parent=35 // pred_check_branch
          %139 = sbr.rel (%p137) target = $region40
        $region39: #{tpu_custom_call.1} parent=35 // pred_region
          %s140 = sand.u32 %s46, 1
          %s141 = scalar_lea.sflag [#allocation4], %s140
          %s142 = sand.u32 %s46, 1
          %s143 = smul.addr %s142, 8
          %s144 = scalar_lea.vmem [#allocation5], %s143
          %146 = dma.done %s141, 128
        $region40: #{tpu_custom_call.1} parent=35 // pred_fallthru
          _
      $region36: #{tpu_custom_call.1} parent=5 // pred_fallthru
        _
    $region6: #{tpu_custom_call.1} parent=1 // loop_footer
      %s15 = sadd.s32 1, %s11
    $region7: #{tpu_custom_call.1} parent=1 // loop_footer_branch
      %10 = sbr.rel target = $region3
    $region8: #{tpu_custom_call.1} parent=1 // loop_exit
      _
    %147 = vsyncpa [#allocation3], 1
    %s148 = scalar_lea.sflag [#allocation3], 1
    %149 = vsyncpa %s148, 1
    %150 = vsyncpa [#allocation4], 1
    %s151 = scalar_lea.sflag [#allocation4], 1
    %152 = vsyncpa %s151, 1

// kernel: batch_nll_loss.7
$region0: #{batch_nll_loss.7}
  #allocation0 [shape = 'u32[]', space=smem, size = 0x4, offset = 0x4, fixed_abs, tag = 'smem constant byte address 0x4 - core index']
  #allocation1 [shape = 'u32[72,128]{1,0:T(1,128)}', space=vmem, size = 0x9000, scoped, tag = 'internal scratch']
  %s0 = inlined_call_operand.vmem [shape: f32[16,16], index: 0, kind: input, shape index: {}]
  %s1 = inlined_call_operand.vmem [shape: bf16[16,192], index: 1, kind: input, shape index: {}]
  %s2 = inlined_call_operand.vmem [shape: f32[1,192], index: 2, kind: input, shape index: {}]
  %s3 = inlined_call_operand.vmem [shape: f32[16,192], index: 3, kind: output, shape index: {}]
  %s4 = sld [smem:[#allocation0]]
  $region22: #{batch_nll_loss.7} parent=0
    _
  %s6 = ssub.s32 1, %s4
  %s7 = scalar_select 0, %s6, %s4
  // Predicated region
  $region2: #{batch_nll_loss.7} parent=0 // pred_check
    _
  $region3: #{batch_nll_loss.7} parent=0 // pred_check_branch
    %9 = sbr.rel (0) target = $region5
  $region4: #{batch_nll_loss.7} parent=0 // pred_region
    _
  $region5: #{batch_nll_loss.7} parent=0 // pred_fallthru
    _
  // Predicated region
  $region6: #{batch_nll_loss.7} parent=0 // pred_check
    _
  $region7: #{batch_nll_loss.7} parent=0 // pred_check_branch
    %11 = sbr.rel (0) target = $region9
  $region8: #{batch_nll_loss.7} parent=0 // pred_region
    _
  $region9: #{batch_nll_loss.7} parent=0 // pred_fallthru
    _
  // Predicated region
  $region10: #{batch_nll_loss.7} parent=0 // pred_check
    _
  $region11: #{batch_nll_loss.7} parent=0 // pred_check_branch
    %13 = sbr.rel (0) target = $region13
  $region12: #{batch_nll_loss.7} parent=0 // pred_region
    _
  $region13: #{batch_nll_loss.7} parent=0 // pred_fallthru
    _
  %v15 = vld [vmem:[%s0] sm:$0xff]
  %v16 = vld [vmem:[%s0 + $0x8] sm:$0xff]
  %v17 = vpack.c.bf16 %v16, %v15
  %v18 = vld [vmem:[%s1] sm:$0xff]
  %v19 = vld [vmem:[%s1 + $0x8] sm:$0xff]
  %v20 = vld [vmem:[%s2] sm:$0x3]
  %v22 = vperm.slane %v20, 0
  %v23 = vperm.slane %v20, 1
  %v28 = vunpack.c.l.b16 %v18
  %v29 = vunpack.c.h.b16 %v18
  %v30 = vunpack.c.l.b16 %v19
  %v31 = vunpack.c.h.b16 %v19
  %v32 = vpack.c.b16 %v30, %v28
  %v33 = vpack.c.b16 %v31, %v29
  %vm36 = vcmask 130048
  %v38 = vsel %vm36, %v17, 0
  %40 = vmatpush.bf16.msra.mxu0 0
  %41 = vmatpush.bf16.msra.mxu0 0
  %42 = vmatpush.bf16.msra.mxu0 0
  %43 = vmatpush.bf16.msra.mxu0 0
  %44 = vmatpush.bf16.msra.mxu0 0
  %45 = vmatpush.bf16.msra.mxu0 0
  %46 = vmatpush.bf16.msra.mxu0 0
  %47 = vmatpush.bf16.msra.mxu0 %v32
  %48 = vmatmul.bf16.gmra.mxu0 %v38
  %v49 = vpop.f32.mrf.mxu0
  %v50 = vadd.f32 %v22, %v49
  %v51 = vpop.f32.mrf.mxu0
  %v52 = vadd.f32 %v22, %v51
  %53 = vdwg.mxu0
  %54 = vmatpush.bf16.msra.mxu0 0
  %55 = vmatpush.bf16.msra.mxu0 0
  %56 = vmatpush.bf16.msra.mxu0 0
  %57 = vmatpush.bf16.msra.mxu0 0
  %58 = vmatpush.bf16.msra.mxu0 0
  %59 = vmatpush.bf16.msra.mxu0 0
  %60 = vmatpush.bf16.msra.mxu0 0
  %61 = vmatpush.bf16.msra.mxu0 %v33
  %62 = vmatmul.bf16.gmra.mxu0 %v38
  %v63 = vpop.f32.mrf.mxu0
  %v64 = vadd.f32 %v23, %v63
  %v65 = vpop.f32.mrf.mxu0
  %v66 = vadd.f32 %v23, %v65
  %67 = vdwg.mxu0
  %68 = vst [vmem:[%s3] sm:$0xff] %v50
  %vm69 = vcmask 523264
  %70 = vst.msk [vmem:[%s3 + $0x8] sm:$0xff] %vm69, %v64
  %71 = vst [vmem:[%s3 + $0x10] sm:$0xff] %v52
  %72 = vst.msk [vmem:[%s3 + $0x18] sm:$0xff] %vm69, %v66
  // Predicated region
  $region14: #{batch_nll_loss.7} parent=0 // pred_check
    _
  $region15: #{batch_nll_loss.7} parent=0 // pred_check_branch
    %74 = sbr.rel (0) target = $region17
  $region16: #{batch_nll_loss.7} parent=0 // pred_region
    _
  $region17: #{batch_nll_loss.7} parent=0 // pred_fallthru
    _
  // Predicated region
  $region18: #{batch_nll_loss.7} parent=0 // pred_check
    _
  $region19: #{batch_nll_loss.7} parent=0 // pred_check_branch
    %76 = sbr.rel (0) target = $region21
  $region20: #{batch_nll_loss.7} parent=0 // pred_region
    _
  $region21: #{batch_nll_loss.7} parent=0 // pred_fallthru
    _

// kernel: batch_nll_loss.10
$region0: #{batch_nll_loss.10}
  #allocation0 [shape = 'u32[]', space=smem, size = 0x4, offset = 0x4, fixed_abs, tag = 'smem constant byte address 0x4 - core index']
  #allocation1 [shape = 'u32[72,128]{1,0:T(1,128)}', space=vmem, size = 0x9000, scoped, tag = 'internal scratch']
  %s0 = inlined_call_operand.vmem [shape: f32[16,64], index: 0, kind: input, shape index: {}]
  %s1 = inlined_call_operand.vmem [shape: bf16[64,32], index: 1, kind: input, shape index: {}]
  %s2 = inlined_call_operand.vmem [shape: f32[1,32], index: 2, kind: input, shape index: {}]
  %s3 = inlined_call_operand.vmem [shape: f32[16,32], index: 3, kind: output, shape index: {}]
  %s4 = sld [smem:[#allocation0]]
  $region22: #{batch_nll_loss.10} parent=0
    _
  %s6 = ssub.s32 1, %s4
  %s7 = scalar_select 0, %s6, %s4
  // Predicated region
  $region2: #{batch_nll_loss.10} parent=0 // pred_check
    _
  $region3: #{batch_nll_loss.10} parent=0 // pred_check_branch
    %9 = sbr.rel (0) target = $region5
  $region4: #{batch_nll_loss.10} parent=0 // pred_region
    _
  $region5: #{batch_nll_loss.10} parent=0 // pred_fallthru
    _
  // Predicated region
  $region6: #{batch_nll_loss.10} parent=0 // pred_check
    _
  $region7: #{batch_nll_loss.10} parent=0 // pred_check_branch
    %11 = sbr.rel (0) target = $region9
  $region8: #{batch_nll_loss.10} parent=0 // pred_region
    _
  $region9: #{batch_nll_loss.10} parent=0 // pred_fallthru
    _
  // Predicated region
  $region10: #{batch_nll_loss.10} parent=0 // pred_check
    _
  $region11: #{batch_nll_loss.10} parent=0 // pred_check_branch
    %13 = sbr.rel (0) target = $region13
  $region12: #{batch_nll_loss.10} parent=0 // pred_region
    _
  $region13: #{batch_nll_loss.10} parent=0 // pred_fallthru
    _
  %v15 = vld [vmem:[%s0] sm:$0xff]
  %v16 = vld [vmem:[%s0 + $0x8] sm:$0xff]
  %v17 = vpack.c.bf16 %v16, %v15
  %v18 = vld [vmem:[%s1] sm:$0xf]
  %v19 = vld [vmem:[%s1 + $0x4] sm:$0xf]
  %v20 = vld [vmem:[%s1 + $0x8] sm:$0xf]
  %v21 = vld [vmem:[%s1 + $0xc] sm:$0xf]
  %v22 = vld [vmem:[%s1 + $0x10] sm:$0xf]
  %v23 = vld [vmem:[%s1 + $0x14] sm:$0xf]
  %v24 = vld [vmem:[%s1 + $0x18] sm:$0xf]
  %v25 = vld [vmem:[%s1 + $0x1c] sm:$0xf]
  %v26 = vld [vmem:[%s2] sm:$0x1]
  %v28 = vperm.slane %v26, 0
  %v38 = vunpack.c.l.b16 %v18
  %v39 = vunpack.c.l.b16 %v19
  %v40 = vunpack.c.l.b16 %v20
  %v41 = vunpack.c.l.b16 %v21
  %v42 = vunpack.c.l.b16 %v22
  %v43 = vunpack.c.l.b16 %v23
  %v44 = vunpack.c.l.b16 %v24
  %v45 = vunpack.c.l.b16 %v25
  %v46 = vpack.c.b16 %v39, %v38
  %v47 = vpack.c.b16 %v41, %v40
  %v48 = vpack.c.b16 %v43, %v42
  %v49 = vpack.c.b16 %v45, %v44
  %vm54 = vcmask 523264
  %v56 = vsel %vm54, %v17, 0
  %58 = vmatpush.bf16.msra.mxu0 0
  %59 = vmatpush.bf16.msra.mxu0 0
  %60 = vmatpush.bf16.msra.mxu0 0
  %61 = vmatpush.bf16.msra.mxu0 0
  %62 = vmatpush.bf16.msra.mxu0 %v49
  %63 = vmatpush.bf16.msra.mxu0 %v48
  %64 = vmatpush.bf16.msra.mxu0 %v47
  %65 = vmatpush.bf16.msra.mxu0 %v46
  %66 = vmatmul.bf16.gmra.mxu0 %v56
  %v67 = vpop.f32.mrf.mxu0
  %v68 = vadd.f32 %v28, %v67
  %v69 = vpop.f32.mrf.mxu0
  %v70 = vadd.f32 %v28, %v69
  %71 = vdwg.mxu0
  %vm72 = vcmask 261120
  %73 = vst.msk [vmem:[%s3] sm:$0xff] %vm72, %v68
  %74 = vst.msk [vmem:[%s3 + $0x8] sm:$0xff] %vm72, %v70
  // Predicated region
  $region14: #{batch_nll_loss.10} parent=0 // pred_check
    _
  $region15: #{batch_nll_loss.10} parent=0 // pred_check_branch
    %76 = sbr.rel (0) target = $region17
  $region16: #{batch_nll_loss.10} parent=0 // pred_region
    _
  $region17: #{batch_nll_loss.10} parent=0 // pred_fallthru
    _
  // Predicated region
  $region18: #{batch_nll_loss.10} parent=0 // pred_check
    _
  $region19: #{batch_nll_loss.10} parent=0 // pred_check_branch
    %78 = sbr.rel (0) target = $region21
  $region20: #{batch_nll_loss.10} parent=0 // pred_region
    _
  $region21: #{batch_nll_loss.10} parent=0 // pred_fallthru
    _

// kernel: batch_nll_loss.8
$region0: #{batch_nll_loss.8}
  #allocation0 [shape = 'u32[]', space=smem, size = 0x4, offset = 0x4, fixed_abs, tag = 'smem constant byte address 0x4 - core index']
  #allocation1 [shape = 'u32[72,128]{1,0:T(1,128)}', space=vmem, size = 0x9000, scoped, tag = 'internal scratch']
  #allocation2 [shape = 'f32[2,32]{1,0:T(2,128)}', space=vmem, size = 0x400, scoped, tag = 'scratch operand']
  %s0 = inlined_call_operand.vmem [shape: f32[2,8,2,96], index: 0, kind: input, shape index: {}]
  %s1 = inlined_call_operand.vmem [shape: bf16[2,32,96], index: 1, kind: input, shape index: {}]
  %s2 = inlined_call_operand.vmem [shape: f32[2,1,96], index: 2, kind: input, shape index: {}]
  %s3 = inlined_call_operand.vmem [shape: f32[2,8,2,32], index: 3, kind: output, shape index: {}]
  %s4 = sld [smem:[#allocation0]]
  $region49: #{batch_nll_loss.8} parent=0
    _
  %s6 = ssub.s32 1, %s4
  %s7 = scalar_select 0, %s6, %s4
  loop: start=0, step=1, limit=18
  $region2: #{batch_nll_loss.8} parent=0 // loop_pre_header
    _
  $region3: #{batch_nll_loss.8} parent=0 // loop_header
    %s9 = sphi 0, %s13
    %p10 = scmp.ge.s32.totalorder %s9, 18
    %s16 = sphi 0, %s28
    %s17 = sphi 0, %s24
    %s18 = sphi 0, %s16
    %s19 = sphi 0, %s17
    %s20 = sphi 0, %s18
    %s21 = sphi 0, %s19
    %s43 = sphi 0, %s45
    %s46 = sphi 0, %s43
    %s47 = sphi 0, %s46
    %s63 = sphi 0, %s47
    %s69 = sphi 0, %s71
    %s72 = sphi 0, %s69
    %s73 = sphi 0, %s72
    %s89 = sphi 0, %s73
    %s95 = sphi 0, %s97
    %s98 = sphi 0, %s95
    %s99 = sphi 0, %s98
    %s115 = sphi 0, %s99
    %s133 = sphi 0, %s135
    %s136 = sphi 0, %s133
    %s137 = sphi 0, %s136
    %s153 = sphi 0, %s137
  $region4: #{batch_nll_loss.8} parent=0 // loop_header_branch
    %12 = sbr.rel (%p10) target = $region8
  $region5: #{batch_nll_loss.8} parent=0 // loop_body
    %s14 = ssub.s32 %s9, 1
    %s15 = ssub.s32 %s9, 2
    %s22 = sadd.s32 1, %s17
    %p23 = scmp.ge.s32.totalorder %s22, 8
    %s24 = scalar_select %p23, 0, %s22
    %s25 = sadd.s32 1, %s16
    %s26 = scalar_select %p23, %s25, %s16
    %p27 = scmp.ge.s32.totalorder %s26, 2
    %s28 = scalar_select %p27, 0, %s26
    %s29 = smul.u32 %s16, 7
    %s30 = smul.u32 %s16, 2
    %s31 = ssub.s32 1, %s30
    %s32 = smul.u32 %s17, %s31
    %s33 = sadd.s32 %s29, %s32
    %s34 = smul.u32 %s28, 7
    %s35 = smul.u32 %s28, 2
    %s36 = ssub.s32 1, %s35
    %s37 = smul.u32 %s24, %s36
    %s38 = sadd.s32 %s34, %s37
    %s39 = ssub.s32 %s16, %s28
    %s40 = ssub.s32 %s33, %s38
    %s41 = sor.u32 %s39, %s40
    %p42 = scmp.eq.s32.totalorder %s41, 0
    %s44 = sadd.s32 %s43, 1
    %s45 = scalar_select %p42, %s43, %s44
    %p48 = pneg %p42
    %p49 = scmp.eq.s32.totalorder %s9, 15
    %p50 = por %p48, %p49
    %p51 = scmp.ne.s32.totalorder %s43, %s46
    %p52 = scmp.eq.s32.totalorder %s9, 0
    %p53 = por %p51, %p52
    %p54 = scmp.ne.s32.totalorder %s43, %s46
    %p55 = scmp.eq.s32.totalorder %s14, 15
    %p56 = por %p54, %p55
    %p57 = scmp.ne.s32.totalorder %s46, %s47
    %p58 = scmp.eq.s32.totalorder %s14, 0
    %p59 = por %p57, %p58
    %p60 = scmp.ne.s32.totalorder %s46, %s47
    %p61 = scmp.eq.s32.totalorder %s15, 15
    %p62 = por %p60, %p61
    %p64 = scmp.ne.s32.totalorder %s47, %s63
    %p65 = scmp.eq.s32.totalorder %s15, 0
    %p66 = por %p64, %p65
    %s67 = ssub.s32 %s16, %s28
    %p68 = scmp.eq.s32.totalorder %s67, 0
    %s70 = sadd.s32 %s69, 1
    %s71 = scalar_select %p68, %s69, %s70
    %p74 = pneg %p68
    %p75 = scmp.eq.s32.totalorder %s9, 15
    %p76 = por %p74, %p75
    %p77 = scmp.ne.s32.totalorder %s69, %s72
    %p78 = scmp.eq.s32.totalorder %s9, 0
    %p79 = por %p77, %p78
    %p80 = scmp.ne.s32.totalorder %s69, %s72
    %p81 = scmp.eq.s32.totalorder %s14, 15
    %p82 = por %p80, %p81
    %p83 = scmp.ne.s32.totalorder %s72, %s73
    %p84 = scmp.eq.s32.totalorder %s14, 0
    %p85 = por %p83, %p84
    %p86 = scmp.ne.s32.totalorder %s72, %s73
    %p87 = scmp.eq.s32.totalorder %s15, 15
    %p88 = por %p86, %p87
    %p90 = scmp.ne.s32.totalorder %s73, %s89
    %p91 = scmp.eq.s32.totalorder %s15, 0
    %p92 = por %p90, %p91
    %s93 = ssub.s32 %s16, %s28
    %p94 = scmp.eq.s32.totalorder %s93, 0
    %s96 = sadd.s32 %s95, 1
    %s97 = scalar_select %p94, %s95, %s96
    %p100 = pneg %p94
    %p101 = scmp.eq.s32.totalorder %s9, 15
    %p102 = por %p100, %p101
    %p103 = scmp.ne.s32.totalorder %s95, %s98
    %p104 = scmp.eq.s32.totalorder %s9, 0
    %p105 = por %p103, %p104
    %p106 = scmp.ne.s32.totalorder %s95, %s98
    %p107 = scmp.eq.s32.totalorder %s14, 15
    %p108 = por %p106, %p107
    %p109 = scmp.ne.s32.totalorder %s98, %s99
    %p110 = scmp.eq.s32.totalorder %s14, 0
    %p111 = por %p109, %p110
    %p112 = scmp.ne.s32.totalorder %s98, %s99
    %p113 = scmp.eq.s32.totalorder %s15, 15
    %p114 = por %p112, %p113
    %p116 = scmp.ne.s32.totalorder %s99, %s115
    %p117 = scmp.eq.s32.totalorder %s15, 0
    %p118 = por %p116, %p117
    %s119 = smul.u32 %s16, 7
    %s120 = smul.u32 %s16, 2
    %s121 = ssub.s32 1, %s120
    %s122 = smul.u32 %s17, %s121
    %s123 = sadd.s32 %s119, %s122
    %s124 = smul.u32 %s28, 7
    %s125 = smul.u32 %s28, 2
    %s126 = ssub.s32 1, %s125
    %s127 = smul.u32 %s24, %s126
    %s128 = sadd.s32 %s124, %s127
    %s129 = ssub.s32 %s16, %s28
    %s130 = ssub.s32 %s123, %s128
    %s131 = sor.u32 %s129, %s130
    %p132 = scmp.eq.s32.totalorder %s131, 0
    %s134 = sadd.s32 %s133, 1
    %s135 = scalar_select %p132, %s133, %s134
    %p138 = pneg %p132
    %p139 = scmp.eq.s32.totalorder %s9, 15
    %p140 = por %p138, %p139
    %p141 = scmp.ne.s32.totalorder %s133, %s136
    %p142 = scmp.eq.s32.totalorder %s9, 0
    %p143 = por %p141, %p142
    %p144 = scmp.ne.s32.totalorder %s133, %s136
    %p145 = scmp.eq.s32.totalorder %s14, 15
    %p146 = por %p144, %p145
    %p147 = scmp.ne.s32.totalorder %s136, %s137
    %p148 = scmp.eq.s32.totalorder %s14, 0
    %p149 = por %p147, %p148
    %p150 = scmp.ne.s32.totalorder %s136, %s137
    %p151 = scmp.eq.s32.totalorder %s15, 15
    %p152 = por %p150, %p151
    %p154 = scmp.ne.s32.totalorder %s137, %s153
    %p155 = scmp.eq.s32.totalorder %s15, 0
    %p156 = por %p154, %p155
    %p157 = scmp.le.s32.totalorder 1, %s9
    %p158 = scmp.lt.s32.totalorder %s9, 17
    %p159 = pnand %p157, %p158
    %p160 = pneg %p159
    // Predicated region
    $region9: #{batch_nll_loss.8} parent=5 // pred_check
      _
    $region10: #{batch_nll_loss.8} parent=5 // pred_check_branch
      %162 = sbr.rel (%p159) target = $region12
    $region11: #{batch_nll_loss.8} parent=5 // pred_region
      %s163 = ssub.s32 %s9, 1
    $region12: #{batch_nll_loss.8} parent=5 // pred_fallthru
      _
    %p164 = scmp.lt.s32.totalorder %s9, 16
    // Predicated region
    $region13: #{batch_nll_loss.8} parent=5 // pred_check
      %p165 = pneg %p164
    $region14: #{batch_nll_loss.8} parent=5 // pred_check_branch
      %167 = sbr.rel (%p165) target = $region16
    $region15: #{batch_nll_loss.8} parent=5 // pred_region
      // Predicated region
      $region17: #{batch_nll_loss.8} parent=15 // pred_check
        %p168 = pneg %p53
      $region18: #{batch_nll_loss.8} parent=15 // pred_check_branch
        %170 = sbr.rel (%p168) target = $region20
      $region19: #{batch_nll_loss.8} parent=15 // pred_region
        %s171 = smul.u32 %s16, 7
        %s172 = smul.u32 %s16, 2
        %s173 = ssub.s32 1, %s172
        %s174 = smul.u32 %s17, %s173
        %s175 = sadd.s32 %s171, %s174
        %p176 = scmp.lt.s32.totalorder %s16, 1
        %s177 = scalar_select %p176, %s16, 1
        %p178 = scmp.lt.s32.totalorder %s175, 7
        %s179 = scalar_select %p178, %s175, 7
        %s180 = smul.addr %s177, 8
        %s181 = sadd.s32 %s179, %s180
        %s182 = smul.addr %s181, 2
        %s183 = scalar_lea.vmem %s0, %s182
        %s184 = smul.u32 %s16, 7
        %s185 = smul.u32 %s16, 2
        %s186 = ssub.s32 1, %s185
        %s187 = smul.u32 %s17, %s186
        %s188 = sadd.s32 %s184, %s187
      $region20: #{batch_nll_loss.8} parent=15 // pred_fallthru
        _
      // Predicated region
      $region21: #{batch_nll_loss.8} parent=15 // pred_check
        %p189 = pneg %p79
      $region22: #{batch_nll_loss.8} parent=15 // pred_check_branch
        %191 = sbr.rel (%p189) target = $region24
      $region23: #{batch_nll_loss.8} parent=15 // pred_region
        %p192 = scmp.lt.s32.totalorder %s16, 1
        %s193 = scalar_select %p192, %s16, 1
        %s194 = smul.addr %s193, 4
        %s195 = smul.addr %s194, 4
        %s196 = scalar_lea.vmem %s1, %s195
      $region24: #{batch_nll_loss.8} parent=15 // pred_fallthru
        _
      // Predicated region
      $region25: #{batch_nll_loss.8} parent=15 // pred_check
        %p197 = pneg %p105
      $region26: #{batch_nll_loss.8} parent=15 // pred_check_branch
        %199 = sbr.rel (%p197) target = $region28
      $region27: #{batch_nll_loss.8} parent=15 // pred_region
        %p200 = scmp.lt.s32.totalorder %s16, 1
        %s201 = scalar_select %p200, %s16, 1
        %s202 = scalar_lea.vmem %s2, %s201
      $region28: #{batch_nll_loss.8} parent=15 // pred_fallthru
        _
    $region16: #{batch_nll_loss.8} parent=5 // pred_fallthru
      _
    %p203 = scmp.le.s32.totalorder 1, %s9
    %p204 = scmp.lt.s32.totalorder %s9, 17
    %p205 = pnand %p203, %p204
    %p206 = pneg %p205
    // Predicated region
    $region29: #{batch_nll_loss.8} parent=5 // pred_check
      _
    $region30: #{batch_nll_loss.8} parent=5 // pred_check_branch
      %208 = sbr.rel (%p205) target = $region32
    $region31: #{batch_nll_loss.8} parent=5 // pred_region
      %s209 = ssub.s32 %s9, 1
      %s210 = smul.u32 %s18, 7
      %s211 = smul.u32 %s18, 2
      %s212 = ssub.s32 1, %s211
      %s213 = smul.u32 %s19, %s212
      %s214 = sadd.s32 %s210, %s213
      %p215 = scmp.lt.s32.totalorder %s18, 1
      %s216 = scalar_select %p215, %s18, 1
      %p217 = scmp.lt.s32.totalorder %s214, 7
      %s218 = scalar_select %p217, %s214, 7
      %s219 = smul.addr %s216, 8
      %s220 = sadd.s32 %s218, %s219
      %s221 = smul.addr %s220, 2
      %s222 = scalar_lea.vmem %s0, %s221
      %p223 = pneg %p59
      %p224 = pneg %p56
      %p225 = scmp.lt.s32.totalorder %s18, 1
      %s226 = scalar_select %p225, %s18, 1
      %s227 = smul.addr %s226, 4
      %s228 = smul.addr %s227, 4
      %s229 = scalar_lea.vmem %s1, %s228
      %p230 = pneg %p85
      %p231 = pneg %p82
      %p232 = scmp.lt.s32.totalorder %s18, 1
      %s233 = scalar_select %p232, %s18, 1
      %s234 = scalar_lea.vmem %s2, %s233
      %p235 = pneg %p111
      %p236 = pneg %p108
      %p237 = pneg %p149
      %p238 = pneg %p146
      %s239 = smul.u32 %s18, 7
      %s240 = smul.u32 %s18, 2
      %s241 = ssub.s32 1, %s240
      %s242 = smul.u32 %s19, %s241
      %s243 = sadd.s32 %s239, %s242
      %p244 = scmp.lt.s32.totalorder %s18, 1
      %s245 = scalar_select %p244, %s18, 1
      %p246 = scmp.lt.s32.totalorder %s243, 7
      %s247 = scalar_select %p246, %s243, 7
      %s248 = smul.addr %s245, 8
      %s249 = sadd.s32 %s247, %s248
      %s250 = smul.addr %s249, 2
      %s251 = scalar_lea.vmem %s3, %s250
      %s252 = smul.u32 %s18, 7
      %s253 = smul.u32 %s18, 2
      %s254 = ssub.s32 1, %s253
      %s255 = smul.u32 %s19, %s254
      %s256 = sadd.s32 %s252, %s255
      %p257 = scmp.lt.s32.totalorder %s18, 1
      %s258 = scalar_select %p257, %s18, 1
      %p259 = scmp.lt.s32.totalorder %s256, 7
      %s260 = scalar_select %p259, %s256, 7
      %s261 = smul.addr %s258, 8
      %s262 = sadd.s32 %s260, %s261
      %s263 = smul.addr %s262, 2
      %s264 = scalar_lea.vmem %s0, %s263
      %s265 = smul.u32 %s18, 7
      %s266 = smul.u32 %s18, 2
      %s267 = ssub.s32 1, %s266
      %s268 = smul.u32 %s19, %s267
      %s269 = sadd.s32 %s265, %s268
      %p270 = scmp.lt.s32.totalorder %s18, 1
      %s271 = scalar_select %p270, %s18, 1
      %s272 = smul.addr %s271, 4
      %s273 = smul.addr %s272, 4
      %s274 = scalar_lea.vmem %s1, %s273
      %p275 = scmp.lt.s32.totalorder %s18, 1
      %s276 = scalar_select %p275, %s18, 1
      %s277 = scalar_lea.vmem %s2, %s276
      %s278 = smul.u32 %s18, 7
      %s279 = smul.u32 %s18, 2
      %s280 = ssub.s32 1, %s279
      %s281 = smul.u32 %s19, %s280
      %s282 = sadd.s32 %s278, %s281
      %p283 = scmp.lt.s32.totalorder %s18, 1
      %s284 = scalar_select %p283, %s18, 1
      %p285 = scmp.lt.s32.totalorder %s282, 7
      %s286 = scalar_select %p285, %s282, 7
      %s287 = smul.addr %s284, 8
      %s288 = sadd.s32 %s286, %s287
      %s289 = smul.addr %s288, 2
      %s290 = scalar_lea.vmem %s3, %s289
      %s291 = smul.u32 %s18, 7
      %s292 = smul.u32 %s18, 2
      %s293 = ssub.s32 1, %s292
      %s294 = smul.u32 %s19, %s293
      %s295 = sadd.s32 %s291, %s294
      %p297 = scmp.eq.s32.totalorder %s19, 0
      // Predicated region
      $region33: #{batch_nll_loss.8} parent=31 // pred_check
        %p298 = pneg %p297
      $region34: #{batch_nll_loss.8} parent=31 // pred_check_branch
        %300 = sbr.rel (%p298) target = $region36
      $region35: #{batch_nll_loss.8} parent=31 // pred_region
        %vm301 = vcmask 254976
        %302 = vst.msk [vmem:[#allocation2] sm:$0x3] %vm301, 0.0
      $region36: #{batch_nll_loss.8} parent=31 // pred_fallthru
        _
      %v303 = vld [vmem:[#allocation2] sm:$0x3]
      %v304 = vpack.c.bf16 %v303, %v303
      %v305 = vld [vmem:[%s274] sm:$0xf]
      %v306 = vld [vmem:[%s274 + $0x4] sm:$0xf]
      %v307 = vld [vmem:[%s274 + $0x8] sm:$0xf]
      %v308 = vld [vmem:[%s274 + $0xc] sm:$0xf]
      %v309 = vld [vmem:[%s277] sm:$0x1]
      %v311 = vperm.slane %v309, 0
      %v317 = vunpack.c.l.b16 %v305
      %v318 = vunpack.c.l.b16 %v306
      %v319 = vunpack.c.l.b16 %v307
      %v320 = vunpack.c.l.b16 %v308
      %v321 = vpack.c.b16 %v318, %v317
      %v322 = vpack.c.b16 %v320, %v319
      %vm325 = vcmask 261120
      %v327 = vsel %vm325, %v304, 0
      %329 = vmatpush.bf16.msra.mxu0 0
      %330 = vmatpush.bf16.msra.mxu0 0
      %331 = vmatpush.bf16.msra.mxu0 0
      %332 = vmatpush.bf16.msra.mxu0 0
      %333 = vmatpush.bf16.msra.mxu0 0
      %334 = vmatpush.bf16.msra.mxu0 0
      %335 = vmatpush.bf16.msra.mxu0 %v322
      %336 = vmatpush.bf16.msra.mxu0 %v321
      %337 = vmatmul.bf16.gmra.mxu0 %v327
      %v338 = vpop.f32.mrf.mxu0
      %v339 = vadd.f32 %v311, %v338
      %v340 = vpop.f32.mrf.mxu0
      %341 = vdwg.mxu0
      %v342 = vld [vmem:[%s264] sm:$0x3]
      %v343 = vadd.f32 %v342, %v339
      %v344 = vxor.u32 %v343, 2147483648
      %v345 = vmul.f32 %v344, 1.442695
      %v346 = vpow.pop %v345
      %v347 = vadd.f32 %v346, 1.0
      %v348 = vrcp.pop %v347
      %v349 = vmul.f32 %v347, %v348
      %v350 = vsub.f32 1.0, %v349
      %v351 = vmul.f32 %v348, %v350
      %v352 = vadd.f32 %v348, %v351
      %vm353 = vweird.f32 %v347
      %vm354 = vweird.f32 %v348
      %vm355 = vmor %vm353, %vm354
      %v356 = vsel %vm355, %v348, %v352
      %v357 = vand.u32 2147483647, %v347
      %vm358 = vcmp.eq.f32.partialorder %v357, 8.507059e+37
      %v359 = vand.u32 %v347, 2147483648
      %v360 = vor.u32 1.1754944e-38, %v359
      %v361 = vsel %vm358, %v360, %v356
      %v362 = vmul.f32 1.0, %v361
      %364 = vrot.lane.b32.xlu0 %v339, 64
      %v365 = vpop.permute.xlu0 %364
      %v367 = vmul.f32 %v362, %v365
      %369 = vrot.lane.b32.xlu0 %v367, 64
      %v370 = vpop.permute.xlu0 %369
      %v372 = vadd.f32 %v342, %v370
      %v373 = vtanh.pop %v372
      %v374 = vsub.f32 1.0, %v362
      %376 = vrot.lane.b32.xlu0 %v373, 96
      %v377 = vpop.permute.xlu0 %376
      %v379 = vmul.f32 %v374, %v377
      %381 = vrot.lane.b32.xlu0 %v303, 32
      %v382 = vpop.permute.xlu0 %381
      %v384 = vmul.f32 %v362, %v382
      %v385 = vadd.f32 %v379, %v384
      %387 = vrot.lane.b32.xlu0 %v385, 96
      %v388 = vpop.permute.xlu0 %387
      %vm390 = vcmask 254976
      %391 = vst.msk [vmem:[#allocation2] sm:$0x3] %vm390, %v388
      %392 = vst.msk [vmem:[%s290] sm:$0x3] %vm390, %v388
      %s393 = smul.u32 %s18, 7
      %s394 = smul.u32 %s18, 2
      %s395 = ssub.s32 1, %s394
      %s396 = smul.u32 %s19, %s395
      %s397 = sadd.s32 %s393, %s396
      %p398 = scmp.lt.s32.totalorder %s18, 1
      %s399 = scalar_select %p398, %s18, 1
      %p400 = scmp.lt.s32.totalorder %s397, 7
      %s401 = scalar_select %p400, %s397, 7
      %s402 = smul.addr %s399, 8
      %s403 = sadd.s32 %s401, %s402
      %s404 = smul.addr %s403, 2
      %s405 = scalar_lea.vmem %s3, %s404
      // Predicated region
      $region37: #{batch_nll_loss.8} parent=31 // pred_check
        %p406 = pneg %p146
      $region38: #{batch_nll_loss.8} parent=31 // pred_check_branch
        %408 = sbr.rel (%p406) target = $region40
      $region39: #{batch_nll_loss.8} parent=31 // pred_region
        %s409 = smul.u32 %s18, 7
        %s410 = smul.u32 %s18, 2
        %s411 = ssub.s32 1, %s410
        %s412 = smul.u32 %s19, %s411
        %s413 = sadd.s32 %s409, %s412
      $region40: #{batch_nll_loss.8} parent=31 // pred_fallthru
        _
    $region32: #{batch_nll_loss.8} parent=5 // pred_fallthru
      _
    %p414 = scmp.le.s32.totalorder 2, %s9
    // Predicated region
    $region41: #{batch_nll_loss.8} parent=5 // pred_check
      %p415 = pneg %p414
    $region42: #{batch_nll_loss.8} parent=5 // pred_check_branch
      %417 = sbr.rel (%p415) target = $region44
    $region43: #{batch_nll_loss.8} parent=5 // pred_region
      %s418 = ssub.s32 %s9, 2
      // Predicated region
      $region45: #{batch_nll_loss.8} parent=43 // pred_check
        %p419 = pneg %p152
      $region46: #{batch_nll_loss.8} parent=43 // pred_check_branch
        %421 = sbr.rel (%p419) target = $region48
      $region47: #{batch_nll_loss.8} parent=43 // pred_region
        %s422 = smul.u32 %s20, 7
        %s423 = smul.u32 %s20, 2
        %s424 = ssub.s32 1, %s423
        %s425 = smul.u32 %s21, %s424
        %s426 = sadd.s32 %s422, %s425
        %p427 = scmp.lt.s32.totalorder %s20, 1
        %s428 = scalar_select %p427, %s20, 1
        %p429 = scmp.lt.s32.totalorder %s426, 7
        %s430 = scalar_select %p429, %s426, 7
        %s431 = smul.addr %s428, 8
        %s432 = sadd.s32 %s430, %s431
        %s433 = smul.addr %s432, 2
        %s434 = scalar_lea.vmem %s3, %s433
      $region48: #{batch_nll_loss.8} parent=43 // pred_fallthru
        _
    $region44: #{batch_nll_loss.8} parent=5 // pred_fallthru
      _
  $region6: #{batch_nll_loss.8} parent=0 // loop_footer
    %s13 = sadd.s32 1, %s9
  $region7: #{batch_nll_loss.8} parent=0 // loop_footer_branch
    %8 = sbr.rel target = $region3
  $region8: #{batch_nll_loss.8} parent=0 // loop_exit
    _

// kernel: batch_nll_loss.9
$region0: #{batch_nll_loss.9}
  #allocation0 [shape = 'u32[]', space=smem, size = 0x4, offset = 0x4, fixed_abs, tag = 'smem constant byte address 0x4 - core index']
  #allocation1 [shape = 'u32[72,128]{1,0:T(1,128)}', space=vmem, size = 0x9000, scoped, tag = 'internal scratch']
  %s0 = inlined_call_operand.vmem [shape: f32[2,64], index: 0, kind: input, shape index: {}]
  %s1 = inlined_call_operand.vmem [shape: bf16[64,32], index: 1, kind: input, shape index: {}]
  %s2 = inlined_call_operand.vmem [shape: f32[1,32], index: 2, kind: input, shape index: {}]
  %s3 = inlined_call_operand.vmem [shape: f32[2,32], index: 3, kind: output, shape index: {}]
  %s4 = sld [smem:[#allocation0]]
  $region22: #{batch_nll_loss.9} parent=0
    _
  %s6 = ssub.s32 1, %s4
  %s7 = scalar_select 0, %s6, %s4
  // Predicated region
  $region2: #{batch_nll_loss.9} parent=0 // pred_check
    _
  $region3: #{batch_nll_loss.9} parent=0 // pred_check_branch
    %9 = sbr.rel (0) target = $region5
  $region4: #{batch_nll_loss.9} parent=0 // pred_region
    _
  $region5: #{batch_nll_loss.9} parent=0 // pred_fallthru
    _
  // Predicated region
  $region6: #{batch_nll_loss.9} parent=0 // pred_check
    _
  $region7: #{batch_nll_loss.9} parent=0 // pred_check_branch
    %11 = sbr.rel (0) target = $region9
  $region8: #{batch_nll_loss.9} parent=0 // pred_region
    _
  $region9: #{batch_nll_loss.9} parent=0 // pred_fallthru
    _
  // Predicated region
  $region10: #{batch_nll_loss.9} parent=0 // pred_check
    _
  $region11: #{batch_nll_loss.9} parent=0 // pred_check_branch
    %13 = sbr.rel (0) target = $region13
  $region12: #{batch_nll_loss.9} parent=0 // pred_region
    _
  $region13: #{batch_nll_loss.9} parent=0 // pred_fallthru
    _
  %v15 = vld [vmem:[%s0] sm:$0x3]
  %v16 = vpack.c.bf16 %v15, %v15
  %v17 = vld [vmem:[%s1] sm:$0xf]
  %v18 = vld [vmem:[%s1 + $0x4] sm:$0xf]
  %v19 = vld [vmem:[%s1 + $0x8] sm:$0xf]
  %v20 = vld [vmem:[%s1 + $0xc] sm:$0xf]
  %v21 = vld [vmem:[%s1 + $0x10] sm:$0xf]
  %v22 = vld [vmem:[%s1 + $0x14] sm:$0xf]
  %v23 = vld [vmem:[%s1 + $0x18] sm:$0xf]
  %v24 = vld [vmem:[%s1 + $0x1c] sm:$0xf]
  %v25 = vld [vmem:[%s2] sm:$0x1]
  %v27 = vperm.slane %v25, 0
  %v37 = vunpack.c.l.b16 %v17
  %v38 = vunpack.c.l.b16 %v18
  %v39 = vunpack.c.l.b16 %v19
  %v40 = vunpack.c.l.b16 %v20
  %v41 = vunpack.c.l.b16 %v21
  %v42 = vunpack.c.l.b16 %v22
  %v43 = vunpack.c.l.b16 %v23
  %v44 = vunpack.c.l.b16 %v24
  %v45 = vpack.c.b16 %v38, %v37
  %v46 = vpack.c.b16 %v40, %v39
  %v47 = vpack.c.b16 %v42, %v41
  %v48 = vpack.c.b16 %v44, %v43
  %vm53 = vcmask 523264
  %v55 = vsel %vm53, %v16, 0
  %57 = vmatpush.bf16.msra.mxu0 0
  %58 = vmatpush.bf16.msra.mxu0 0
  %59 = vmatpush.bf16.msra.mxu0 0
  %60 = vmatpush.bf16.msra.mxu0 0
  %61 = vmatpush.bf16.msra.mxu0 %v48
  %62 = vmatpush.bf16.msra.mxu0 %v47
  %63 = vmatpush.bf16.msra.mxu0 %v46
  %64 = vmatpush.bf16.msra.mxu0 %v45
  %65 = vmatmul.bf16.gmra.mxu0 %v55
  %v66 = vpop.f32.mrf.mxu0
  %v67 = vadd.f32 %v27, %v66
  %v68 = vpop.f32.mrf.mxu0
  %69 = vdwg.mxu0
  %v70 = vtanh.pop %v67
  %vm71 = vcmask 254976
  %72 = vst.msk [vmem:[%s3] sm:$0x3] %vm71, %v70
  // Predicated region
  $region14: #{batch_nll_loss.9} parent=0 // pred_check
    _
  $region15: #{batch_nll_loss.9} parent=0 // pred_check_branch
    %74 = sbr.rel (0) target = $region17
  $region16: #{batch_nll_loss.9} parent=0 // pred_region
    _
  $region17: #{batch_nll_loss.9} parent=0 // pred_fallthru
    _
  // Predicated region
  $region18: #{batch_nll_loss.9} parent=0 // pred_check
    _
  $region19: #{batch_nll_loss.9} parent=0 // pred_check_branch
    %76 = sbr.rel (0) target = $region21
  $region20: #{batch_nll_loss.9} parent=0 // pred_region
    _
  $region21: #{batch_nll_loss.9} parent=0 // pred_fallthru
    _

// kernel: batch_nll_loss.11
$region0: #{batch_nll_loss.11}
  #allocation0 [shape = 'u32[]', space=smem, size = 0x4, offset = 0x4, fixed_abs, tag = 'smem constant byte address 0x4 - core index']
  #allocation1 [shape = 'u32[72,128]{1,0:T(1,128)}', space=vmem, size = 0x9000, scoped, tag = 'internal scratch']
  %s0 = inlined_call_operand.vmem [shape: f32[256,16], index: 0, kind: input, shape index: {}]
  %s1 = inlined_call_operand.vmem [shape: bf16[16,32], index: 1, kind: input, shape index: {}]
  %s2 = inlined_call_operand.vmem [shape: f32[1,32], index: 2, kind: input, shape index: {}]
  %s3 = inlined_call_operand.vmem [shape: f32[256,32], index: 3, kind: output, shape index: {}]
  %s4 = sld [smem:[#allocation0]]
  $region22: #{batch_nll_loss.11} parent=0
    _
  %s6 = ssub.s32 1, %s4
  %s7 = scalar_select 0, %s6, %s4
  // Predicated region
  $region2: #{batch_nll_loss.11} parent=0 // pred_check
    _
  $region3: #{batch_nll_loss.11} parent=0 // pred_check_branch
    %9 = sbr.rel (0) target = $region5
  $region4: #{batch_nll_loss.11} parent=0 // pred_region
    _
  $region5: #{batch_nll_loss.11} parent=0 // pred_fallthru
    _
  // Predicated region
  $region6: #{batch_nll_loss.11} parent=0 // pred_check
    _
  $region7: #{batch_nll_loss.11} parent=0 // pred_check_branch
    %11 = sbr.rel (0) target = $region9
  $region8: #{batch_nll_loss.11} parent=0 // pred_region
    _
  $region9: #{batch_nll_loss.11} parent=0 // pred_fallthru
    _
  // Predicated region
  $region10: #{batch_nll_loss.11} parent=0 // pred_check
    _
  $region11: #{batch_nll_loss.11} parent=0 // pred_check_branch
    %13 = sbr.rel (0) target = $region13
  $region12: #{batch_nll_loss.11} parent=0 // pred_region
    _
  $region13: #{batch_nll_loss.11} parent=0 // pred_fallthru
    _
  %v15 = vld [vmem:[%s0] sm:$0xff]
  %v16 = vld [vmem:[%s0 + $0x8] sm:$0xff]
  %v17 = vld [vmem:[%s0 + $0x10] sm:$0xff]
  %v18 = vld [vmem:[%s0 + $0x18] sm:$0xff]
  %v19 = vld [vmem:[%s0 + $0x20] sm:$0xff]
  %v20 = vld [vmem:[%s0 + $0x28] sm:$0xff]
  %v21 = vld [vmem:[%s0 + $0x30] sm:$0xff]
  %v22 = vld [vmem:[%s0 + $0x38] sm:$0xff]
  %v23 = vld [vmem:[%s0 + $0x40] sm:$0xff]
  %v24 = vld [vmem:[%s0 + $0x48] sm:$0xff]
  %v25 = vld [vmem:[%s0 + $0x50] sm:$0xff]
  %v26 = vld [vmem:[%s0 + $0x58] sm:$0xff]
  %v27 = vld [vmem:[%s0 + $0x60] sm:$0xff]
  %v28 = vld [vmem:[%s0 + $0x68] sm:$0xff]
  %v29 = vld [vmem:[%s0 + $0x70] sm:$0xff]
  %v30 = vld [vmem:[%s0 + $0x78] sm:$0xff]
  %v31 = vld [vmem:[%s0 + $0x80] sm:$0xff]
  %v32 = vld [vmem:[%s0 + $0x88] sm:$0xff]
  %v33 = vld [vmem:[%s0 + $0x90] sm:$0xff]
  %v34 = vld [vmem:[%s0 + $0x98] sm:$0xff]
  %v35 = vld [vmem:[%s0 + $0xa0] sm:$0xff]
  %v36 = vld [vmem:[%s0 + $0xa8] sm:$0xff]
  %v37 = vld [vmem:[%s0 + $0xb0] sm:$0xff]
  %v38 = vld [vmem:[%s0 + $0xb8] sm:$0xff]
  %v39 = vld [vmem:[%s0 + $0xc0] sm:$0xff]
  %v40 = vld [vmem:[%s0 + $0xc8] sm:$0xff]
  %v41 = vld [vmem:[%s0 + $0xd0] sm:$0xff]
  %v42 = vld [vmem:[%s0 + $0xd8] sm:$0xff]
  %v43 = vld [vmem:[%s0 + $0xe0] sm:$0xff]
  %v44 = vld [vmem:[%s0 + $0xe8] sm:$0xff]
  %v45 = vld [vmem:[%s0 + $0xf0] sm:$0xff]
  %v46 = vld [vmem:[%s0 + $0xf8] sm:$0xff]
  %v47 = vpack.c.bf16 %v16, %v15
  %v48 = vpack.c.bf16 %v18, %v17
  %v49 = vpack.c.bf16 %v20, %v19
  %v50 = vpack.c.bf16 %v22, %v21
  %v51 = vpack.c.bf16 %v24, %v23
  %v52 = vpack.c.bf16 %v26, %v25
  %v53 = vpack.c.bf16 %v28, %v27
  %v54 = vpack.c.bf16 %v30, %v29
  %v55 = vpack.c.bf16 %v32, %v31
  %v56 = vpack.c.bf16 %v34, %v33
  %v57 = vpack.c.bf16 %v36, %v35
  %v58 = vpack.c.bf16 %v38, %v37
  %v59 = vpack.c.bf16 %v40, %v39
  %v60 = vpack.c.bf16 %v42, %v41
  %v61 = vpack.c.bf16 %v44, %v43
  %v62 = vpack.c.bf16 %v46, %v45
  %v63 = vld [vmem:[%s1] sm:$0xf]
  %v64 = vld [vmem:[%s1 + $0x4] sm:$0xf]
  %v65 = vld [vmem:[%s2] sm:$0x1]
  %v67 = vperm.slane %v65, 0
  %v71 = vunpack.c.l.b16 %v63
  %v72 = vunpack.c.l.b16 %v64
  %v73 = vpack.c.b16 %v72, %v71
  %vm75 = vcmask 130048
  %v77 = vsel %vm75, %v47, 0
  %v80 = vsel %vm75, %v48, 0
  %v83 = vsel %vm75, %v49, 0
  %v86 = vsel %vm75, %v50, 0
  %v89 = vsel %vm75, %v51, 0
  %v92 = vsel %vm75, %v52, 0
  %v95 = vsel %vm75, %v53, 0
  %v98 = vsel %vm75, %v54, 0
  %v101 = vsel %vm75, %v55, 0
  %v104 = vsel %vm75, %v56, 0
  %v107 = vsel %vm75, %v57, 0
  %v110 = vsel %vm75, %v58, 0
  %v113 = vsel %vm75, %v59, 0
  %v116 = vsel %vm75, %v60, 0
  %v119 = vsel %vm75, %v61, 0
  %v122 = vsel %vm75, %v62, 0
  %124 = vmatpush.bf16.msra.mxu0 0
  %125 = vmatpush.bf16.msra.mxu0 0
  %126 = vmatpush.bf16.msra.mxu0 0
  %127 = vmatpush.bf16.msra.mxu0 0
  %128 = vmatpush.bf16.msra.mxu0 0
  %129 = vmatpush.bf16.msra.mxu0 0
  %130 = vmatpush.bf16.msra.mxu0 0
  %131 = vmatpush.bf16.msra.mxu0 %v73
  %132 = vmatmul.bf16.gmra.mxu0 %v77
  %v133 = vpop.f32.mrf.mxu0
  %v134 = vadd.f32 %v67, %v133
  %v135 = vpop.f32.mrf.mxu0
  %v136 = vadd.f32 %v67, %v135
  %137 = vmatmul.bf16.gmra.mxu0 %v80
  %v138 = vpop.f32.mrf.mxu0
  %v139 = vadd.f32 %v67, %v138
  %v140 = vpop.f32.mrf.mxu0
  %v141 = vadd.f32 %v67, %v140
  %142 = vmatmul.bf16.gmra.mxu0 %v83
  %v143 = vpop.f32.mrf.mxu0
  %v144 = vadd.f32 %v67, %v143
  %v145 = vpop.f32.mrf.mxu0
  %v146 = vadd.f32 %v67, %v145
  %147 = vmatmul.bf16.gmra.mxu0 %v86
  %v148 = vpop.f32.mrf.mxu0
  %v149 = vadd.f32 %v67, %v148
  %v150 = vpop.f32.mrf.mxu0
  %v151 = vadd.f32 %v67, %v150
  %152 = vmatmul.bf16.gmra.mxu0 %v89
  %v153 = vpop.f32.mrf.mxu0
  %v154 = vadd.f32 %v67, %v153
  %v155 = vpop.f32.mrf.mxu0
  %v156 = vadd.f32 %v67, %v155
  %157 = vmatmul.bf16.gmra.mxu0 %v92
  %v158 = vpop.f32.mrf.mxu0
  %v159 = vadd.f32 %v67, %v158
  %v160 = vpop.f32.mrf.mxu0
  %v161 = vadd.f32 %v67, %v160
  %162 = vmatmul.bf16.gmra.mxu0 %v95
  %v163 = vpop.f32.mrf.mxu0
  %v164 = vadd.f32 %v67, %v163
  %v165 = vpop.f32.mrf.mxu0
  %v166 = vadd.f32 %v67, %v165
  %167 = vmatmul.bf16.gmra.mxu0 %v98
  %v168 = vpop.f32.mrf.mxu0
  %v169 = vadd.f32 %v67, %v168
  %v170 = vpop.f32.mrf.mxu0
  %v171 = vadd.f32 %v67, %v170
  %172 = vmatmul.bf16.gmra.mxu0 %v101
  %v173 = vpop.f32.mrf.mxu0
  %v174 = vadd.f32 %v67, %v173
  %v175 = vpop.f32.mrf.mxu0
  %v176 = vadd.f32 %v67, %v175
  %177 = vmatmul.bf16.gmra.mxu0 %v104
  %v178 = vpop.f32.mrf.mxu0
  %v179 = vadd.f32 %v67, %v178
  %v180 = vpop.f32.mrf.mxu0
  %v181 = vadd.f32 %v67, %v180
  %182 = vmatmul.bf16.gmra.mxu0 %v107
  %v183 = vpop.f32.mrf.mxu0
  %v184 = vadd.f32 %v67, %v183
  %v185 = vpop.f32.mrf.mxu0
  %v186 = vadd.f32 %v67, %v185
  %187 = vmatmul.bf16.gmra.mxu0 %v110
  %v188 = vpop.f32.mrf.mxu0
  %v189 = vadd.f32 %v67, %v188
  %v190 = vpop.f32.mrf.mxu0
  %v191 = vadd.f32 %v67, %v190
  %192 = vmatmul.bf16.gmra.mxu0 %v113
  %v193 = vpop.f32.mrf.mxu0
  %v194 = vadd.f32 %v67, %v193
  %v195 = vpop.f32.mrf.mxu0
  %v196 = vadd.f32 %v67, %v195
  %197 = vmatmul.bf16.gmra.mxu0 %v116
  %v198 = vpop.f32.mrf.mxu0
  %v199 = vadd.f32 %v67, %v198
  %v200 = vpop.f32.mrf.mxu0
  %v201 = vadd.f32 %v67, %v200
  %202 = vmatmul.bf16.gmra.mxu0 %v119
  %v203 = vpop.f32.mrf.mxu0
  %v204 = vadd.f32 %v67, %v203
  %v205 = vpop.f32.mrf.mxu0
  %v206 = vadd.f32 %v67, %v205
  %207 = vmatmul.bf16.gmra.mxu0 %v122
  %v208 = vpop.f32.mrf.mxu0
  %v209 = vadd.f32 %v67, %v208
  %v210 = vpop.f32.mrf.mxu0
  %v211 = vadd.f32 %v67, %v210
  %212 = vdwg.mxu0
  %vm213 = vcmask 261120
  %214 = vst.msk [vmem:[%s3] sm:$0xff] %vm213, %v134
  %215 = vst.msk [vmem:[%s3 + $0x8] sm:$0xff] %vm213, %v136
  %216 = vst.msk [vmem:[%s3 + $0x10] sm:$0xff] %vm213, %v139
  %217 = vst.msk [vmem:[%s3 + $0x18] sm:$0xff] %vm213, %v141
  %218 = vst.msk [vmem:[%s3 + $0x20] sm:$0xff] %vm213, %v144
  %219 = vst.msk [vmem:[%s3 + $0x28] sm:$0xff] %vm213, %v146
  %220 = vst.msk [vmem:[%s3 + $0x30] sm:$0xff] %vm213, %v149
  %221 = vst.msk [vmem:[%s3 + $0x38] sm:$0xff] %vm213, %v151
  %222 = vst.msk [vmem:[%s3 + $0x40] sm:$0xff] %vm213, %v154
  %223 = vst.msk [vmem:[%s3 + $0x48] sm:$0xff] %vm213, %v156
  %224 = vst.msk [vmem:[%s3 + $0x50] sm:$0xff] %vm213, %v159
  %225 = vst.msk [vmem:[%s3 + $0x58] sm:$0xff] %vm213, %v161
  %226 = vst.msk [vmem:[%s3 + $0x60] sm:$0xff] %vm213, %v164
  %227 = vst.msk [vmem:[%s3 + $0x68] sm:$0xff] %vm213, %v166
  %228 = vst.msk [vmem:[%s3 + $0x70] sm:$0xff] %vm213, %v169
  %229 = vst.msk [vmem:[%s3 + $0x78] sm:$0xff] %vm213, %v171
  %230 = vst.msk [vmem:[%s3 + $0x80] sm:$0xff] %vm213, %v174
  %231 = vst.msk [vmem:[%s3 + $0x88] sm:$0xff] %vm213, %v176
  %232 = vst.msk [vmem:[%s3 + $0x90] sm:$0xff] %vm213, %v179
  %233 = vst.msk [vmem:[%s3 + $0x98] sm:$0xff] %vm213, %v181
  %234 = vst.msk [vmem:[%s3 + $0xa0] sm:$0xff] %vm213, %v184
  %235 = vst.msk [vmem:[%s3 + $0xa8] sm:$0xff] %vm213, %v186
  %236 = vst.msk [vmem:[%s3 + $0xb0] sm:$0xff] %vm213, %v189
  %237 = vst.msk [vmem:[%s3 + $0xb8] sm:$0xff] %vm213, %v191
  %238 = vst.msk [vmem:[%s3 + $0xc0] sm:$0xff] %vm213, %v194
  %239 = vst.msk [vmem:[%s3 + $0xc8] sm:$0xff] %vm213, %v196
  %240 = vst.msk [vmem:[%s3 + $0xd0] sm:$0xff] %vm213, %v199
  %241 = vst.msk [vmem:[%s3 + $0xd8] sm:$0xff] %vm213, %v201
  %242 = vst.msk [vmem:[%s3 + $0xe0] sm:$0xff] %vm213, %v204
  %243 = vst.msk [vmem:[%s3 + $0xe8] sm:$0xff] %vm213, %v206
  %244 = vst.msk [vmem:[%s3 + $0xf0] sm:$0xff] %vm213, %v209
  %245 = vst.msk [vmem:[%s3 + $0xf8] sm:$0xff] %vm213, %v211
  // Predicated region
  $region14: #{batch_nll_loss.11} parent=0 // pred_check
    _
  $region15: #{batch_nll_loss.11} parent=0 // pred_check_branch
    %247 = sbr.rel (0) target = $region17
  $region16: #{batch_nll_loss.11} parent=0 // pred_region
    _
  $region17: #{batch_nll_loss.11} parent=0 // pred_fallthru
    _
  // Predicated region
  $region18: #{batch_nll_loss.11} parent=0 // pred_check
    _
  $region19: #{batch_nll_loss.11} parent=0 // pred_check_branch
    %249 = sbr.rel (0) target = $region21
  $region20: #{batch_nll_loss.11} parent=0 // pred_region
    _
  $region21: #{batch_nll_loss.11} parent=0 // pred_fallthru
    _

// kernel: batch_nll_loss.12
$region0: #{batch_nll_loss.12}
  #allocation0 [shape = 'u32[]', space=smem, size = 0x4, offset = 0x4, fixed_abs, tag = 'smem constant byte address 0x4 - core index']
  #allocation1 [shape = 'u32[72,128]{1,0:T(1,128)}', space=vmem, size = 0x9000, scoped, tag = 'internal scratch']
  %s0 = inlined_call_operand.vmem [shape: f32[8,16], index: 0, kind: input, shape index: {}]
  %s1 = inlined_call_operand.vmem [shape: bf16[16,96], index: 1, kind: input, shape index: {}]
  %s2 = inlined_call_operand.vmem [shape: f32[1,96], index: 2, kind: input, shape index: {}]
  %s3 = inlined_call_operand.vmem [shape: f32[8,96], index: 3, kind: output, shape index: {}]
  %s4 = sld [smem:[#allocation0]]
  $region22: #{batch_nll_loss.12} parent=0
    _
  %s6 = ssub.s32 1, %s4
  %s7 = scalar_select 0, %s6, %s4
  // Predicated region
  $region2: #{batch_nll_loss.12} parent=0 // pred_check
    _
  $region3: #{batch_nll_loss.12} parent=0 // pred_check_branch
    %9 = sbr.rel (0) target = $region5
  $region4: #{batch_nll_loss.12} parent=0 // pred_region
    _
  $region5: #{batch_nll_loss.12} parent=0 // pred_fallthru
    _
  // Predicated region
  $region6: #{batch_nll_loss.12} parent=0 // pred_check
    _
  $region7: #{batch_nll_loss.12} parent=0 // pred_check_branch
    %11 = sbr.rel (0) target = $region9
  $region8: #{batch_nll_loss.12} parent=0 // pred_region
    _
  $region9: #{batch_nll_loss.12} parent=0 // pred_fallthru
    _
  // Predicated region
  $region10: #{batch_nll_loss.12} parent=0 // pred_check
    _
  $region11: #{batch_nll_loss.12} parent=0 // pred_check_branch
    %13 = sbr.rel (0) target = $region13
  $region12: #{batch_nll_loss.12} parent=0 // pred_region
    _
  $region13: #{batch_nll_loss.12} parent=0 // pred_fallthru
    _
  %v15 = vld [vmem:[%s0] sm:$0xff]
  %v16 = vpack.c.bf16 %v15, %v15
  %v17 = vld [vmem:[%s1] sm:$0xf]
  %v18 = vld [vmem:[%s1 + $0x4] sm:$0xf]
  %v19 = vld [vmem:[%s2] sm:$0x1]
  %v21 = vperm.slane %v19, 0
  %v25 = vunpack.c.l.b16 %v17
  %v26 = vunpack.c.l.b16 %v18
  %v27 = vpack.c.b16 %v26, %v25
  %vm29 = vcmask 130048
  %v31 = vsel %vm29, %v16, 0
  %33 = vmatpush.bf16.msra.mxu0 0
  %34 = vmatpush.bf16.msra.mxu0 0
  %35 = vmatpush.bf16.msra.mxu0 0
  %36 = vmatpush.bf16.msra.mxu0 0
  %37 = vmatpush.bf16.msra.mxu0 0
  %38 = vmatpush.bf16.msra.mxu0 0
  %39 = vmatpush.bf16.msra.mxu0 0
  %40 = vmatpush.bf16.msra.mxu0 %v27
  %41 = vmatmul.bf16.gmra.mxu0 %v31
  %v42 = vpop.f32.mrf.mxu0
  %v43 = vadd.f32 %v21, %v42
  %v44 = vpop.f32.mrf.mxu0
  %45 = vdwg.mxu0
  %vm46 = vcmask 785408
  %47 = vst.msk [vmem:[%s3] sm:$0xff] %vm46, %v43
  // Predicated region
  $region14: #{batch_nll_loss.12} parent=0 // pred_check
    _
  $region15: #{batch_nll_loss.12} parent=0 // pred_check_branch
    %49 = sbr.rel (0) target = $region17
  $region16: #{batch_nll_loss.12} parent=0 // pred_region
    _
  $region17: #{batch_nll_loss.12} parent=0 // pred_fallthru
    _
  // Predicated region
  $region18: #{batch_nll_loss.12} parent=0 // pred_check
    _
  $region19: #{batch_nll_loss.12} parent=0 // pred_check_branch
    %51 = sbr.rel (0) target = $region21
  $region20: #{batch_nll_loss.12} parent=0 // pred_region
    _
  $region21: #{batch_nll_loss.12} parent=0 // pred_fallthru
    _

// kernel: batch_nll_loss.13
$region0: #{batch_nll_loss.13}
  #allocation0 [shape = 'u32[]', space=smem, size = 0x4, offset = 0x4, fixed_abs, tag = 'smem constant byte address 0x4 - core index']
  #allocation1 [shape = 'u32[72,128]{1,0:T(1,128)}', space=vmem, size = 0x9000, scoped, tag = 'internal scratch']
  #allocation2 [shape = 'f32[1,2,32]{2,1,0:T(2,128)}', space=vmem, size = 0x400, scoped, tag = 'scratch operand']
  %s0 = inlined_call_operand.vmem [shape: f32[4,2,96], index: 0, kind: input, shape index: {}]
  %s1 = inlined_call_operand.vmem [shape: f32[1,2,32], index: 1, kind: input, shape index: {}]
  %s2 = inlined_call_operand.vmem [shape: bf16[2,8,64], index: 2, kind: input, shape index: {}]
  %s3 = inlined_call_operand.vmem [shape: bf16[2,8,32], index: 3, kind: input, shape index: {}]
  %s4 = inlined_call_operand.vmem [shape: f32[2,8], index: 4, kind: input, shape index: {}]
  %s5 = inlined_call_operand.vmem [shape: bf16[2,128,16], index: 5, kind: input, shape index: {}]
  %s6 = inlined_call_operand.vmem [shape: bf16[2,128,32], index: 6, kind: input, shape index: {}]
  %s7 = inlined_call_operand.vmem [shape: f32[1,128], index: 7, kind: input, shape index: {}]
  %s8 = inlined_call_operand.vmem [shape: bf16[32,97], index: 8, kind: input, shape index: {}]
  %s9 = inlined_call_operand.vmem [shape: bf16[1,32], index: 9, kind: input, shape index: {}]
  %s10 = inlined_call_operand.vmem [shape: bf16[1,32], index: 10, kind: input, shape index: {}]
  %s11 = inlined_call_operand.vmem [shape: bf16[64,33], index: 11, kind: input, shape index: {}]
  %s12 = inlined_call_operand.vmem [shape: bf16[16,33], index: 12, kind: input, shape index: {}]
  %s13 = inlined_call_operand.vmem [shape: f32[2,33], index: 13, kind: input, shape index: {}]
  %s14 = inlined_call_operand.vmem [shape: bf16[32,128], index: 14, kind: input, shape index: {}]
  %s15 = inlined_call_operand.vmem [shape: f32[1,128], index: 15, kind: input, shape index: {}]
  %s16 = inlined_call_operand.vmem [shape: bf16[32,96], index: 16, kind: input, shape index: {}]
  %s17 = inlined_call_operand.vmem [shape: f32[1,96], index: 17, kind: input, shape index: {}]
  %s18 = inlined_call_operand.vmem [shape: f32[4,2,256], index: 18, kind: output, shape index: {}]
  %s19 = sld [smem:[#allocation0]]
  $region109: #{batch_nll_loss.13} parent=0
    _
  %s21 = ssub.s32 1, %s19
  %s22 = scalar_select 0, %s21, %s19
  loop: start=0, step=1, limit=6
  $region2: #{batch_nll_loss.13} parent=0 // loop_pre_header
    _
  $region3: #{batch_nll_loss.13} parent=0 // loop_header
    %s24 = sphi 0, %s28
    %p25 = scmp.ge.s32.totalorder %s24, 6
    %s34 = sphi 0, %s36
    %s37 = sphi 0, %s34
    %s38 = sphi 0, %s37
    %s54 = sphi 0, %s38
    %s58 = sphi 0, %s58
    %s60 = sphi 0, %s58
    %s61 = sphi 0, %s60
    %s75 = sphi 0, %s61
    %s79 = sphi 0, %s79
    %s81 = sphi 0, %s79
    %s82 = sphi 0, %s81
    %s96 = sphi 0, %s82
    %s100 = sphi 0, %s100
    %s102 = sphi 0, %s100
    %s103 = sphi 0, %s102
    %s117 = sphi 0, %s103
    %s121 = sphi 0, %s121
    %s123 = sphi 0, %s121
    %s124 = sphi 0, %s123
    %s138 = sphi 0, %s124
    %s142 = sphi 0, %s142
    %s144 = sphi 0, %s142
    %s145 = sphi 0, %s144
    %s159 = sphi 0, %s145
    %s163 = sphi 0, %s163
    %s165 = sphi 0, %s163
    %s166 = sphi 0, %s165
    %s180 = sphi 0, %s166
    %s184 = sphi 0, %s184
    %s186 = sphi 0, %s184
    %s187 = sphi 0, %s186
    %s201 = sphi 0, %s187
    %s205 = sphi 0, %s205
    %s207 = sphi 0, %s205
    %s208 = sphi 0, %s207
    %s222 = sphi 0, %s208
    %s226 = sphi 0, %s226
    %s228 = sphi 0, %s226
    %s229 = sphi 0, %s228
    %s243 = sphi 0, %s229
    %s247 = sphi 0, %s247
    %s249 = sphi 0, %s247
    %s250 = sphi 0, %s249
    %s264 = sphi 0, %s250
    %s268 = sphi 0, %s268
    %s270 = sphi 0, %s268
    %s271 = sphi 0, %s270
    %s285 = sphi 0, %s271
    %s289 = sphi 0, %s289
    %s291 = sphi 0, %s289
    %s292 = sphi 0, %s291
    %s306 = sphi 0, %s292
    %s310 = sphi 0, %s310
    %s312 = sphi 0, %s310
    %s313 = sphi 0, %s312
    %s327 = sphi 0, %s313
    %s331 = sphi 0, %s331
    %s333 = sphi 0, %s331
    %s334 = sphi 0, %s333
    %s348 = sphi 0, %s334
    %s352 = sphi 0, %s352
    %s354 = sphi 0, %s352
    %s355 = sphi 0, %s354
    %s369 = sphi 0, %s355
    %s373 = sphi 0, %s373
    %s375 = sphi 0, %s373
    %s376 = sphi 0, %s375
    %s390 = sphi 0, %s376
    %s394 = sphi 0, %s394
    %s396 = sphi 0, %s394
    %s397 = sphi 0, %s396
    %s411 = sphi 0, %s397
    %s417 = sphi 0, %s419
    %s420 = sphi 0, %s417
    %s421 = sphi 0, %s420
    %s437 = sphi 0, %s421
  $region4: #{batch_nll_loss.13} parent=0 // loop_header_branch
    %27 = sbr.rel (%p25) target = $region8
  $region5: #{batch_nll_loss.13} parent=0 // loop_body
    %s29 = ssub.s32 %s24, 1
    %s30 = ssub.s32 %s24, 2
    %s31 = sadd.s32 %s24, 1
    %s32 = ssub.s32 %s24, %s31
    %p33 = scmp.eq.s32.totalorder %s32, 0
    %s35 = sadd.s32 %s34, 1
    %s36 = scalar_select %p33, %s34, %s35
    %p39 = pneg %p33
    %p40 = scmp.eq.s32.totalorder %s24, 3
    %p41 = por %p39, %p40
    %p42 = scmp.ne.s32.totalorder %s34, %s37
    %p43 = scmp.eq.s32.totalorder %s24, 0
    %p44 = por %p42, %p43
    %p45 = scmp.ne.s32.totalorder %s34, %s37
    %p46 = scmp.eq.s32.totalorder %s29, 3
    %p47 = por %p45, %p46
    %p48 = scmp.ne.s32.totalorder %s37, %s38
    %p49 = scmp.eq.s32.totalorder %s29, 0
    %p50 = por %p48, %p49
    %p51 = scmp.ne.s32.totalorder %s37, %s38
    %p52 = scmp.eq.s32.totalorder %s30, 3
    %p53 = por %p51, %p52
    %p55 = scmp.ne.s32.totalorder %s38, %s54
    %p56 = scmp.eq.s32.totalorder %s30, 0
    %p57 = por %p55, %p56
    %s59 = sadd.s32 %s58, 1
    %p62 = scmp.eq.s32.totalorder %s24, 3
    %p63 = scmp.ne.s32.totalorder %s58, %s60
    %p64 = scmp.eq.s32.totalorder %s24, 0
    %p65 = por %p63, %p64
    %p66 = scmp.ne.s32.totalorder %s58, %s60
    %p67 = scmp.eq.s32.totalorder %s29, 3
    %p68 = por %p66, %p67
    %p69 = scmp.ne.s32.totalorder %s60, %s61
    %p70 = scmp.eq.s32.totalorder %s29, 0
    %p71 = por %p69, %p70
    %p72 = scmp.ne.s32.totalorder %s60, %s61
    %p73 = scmp.eq.s32.totalorder %s30, 3
    %p74 = por %p72, %p73
    %p76 = scmp.ne.s32.totalorder %s61, %s75
    %p77 = scmp.eq.s32.totalorder %s30, 0
    %p78 = por %p76, %p77
    %s80 = sadd.s32 %s79, 1
    %p83 = scmp.eq.s32.totalorder %s24, 3
    %p84 = scmp.ne.s32.totalorder %s79, %s81
    %p85 = scmp.eq.s32.totalorder %s24, 0
    %p86 = por %p84, %p85
    %p87 = scmp.ne.s32.totalorder %s79, %s81
    %p88 = scmp.eq.s32.totalorder %s29, 3
    %p89 = por %p87, %p88
    %p90 = scmp.ne.s32.totalorder %s81, %s82
    %p91 = scmp.eq.s32.totalorder %s29, 0
    %p92 = por %p90, %p91
    %p93 = scmp.ne.s32.totalorder %s81, %s82
    %p94 = scmp.eq.s32.totalorder %s30, 3
    %p95 = por %p93, %p94
    %p97 = scmp.ne.s32.totalorder %s82, %s96
    %p98 = scmp.eq.s32.totalorder %s30, 0
    %p99 = por %p97, %p98
    %s101 = sadd.s32 %s100, 1
    %p104 = scmp.eq.s32.totalorder %s24, 3
    %p105 = scmp.ne.s32.totalorder %s100, %s102
    %p106 = scmp.eq.s32.totalorder %s24, 0
    %p107 = por %p105, %p106
    %p108 = scmp.ne.s32.totalorder %s100, %s102
    %p109 = scmp.eq.s32.totalorder %s29, 3
    %p110 = por %p108, %p109
    %p111 = scmp.ne.s32.totalorder %s102, %s103
    %p112 = scmp.eq.s32.totalorder %s29, 0
    %p113 = por %p111, %p112
    %p114 = scmp.ne.s32.totalorder %s102, %s103
    %p115 = scmp.eq.s32.totalorder %s30, 3
    %p116 = por %p114, %p115
    %p118 = scmp.ne.s32.totalorder %s103, %s117
    %p119 = scmp.eq.s32.totalorder %s30, 0
    %p120 = por %p118, %p119
    %s122 = sadd.s32 %s121, 1
    %p125 = scmp.eq.s32.totalorder %s24, 3
    %p126 = scmp.ne.s32.totalorder %s121, %s123
    %p127 = scmp.eq.s32.totalorder %s24, 0
    %p128 = por %p126, %p127
    %p129 = scmp.ne.s32.totalorder %s121, %s123
    %p130 = scmp.eq.s32.totalorder %s29, 3
    %p131 = por %p129, %p130
    %p132 = scmp.ne.s32.totalorder %s123, %s124
    %p133 = scmp.eq.s32.totalorder %s29, 0
    %p134 = por %p132, %p133
    %p135 = scmp.ne.s32.totalorder %s123, %s124
    %p136 = scmp.eq.s32.totalorder %s30, 3
    %p137 = por %p135, %p136
    %p139 = scmp.ne.s32.totalorder %s124, %s138
    %p140 = scmp.eq.s32.totalorder %s30, 0
    %p141 = por %p139, %p140
    %s143 = sadd.s32 %s142, 1
    %p146 = scmp.eq.s32.totalorder %s24, 3
    %p147 = scmp.ne.s32.totalorder %s142, %s144
    %p148 = scmp.eq.s32.totalorder %s24, 0
    %p149 = por %p147, %p148
    %p150 = scmp.ne.s32.totalorder %s142, %s144
    %p151 = scmp.eq.s32.totalorder %s29, 3
    %p152 = por %p150, %p151
    %p153 = scmp.ne.s32.totalorder %s144, %s145
    %p154 = scmp.eq.s32.totalorder %s29, 0
    %p155 = por %p153, %p154
    %p156 = scmp.ne.s32.totalorder %s144, %s145
    %p157 = scmp.eq.s32.totalorder %s30, 3
    %p158 = por %p156, %p157
    %p160 = scmp.ne.s32.totalorder %s145, %s159
    %p161 = scmp.eq.s32.totalorder %s30, 0
    %p162 = por %p160, %p161
    %s164 = sadd.s32 %s163, 1
    %p167 = scmp.eq.s32.totalorder %s24, 3
    %p168 = scmp.ne.s32.totalorder %s163, %s165
    %p169 = scmp.eq.s32.totalorder %s24, 0
    %p170 = por %p168, %p169
    %p171 = scmp.ne.s32.totalorder %s163, %s165
    %p172 = scmp.eq.s32.totalorder %s29, 3
    %p173 = por %p171, %p172
    %p174 = scmp.ne.s32.totalorder %s165, %s166
    %p175 = scmp.eq.s32.totalorder %s29, 0
    %p176 = por %p174, %p175
    %p177 = scmp.ne.s32.totalorder %s165, %s166
    %p178 = scmp.eq.s32.totalorder %s30, 3
    %p179 = por %p177, %p178
    %p181 = scmp.ne.s32.totalorder %s166, %s180
    %p182 = scmp.eq.s32.totalorder %s30, 0
    %p183 = por %p181, %p182
    %s185 = sadd.s32 %s184, 1
    %p188 = scmp.eq.s32.totalorder %s24, 3
    %p189 = scmp.ne.s32.totalorder %s184, %s186
    %p190 = scmp.eq.s32.totalorder %s24, 0
    %p191 = por %p189, %p190
    %p192 = scmp.ne.s32.totalorder %s184, %s186
    %p193 = scmp.eq.s32.totalorder %s29, 3
    %p194 = por %p192, %p193
    %p195 = scmp.ne.s32.totalorder %s186, %s187
    %p196 = scmp.eq.s32.totalorder %s29, 0
    %p197 = por %p195, %p196
    %p198 = scmp.ne.s32.totalorder %s186, %s187
    %p199 = scmp.eq.s32.totalorder %s30, 3
    %p200 = por %p198, %p199
    %p202 = scmp.ne.s32.totalorder %s187, %s201
    %p203 = scmp.eq.s32.totalorder %s30, 0
    %p204 = por %p202, %p203
    %s206 = sadd.s32 %s205, 1
    %p209 = scmp.eq.s32.totalorder %s24, 3
    %p210 = scmp.ne.s32.totalorder %s205, %s207
    %p211 = scmp.eq.s32.totalorder %s24, 0
    %p212 = por %p210, %p211
    %p213 = scmp.ne.s32.totalorder %s205, %s207
    %p214 = scmp.eq.s32.totalorder %s29, 3
    %p215 = por %p213, %p214
    %p216 = scmp.ne.s32.totalorder %s207, %s208
    %p217 = scmp.eq.s32.totalorder %s29, 0
    %p218 = por %p216, %p217
    %p219 = scmp.ne.s32.totalorder %s207, %s208
    %p220 = scmp.eq.s32.totalorder %s30, 3
    %p221 = por %p219, %p220
    %p223 = scmp.ne.s32.totalorder %s208, %s222
    %p224 = scmp.eq.s32.totalorder %s30, 0
    %p225 = por %p223, %p224
    %s227 = sadd.s32 %s226, 1
    %p230 = scmp.eq.s32.totalorder %s24, 3
    %p231 = scmp.ne.s32.totalorder %s226, %s228
    %p232 = scmp.eq.s32.totalorder %s24, 0
    %p233 = por %p231, %p232
    %p234 = scmp.ne.s32.totalorder %s226, %s228
    %p235 = scmp.eq.s32.totalorder %s29, 3
    %p236 = por %p234, %p235
    %p237 = scmp.ne.s32.totalorder %s228, %s229
    %p238 = scmp.eq.s32.totalorder %s29, 0
    %p239 = por %p237, %p238
    %p240 = scmp.ne.s32.totalorder %s228, %s229
    %p241 = scmp.eq.s32.totalorder %s30, 3
    %p242 = por %p240, %p241
    %p244 = scmp.ne.s32.totalorder %s229, %s243
    %p245 = scmp.eq.s32.totalorder %s30, 0
    %p246 = por %p244, %p245
    %s248 = sadd.s32 %s247, 1
    %p251 = scmp.eq.s32.totalorder %s24, 3
    %p252 = scmp.ne.s32.totalorder %s247, %s249
    %p253 = scmp.eq.s32.totalorder %s24, 0
    %p254 = por %p252, %p253
    %p255 = scmp.ne.s32.totalorder %s247, %s249
    %p256 = scmp.eq.s32.totalorder %s29, 3
    %p257 = por %p255, %p256
    %p258 = scmp.ne.s32.totalorder %s249, %s250
    %p259 = scmp.eq.s32.totalorder %s29, 0
    %p260 = por %p258, %p259
    %p261 = scmp.ne.s32.totalorder %s249, %s250
    %p262 = scmp.eq.s32.totalorder %s30, 3
    %p263 = por %p261, %p262
    %p265 = scmp.ne.s32.totalorder %s250, %s264
    %p266 = scmp.eq.s32.totalorder %s30, 0
    %p267 = por %p265, %p266
    %s269 = sadd.s32 %s268, 1
    %p272 = scmp.eq.s32.totalorder %s24, 3
    %p273 = scmp.ne.s32.totalorder %s268, %s270
    %p274 = scmp.eq.s32.totalorder %s24, 0
    %p275 = por %p273, %p274
    %p276 = scmp.ne.s32.totalorder %s268, %s270
    %p277 = scmp.eq.s32.totalorder %s29, 3
    %p278 = por %p276, %p277
    %p279 = scmp.ne.s32.totalorder %s270, %s271
    %p280 = scmp.eq.s32.totalorder %s29, 0
    %p281 = por %p279, %p280
    %p282 = scmp.ne.s32.totalorder %s270, %s271
    %p283 = scmp.eq.s32.totalorder %s30, 3
    %p284 = por %p282, %p283
    %p286 = scmp.ne.s32.totalorder %s271, %s285
    %p287 = scmp.eq.s32.totalorder %s30, 0
    %p288 = por %p286, %p287
    %s290 = sadd.s32 %s289, 1
    %p293 = scmp.eq.s32.totalorder %s24, 3
    %p294 = scmp.ne.s32.totalorder %s289, %s291
    %p295 = scmp.eq.s32.totalorder %s24, 0
    %p296 = por %p294, %p295
    %p297 = scmp.ne.s32.totalorder %s289, %s291
    %p298 = scmp.eq.s32.totalorder %s29, 3
    %p299 = por %p297, %p298
    %p300 = scmp.ne.s32.totalorder %s291, %s292
    %p301 = scmp.eq.s32.totalorder %s29, 0
    %p302 = por %p300, %p301
    %p303 = scmp.ne.s32.totalorder %s291, %s292
    %p304 = scmp.eq.s32.totalorder %s30, 3
    %p305 = por %p303, %p304
    %p307 = scmp.ne.s32.totalorder %s292, %s306
    %p308 = scmp.eq.s32.totalorder %s30, 0
    %p309 = por %p307, %p308
    %s311 = sadd.s32 %s310, 1
    %p314 = scmp.eq.s32.totalorder %s24, 3
    %p315 = scmp.ne.s32.totalorder %s310, %s312
    %p316 = scmp.eq.s32.totalorder %s24, 0
    %p317 = por %p315, %p316
    %p318 = scmp.ne.s32.totalorder %s310, %s312
    %p319 = scmp.eq.s32.totalorder %s29, 3
    %p320 = por %p318, %p319
    %p321 = scmp.ne.s32.totalorder %s312, %s313
    %p322 = scmp.eq.s32.totalorder %s29, 0
    %p323 = por %p321, %p322
    %p324 = scmp.ne.s32.totalorder %s312, %s313
    %p325 = scmp.eq.s32.totalorder %s30, 3
    %p326 = por %p324, %p325
    %p328 = scmp.ne.s32.totalorder %s313, %s327
    %p329 = scmp.eq.s32.totalorder %s30, 0
    %p330 = por %p328, %p329
    %s332 = sadd.s32 %s331, 1
    %p335 = scmp.eq.s32.totalorder %s24, 3
    %p336 = scmp.ne.s32.totalorder %s331, %s333
    %p337 = scmp.eq.s32.totalorder %s24, 0
    %p338 = por %p336, %p337
    %p339 = scmp.ne.s32.totalorder %s331, %s333
    %p340 = scmp.eq.s32.totalorder %s29, 3
    %p341 = por %p339, %p340
    %p342 = scmp.ne.s32.totalorder %s333, %s334
    %p343 = scmp.eq.s32.totalorder %s29, 0
    %p344 = por %p342, %p343
    %p345 = scmp.ne.s32.totalorder %s333, %s334
    %p346 = scmp.eq.s32.totalorder %s30, 3
    %p347 = por %p345, %p346
    %p349 = scmp.ne.s32.totalorder %s334, %s348
    %p350 = scmp.eq.s32.totalorder %s30, 0
    %p351 = por %p349, %p350
    %s353 = sadd.s32 %s352, 1
    %p356 = scmp.eq.s32.totalorder %s24, 3
    %p357 = scmp.ne.s32.totalorder %s352, %s354
    %p358 = scmp.eq.s32.totalorder %s24, 0
    %p359 = por %p357, %p358
    %p360 = scmp.ne.s32.totalorder %s352, %s354
    %p361 = scmp.eq.s32.totalorder %s29, 3
    %p362 = por %p360, %p361
    %p363 = scmp.ne.s32.totalorder %s354, %s355
    %p364 = scmp.eq.s32.totalorder %s29, 0
    %p365 = por %p363, %p364
    %p366 = scmp.ne.s32.totalorder %s354, %s355
    %p367 = scmp.eq.s32.totalorder %s30, 3
    %p368 = por %p366, %p367
    %p370 = scmp.ne.s32.totalorder %s355, %s369
    %p371 = scmp.eq.s32.totalorder %s30, 0
    %p372 = por %p370, %p371
    %s374 = sadd.s32 %s373, 1
    %p377 = scmp.eq.s32.totalorder %s24, 3
    %p378 = scmp.ne.s32.totalorder %s373, %s375
    %p379 = scmp.eq.s32.totalorder %s24, 0
    %p380 = por %p378, %p379
    %p381 = scmp.ne.s32.totalorder %s373, %s375
    %p382 = scmp.eq.s32.totalorder %s29, 3
    %p383 = por %p381, %p382
    %p384 = scmp.ne.s32.totalorder %s375, %s376
    %p385 = scmp.eq.s32.totalorder %s29, 0
    %p386 = por %p384, %p385
    %p387 = scmp.ne.s32.totalorder %s375, %s376
    %p388 = scmp.eq.s32.totalorder %s30, 3
    %p389 = por %p387, %p388
    %p391 = scmp.ne.s32.totalorder %s376, %s390
    %p392 = scmp.eq.s32.totalorder %s30, 0
    %p393 = por %p391, %p392
    %s395 = sadd.s32 %s394, 1
    %p398 = scmp.eq.s32.totalorder %s24, 3
    %p399 = scmp.ne.s32.totalorder %s394, %s396
    %p400 = scmp.eq.s32.totalorder %s24, 0
    %p401 = por %p399, %p400
    %p402 = scmp.ne.s32.totalorder %s394, %s396
    %p403 = scmp.eq.s32.totalorder %s29, 3
    %p404 = por %p402, %p403
    %p405 = scmp.ne.s32.totalorder %s396, %s397
    %p406 = scmp.eq.s32.totalorder %s29, 0
    %p407 = por %p405, %p406
    %p408 = scmp.ne.s32.totalorder %s396, %s397
    %p409 = scmp.eq.s32.totalorder %s30, 3
    %p410 = por %p408, %p409
    %p412 = scmp.ne.s32.totalorder %s397, %s411
    %p413 = scmp.eq.s32.totalorder %s30, 0
    %p414 = por %p412, %p413
    %s415 = ssub.s32 %s24, %s31
    %p416 = scmp.eq.s32.totalorder %s415, 0
    %s418 = sadd.s32 %s417, 1
    %s419 = scalar_select %p416, %s417, %s418
    %p422 = pneg %p416
    %p423 = scmp.eq.s32.totalorder %s24, 3
    %p424 = por %p422, %p423
    %p425 = scmp.ne.s32.totalorder %s417, %s420
    %p426 = scmp.eq.s32.totalorder %s24, 0
    %p427 = por %p425, %p426
    %p428 = scmp.ne.s32.totalorder %s417, %s420
    %p429 = scmp.eq.s32.totalorder %s29, 3
    %p430 = por %p428, %p429
    %p431 = scmp.ne.s32.totalorder %s420, %s421
    %p432 = scmp.eq.s32.totalorder %s29, 0
    %p433 = por %p431, %p432
    %p434 = scmp.ne.s32.totalorder %s420, %s421
    %p435 = scmp.eq.s32.totalorder %s30, 3
    %p436 = por %p434, %p435
    %p438 = scmp.ne.s32.totalorder %s421, %s437
    %p439 = scmp.eq.s32.totalorder %s30, 0
    %p440 = por %p438, %p439
    %p441 = scmp.le.s32.totalorder 1, %s24
    %p442 = scmp.lt.s32.totalorder %s24, 5
    %p443 = pnand %p441, %p442
    %p444 = pneg %p443
    // Predicated region
    $region9: #{batch_nll_loss.13} parent=5 // pred_check
      _
    $region10: #{batch_nll_loss.13} parent=5 // pred_check_branch
      %446 = sbr.rel (%p443) target = $region12
    $region11: #{batch_nll_loss.13} parent=5 // pred_region
      %s447 = ssub.s32 %s24, 1
      // Predicated region
      $region13: #{batch_nll_loss.13} parent=11 // pred_check
        %p448 = pneg %p71
      $region14: #{batch_nll_loss.13} parent=11 // pred_check_branch
        %450 = sbr.rel (%p448) target = $region16
      $region15: #{batch_nll_loss.13} parent=11 // pred_region
        _
      $region16: #{batch_nll_loss.13} parent=11 // pred_fallthru
        _
      // Predicated region
      $region17: #{batch_nll_loss.13} parent=11 // pred_check
        %p451 = pneg %p92
      $region18: #{batch_nll_loss.13} parent=11 // pred_check_branch
        %453 = sbr.rel (%p451) target = $region20
      $region19: #{batch_nll_loss.13} parent=11 // pred_region
        _
      $region20: #{batch_nll_loss.13} parent=11 // pred_fallthru
        _
      // Predicated region
      $region21: #{batch_nll_loss.13} parent=11 // pred_check
        %p454 = pneg %p113
      $region22: #{batch_nll_loss.13} parent=11 // pred_check_branch
        %456 = sbr.rel (%p454) target = $region24
      $region23: #{batch_nll_loss.13} parent=11 // pred_region
        _
      $region24: #{batch_nll_loss.13} parent=11 // pred_fallthru
        _
      // Predicated region
      $region25: #{batch_nll_loss.13} parent=11 // pred_check
        %p457 = pneg %p134
      $region26: #{batch_nll_loss.13} parent=11 // pred_check_branch
        %459 = sbr.rel (%p457) target = $region28
      $region27: #{batch_nll_loss.13} parent=11 // pred_region
        _
      $region28: #{batch_nll_loss.13} parent=11 // pred_fallthru
        _
      // Predicated region
      $region29: #{batch_nll_loss.13} parent=11 // pred_check
        %p460 = pneg %p155
      $region30: #{batch_nll_loss.13} parent=11 // pred_check_branch
        %462 = sbr.rel (%p460) target = $region32
      $region31: #{batch_nll_loss.13} parent=11 // pred_region
        _
      $region32: #{batch_nll_loss.13} parent=11 // pred_fallthru
        _
      // Predicated region
      $region33: #{batch_nll_loss.13} parent=11 // pred_check
        %p463 = pneg %p176
      $region34: #{batch_nll_loss.13} parent=11 // pred_check_branch
        %465 = sbr.rel (%p463) target = $region36
      $region35: #{batch_nll_loss.13} parent=11 // pred_region
        _
      $region36: #{batch_nll_loss.13} parent=11 // pred_fallthru
        _
      // Predicated region
      $region37: #{batch_nll_loss.13} parent=11 // pred_check
        %p466 = pneg %p197
      $region38: #{batch_nll_loss.13} parent=11 // pred_check_branch
        %468 = sbr.rel (%p466) target = $region40
      $region39: #{batch_nll_loss.13} parent=11 // pred_region
        _
      $region40: #{batch_nll_loss.13} parent=11 // pred_fallthru
        _
      // Predicated region
      $region41: #{batch_nll_loss.13} parent=11 // pred_check
        %p469 = pneg %p218
      $region42: #{batch_nll_loss.13} parent=11 // pred_check_branch
        %471 = sbr.rel (%p469) target = $region44
      $region43: #{batch_nll_loss.13} parent=11 // pred_region
        _
      $region44: #{batch_nll_loss.13} parent=11 // pred_fallthru
        _
      // Predicated region
      $region45: #{batch_nll_loss.13} parent=11 // pred_check
        %p472 = pneg %p239
      $region46: #{batch_nll_loss.13} parent=11 // pred_check_branch
        %474 = sbr.rel (%p472) target = $region48
      $region47: #{batch_nll_loss.13} parent=11 // pred_region
        _
      $region48: #{batch_nll_loss.13} parent=11 // pred_fallthru
        _
      // Predicated region
      $region49: #{batch_nll_loss.13} parent=11 // pred_check
        %p475 = pneg %p260
      $region50: #{batch_nll_loss.13} parent=11 // pred_check_branch
        %477 = sbr.rel (%p475) target = $region52
      $region51: #{batch_nll_loss.13} parent=11 // pred_region
        _
      $region52: #{batch_nll_loss.13} parent=11 // pred_fallthru
        _
      // Predicated region
      $region53: #{batch_nll_loss.13} parent=11 // pred_check
        %p478 = pneg %p281
      $region54: #{batch_nll_loss.13} parent=11 // pred_check_branch
        %480 = sbr.rel (%p478) target = $region56
      $region55: #{batch_nll_loss.13} parent=11 // pred_region
        _
      $region56: #{batch_nll_loss.13} parent=11 // pred_fallthru
        _
      // Predicated region
      $region57: #{batch_nll_loss.13} parent=11 // pred_check
        %p481 = pneg %p302
      $region58: #{batch_nll_loss.13} parent=11 // pred_check_branch
        %483 = sbr.rel (%p481) target = $region60
      $region59: #{batch_nll_loss.13} parent=11 // pred_region
        _
      $region60: #{batch_nll_loss.13} parent=11 // pred_fallthru
        _
      // Predicated region
      $region61: #{batch_nll_loss.13} parent=11 // pred_check
        %p484 = pneg %p323
      $region62: #{batch_nll_loss.13} parent=11 // pred_check_branch
        %486 = sbr.rel (%p484) target = $region64
      $region63: #{batch_nll_loss.13} parent=11 // pred_region
        _
      $region64: #{batch_nll_loss.13} parent=11 // pred_fallthru
        _
      // Predicated region
      $region65: #{batch_nll_loss.13} parent=11 // pred_check
        %p487 = pneg %p344
      $region66: #{batch_nll_loss.13} parent=11 // pred_check_branch
        %489 = sbr.rel (%p487) target = $region68
      $region67: #{batch_nll_loss.13} parent=11 // pred_region
        _
      $region68: #{batch_nll_loss.13} parent=11 // pred_fallthru
        _
      // Predicated region
      $region69: #{batch_nll_loss.13} parent=11 // pred_check
        %p490 = pneg %p365
      $region70: #{batch_nll_loss.13} parent=11 // pred_check_branch
        %492 = sbr.rel (%p490) target = $region72
      $region71: #{batch_nll_loss.13} parent=11 // pred_region
        _
      $region72: #{batch_nll_loss.13} parent=11 // pred_fallthru
        _
      // Predicated region
      $region73: #{batch_nll_loss.13} parent=11 // pred_check
        %p493 = pneg %p386
      $region74: #{batch_nll_loss.13} parent=11 // pred_check_branch
        %495 = sbr.rel (%p493) target = $region76
      $region75: #{batch_nll_loss.13} parent=11 // pred_region
        _
      $region76: #{batch_nll_loss.13} parent=11 // pred_fallthru
        _
      // Predicated region
      $region77: #{batch_nll_loss.13} parent=11 // pred_check
        %p496 = pneg %p407
      $region78: #{batch_nll_loss.13} parent=11 // pred_check_branch
        %498 = sbr.rel (%p496) target = $region80
      $region79: #{batch_nll_loss.13} parent=11 // pred_region
        _
      $region80: #{batch_nll_loss.13} parent=11 // pred_fallthru
        _
    $region12: #{batch_nll_loss.13} parent=5 // pred_fallthru
      _
    %p499 = scmp.lt.s32.totalorder %s24, 4
    // Predicated region
    $region81: #{batch_nll_loss.13} parent=5 // pred_check
      %p500 = pneg %p499
    $region82: #{batch_nll_loss.13} parent=5 // pred_check_branch
      %502 = sbr.rel (%p500) target = $region84
    $region83: #{batch_nll_loss.13} parent=5 // pred_region
      // Predicated region
      $region85: #{batch_nll_loss.13} parent=83 // pred_check
        %p503 = pneg %p44
      $region86: #{batch_nll_loss.13} parent=83 // pred_check_branch
        %505 = sbr.rel (%p503) target = $region88
      $region87: #{batch_nll_loss.13} parent=83 // pred_region
        %p506 = scmp.lt.s32.totalorder %s24, 3
        %s507 = scalar_select %p506, %s24, 3
        %s508 = smul.addr %s507, 2
        %s509 = scalar_lea.vmem %s0, %s508
      $region88: #{batch_nll_loss.13} parent=83 // pred_fallthru
        _
    $region84: #{batch_nll_loss.13} parent=5 // pred_fallthru
      _
    %p510 = scmp.le.s32.totalorder 1, %s24
    %p511 = scmp.lt.s32.totalorder %s24, 5
    %p512 = pnand %p510, %p511
    %p513 = pneg %p512
    // Predicated region
    $region89: #{batch_nll_loss.13} parent=5 // pred_check
      _
    $region90: #{batch_nll_loss.13} parent=5 // pred_check_branch
      %515 = sbr.rel (%p512) target = $region92
    $region91: #{batch_nll_loss.13} parent=5 // pred_region
      %s516 = ssub.s32 %s24, 1
      %p517 = scmp.lt.s32.totalorder %s29, 3
      %s518 = scalar_select %p517, %s29, 3
      %s519 = smul.addr %s518, 2
      %s520 = scalar_lea.vmem %s0, %s519
      %p521 = pneg %p50
      %p522 = pneg %p47
      %p523 = pneg %p71
      %p524 = pneg %p68
      %p525 = pneg %p92
      %p526 = pneg %p89
      %p527 = pneg %p113
      %p528 = pneg %p110
      %p529 = pneg %p134
      %p530 = pneg %p131
      %p531 = pneg %p155
      %p532 = pneg %p152
      %p533 = pneg %p176
      %p534 = pneg %p173
      %p535 = pneg %p197
      %p536 = pneg %p194
      %p537 = pneg %p218
      %p538 = pneg %p215
      %p539 = pneg %p239
      %p540 = pneg %p236
      %p541 = pneg %p260
      %p542 = pneg %p257
      %p543 = pneg %p281
      %p544 = pneg %p278
      %p545 = pneg %p302
      %p546 = pneg %p299
      %p547 = pneg %p323
      %p548 = pneg %p320
      %p549 = pneg %p344
      %p550 = pneg %p341
      %p551 = pneg %p365
      %p552 = pneg %p362
      %p553 = pneg %p386
      %p554 = pneg %p383
      %p555 = pneg %p407
      %p556 = pneg %p404
      %p557 = pneg %p433
      %p558 = pneg %p430
      %p559 = scmp.lt.s32.totalorder %s29, 3
      %s560 = scalar_select %p559, %s29, 3
      %s561 = smul.addr %s560, 2
      %s562 = smul.addr %s561, 2
      %s563 = scalar_lea.vmem %s18, %s562
      %p564 = scmp.lt.s32.totalorder %s29, 3
      %s565 = scalar_select %p564, %s29, 3
      %s566 = smul.addr %s565, 2
      %s567 = scalar_lea.vmem %s0, %s566
      %p568 = scmp.lt.s32.totalorder %s29, 3
      %s569 = scalar_select %p568, %s29, 3
      %s570 = smul.addr %s569, 2
      %s571 = smul.addr %s570, 2
      %s572 = scalar_lea.vmem %s18, %s571
      %p574 = scmp.eq.s32.totalorder %s29, 0
      // Predicated region
      $region93: #{batch_nll_loss.13} parent=91 // pred_check
        %p575 = pneg %p574
      $region94: #{batch_nll_loss.13} parent=91 // pred_check_branch
        %577 = sbr.rel (%p575) target = $region96
      $region95: #{batch_nll_loss.13} parent=91 // pred_region
        %v578 = vld [vmem:[%s1] sm:$0x3]
        %vm579 = vcmask 254976
        %580 = vst.msk [vmem:[#allocation2] sm:$0x3] %vm579, %v578
      $region96: #{batch_nll_loss.13} parent=91 // pred_fallthru
        _
      %v581 = vld [vmem:[#allocation2] sm:$0x3]
      %v582 = vld [vmem:[%s567] sm:$0x3]
      %v583 = vpack.c.bf16 %v581, %v581
      %v584 = vld [vmem:[%s16] sm:$0xf]
      %v585 = vld [vmem:[%s16 + $0x4] sm:$0xf]
      %v586 = vld [vmem:[%s16 + $0x8] sm:$0xf]
      %v587 = vld [vmem:[%s16 + $0xc] sm:$0xf]
      %v588 = vld [vmem:[%s17] sm:$0x1]
      %v590 = vperm.slane %v588, 0
      %v596 = vunpack.c.l.b16 %v584
      %v597 = vunpack.c.l.b16 %v585
      %v598 = vunpack.c.l.b16 %v586
      %v599 = vunpack.c.l.b16 %v587
      %v600 = vpack.c.b16 %v597, %v596
      %v601 = vpack.c.b16 %v599, %v598
      %vm604 = vcmask 261120
      %v606 = vsel %vm604, %v583, 0
      %608 = vmatpush.bf16.msra.mxu0 0
      %609 = vmatpush.bf16.msra.mxu0 0
      %610 = vmatpush.bf16.msra.mxu0 0
      %611 = vmatpush.bf16.msra.mxu0 0
      %612 = vmatpush.bf16.msra.mxu0 0
      %613 = vmatpush.bf16.msra.mxu0 0
      %614 = vmatpush.bf16.msra.mxu0 %v601
      %615 = vmatpush.bf16.msra.mxu0 %v600
      %616 = vmatmul.bf16.gmra.mxu0 %v606
      %v617 = vpop.f32.mrf.mxu0
      %v618 = vadd.f32 %v590, %v617
      %v619 = vpop.f32.mrf.mxu0
      %620 = vdwg.mxu0
      %v621 = vadd.f32 %v582, %v618
      %v622 = vxor.u32 %v621, 2147483648
      %v623 = vmul.f32 %v622, 1.442695
      %v624 = vpow.pop %v623
      %v625 = vadd.f32 %v624, 1.0
      %v626 = vrcp.pop %v625
      %v627 = vmul.f32 %v625, %v626
      %v628 = vsub.f32 1.0, %v627
      %v629 = vmul.f32 %v626, %v628
      %v630 = vadd.f32 %v626, %v629
      %vm631 = vweird.f32 %v625
      %vm632 = vweird.f32 %v626
      %vm633 = vmor %vm631, %vm632
      %v634 = vsel %vm633, %v626, %v630
      %v635 = vand.u32 2147483647, %v625
      %vm636 = vcmp.eq.f32.partialorder %v635, 8.507059e+37
      %v637 = vand.u32 %v625, 2147483648
      %v638 = vor.u32 1.1754944e-38, %v637
      %v639 = vsel %vm636, %v638, %v634
      %v640 = vmul.f32 1.0, %v639
      %642 = vrot.lane.b32.xlu0 %v618, 64
      %v643 = vpop.permute.xlu0 %642
      %v645 = vmul.f32 %v640, %v643
      %647 = vrot.lane.b32.xlu0 %v645, 64
      %v648 = vpop.permute.xlu0 %647
      %v650 = vadd.f32 %v582, %v648
      %v651 = vtanh.pop %v650
      %v652 = vsub.f32 1.0, %v640
      %654 = vrot.lane.b32.xlu0 %v651, 96
      %v655 = vpop.permute.xlu0 %654
      %v657 = vmul.f32 %v652, %v655
      %659 = vrot.lane.b32.xlu0 %v581, 32
      %v660 = vpop.permute.xlu0 %659
      %v662 = vmul.f32 %v640, %v660
      %v663 = vadd.f32 %v657, %v662
      %665 = vrot.lane.b32.xlu0 %v663, 96
      %v666 = vpop.permute.xlu0 %665
      %vm668 = vcmask 254976
      %669 = vst.msk [vmem:[#allocation2] sm:$0x3] %vm668, %v666
      %v670 = vpack.c.bf16 %v663, %v663
      %v671 = vld [vmem:[%s8] sm:$0xf]
      %v672 = vld [vmem:[%s8 + $0x4] sm:$0xf]
      %v673 = vld [vmem:[%s8 + $0x8] sm:$0xf]
      %v674 = vld [vmem:[%s8 + $0xc] sm:$0xf]
      %676 = vrot.lane.b32.xlu0 %v670, 96
      %v677 = vpop.permute.xlu0 %676
      %v682 = vunpack.c.l.b16 %v671
      %v683 = vunpack.c.l.b16 %v672
      %v684 = vunpack.c.l.b16 %v673
      %v685 = vunpack.c.l.b16 %v674
      %v686 = vpack.c.b16 %v683, %v682
      %v687 = vpack.c.b16 %v685, %v684
      %v691 = vsel %vm604, %v677, 0
      %693 = vmatpush.bf16.msra.mxu0 0
      %694 = vmatpush.bf16.msra.mxu0 0
      %695 = vmatpush.bf16.msra.mxu0 0
      %696 = vmatpush.bf16.msra.mxu0 0
      %697 = vmatpush.bf16.msra.mxu0 0
      %698 = vmatpush.bf16.msra.mxu0 0
      %699 = vmatpush.bf16.msra.mxu0 %v687
      %700 = vmatpush.bf16.msra.mxu0 %v686
      %701 = vmatmul.bf16.gmra.mxu0 %v691
      %v702 = vpop.f32.mrf.mxu0
      %v703 = vadd.f32 0.0, %v702
      %v704 = vpop.f32.mrf.mxu0
      %705 = vdwg.mxu0
      %v706 = vld [vmem:[%s4] sm:$0x3]
      %v708 = vrot.slane %v703, 1
      %v709 = vld [vmem:[%s3] sm:$0xf]
      %v710 = vld [vmem:[%s3 + $0x4] sm:$0xf]
      %v711 = vunpack.c.l.bf16 %v709
      %v712 = vunpack.c.l.bf16 %v710
      %v713 = vperm.slane %v703, 0
      %v714 = vperm.slane %v708, 0
      %v717 = vadd.f32 %v713, %v711
      %v718 = vadd.f32 %v714, %v712
      %v719 = vtanh.pop %v717
      %v720 = vtanh.pop %v718
      %v721 = vld [vmem:[%s9] sm:$0x1]
      %v722 = vunpack.c.l.bf16 %v721
      %v723 = vperm.slane %v722, 0
      %v724 = vmul.f32 %v719, %v723
      %v725 = vmul.f32 %v720, %v723
      %v726 = vsel %vm604, %v724, 0.0
      %727 = vadd.xlane.f32.xlu0 %v726
      %v728 = vpop.xlane.xlu0 %727
      %v729 = vsel %vm604, %v725, 0.0
      %730 = vadd.xlane.f32.xlu0 %v729
      %v731 = vpop.xlane.xlu0 %730
      %v733 = vperm.slane %v706, 0
      %v734 = vlaneseq
      %v735 = vshrl.u32 %v734, 7
      %737 = vset.pattern.permute.xlu0 %v735
      %738 = vperm.xlu0 %737, %v733
      %v739 = vpop.permute.xlu0 %738
      %v740 = vperm.slane %v706, 1
      %v741 = vlaneseq
      %v742 = vshrl.u32 %v741, 7
      %744 = vset.pattern.permute.xlu0 %v742
      %745 = vperm.xlu0 %744, %v740
      %v746 = vpop.permute.xlu0 %745
      %v749 = vadd.f32 %v728, %v739
      %v750 = vadd.f32 %v731, %v746
      %753 = vset.pattern.permute.xlu0 0
      %754 = vperm.xlu0 %753, %v749
      %v755 = vpop.permute.xlu0 %754
      %756 = vset.pattern.permute.xlu0 0
      %757 = vperm.xlu0 %756, %v750
      %v758 = vpop.permute.xlu0 %757
      %v759 = vlaneseq
      %v760 = vand.u32 %v759, 127
      %v761 = vperm.slane %v755, %v760
      %v762 = vperm.slane %v758, %v760
      %vm763 = vcmask 1041409
      %v764 = vsel %vm763, %v762, %v761
      %vm766 = vcmask 58368
      %v767 = vsel %vm766, %v764, -inf
      %768 = vmax.xlane.f32.xlu0 %v767
      %v769 = vpop.xlane.xlu0 %768
      %v771 = vperm.slane %v769, 0
      %v772 = vperm.slane %v769, 1
      %v775 = vsub.f32 %v749, %v771
      %v776 = vsub.f32 %v750, %v772
      %v777 = vmul.f32 %v775, 1.442695
      %v778 = vpow.pop %v777
      %v779 = vmul.f32 %v776, 1.442695
      %v780 = vpow.pop %v779
      %783 = vset.pattern.permute.xlu0 0
      %784 = vperm.xlu0 %783, %v778
      %v785 = vpop.permute.xlu0 %784
      %786 = vset.pattern.permute.xlu0 0
      %787 = vperm.xlu0 %786, %v780
      %v788 = vpop.permute.xlu0 %787
      %v789 = vperm.slane %v785, %v760
      %v790 = vperm.slane %v788, %v760
      %v791 = vsel %vm763, %v790, %v789
      %v793 = vsel %vm766, %v791, 0.0
      %794 = vadd.xlane.f32.xlu0 %v793
      %v795 = vpop.xlane.xlu0 %794
      %v796 = vrcp.pop %v795
      %v798 = vperm.slane %v796, 0
      %v799 = vperm.slane %v796, 1
      %v802 = vmul.f32 %v778, %v798
      %v803 = vmul.f32 %v780, %v799
      %v804 = vpack.c.bf16 %v802, %v802
      %v805 = vpack.c.bf16 %v803, %v803
      %v806 = vld [vmem:[%s2] sm:$0xf]
      %v807 = vld [vmem:[%s2 + $0x4] sm:$0xf]
      %v809 = vunpack.c.l.b16 %v804
      %v810 = vpack.c.b16 %v809, %v809
      %v811 = vunpack.c.l.b16 %v810
      %812 = vset.pattern.permute.xlu0 0
      %813 = vperm.xlu0 %812, %v811
      %v814 = vpop.permute.xlu0 %813
      %v815 = vperm.slane %v814, %v760
      %v816 = vpack.c.b16 %v815, %v815
      %vm817 = vcmask 64512
      %v819 = vsel %vm817, %v816, 0
      %vm821 = vcmask 1043456
      %v823 = vsel %vm821, %v806, 0
      %825 = vmatpush.bf16.msra.mxu0 0
      %826 = vmatpush.bf16.msra.mxu0 0
      %827 = vmatpush.bf16.msra.mxu0 0
      %828 = vmatpush.bf16.msra.mxu0 0
      %829 = vmatpush.bf16.msra.mxu0 0
      %830 = vmatpush.bf16.msra.mxu0 0
      %831 = vmatpush.bf16.msra.mxu0 0
      %832 = vmatpush.bf16.msra.mxu0 %v823
      %833 = vmatmul.bf16.gmra.mxu0 %v819
      %v834 = vpop.f32.mrf.mxu0
      %v835 = vadd.f32 0.0, %v834
      %v836 = vpop.f32.mrf.mxu0
      %837 = vdwg.mxu0
      %v839 = vunpack.c.l.b16 %v805
      %v840 = vpack.c.b16 %v839, %v839
      %v841 = vunpack.c.l.b16 %v840
      %842 = vset.pattern.permute.xlu0 0
      %843 = vperm.xlu0 %842, %v841
      %v844 = vpop.permute.xlu0 %843
      %v845 = vperm.slane %v844, %v760
      %v846 = vpack.c.b16 %v845, %v845
      %v848 = vsel %vm817, %v846, 0
      %v851 = vsel %vm821, %v807, 0
      %853 = vmatpush.bf16.msra.mxu0 0
      %854 = vmatpush.bf16.msra.mxu0 0
      %855 = vmatpush.bf16.msra.mxu0 0
      %856 = vmatpush.bf16.msra.mxu0 0
      %857 = vmatpush.bf16.msra.mxu0 0
      %858 = vmatpush.bf16.msra.mxu0 0
      %859 = vmatpush.bf16.msra.mxu0 0
      %860 = vmatpush.bf16.msra.mxu0 %v851
      %861 = vmatmul.bf16.gmra.mxu0 %v848
      %v862 = vpop.f32.mrf.mxu0
      %v863 = vadd.f32 0.0, %v862
      %v864 = vpop.f32.mrf.mxu0
      %865 = vdwg.mxu0
      %v866 = vld [vmem:[%s7] sm:$0x1]
      %v867 = vld [vmem:[%s6] sm:$0xf]
      %v868 = vld [vmem:[%s6 + $0x4] sm:$0xf]
      %v869 = vld [vmem:[%s6 + $0x8] sm:$0xf]
      %v870 = vld [vmem:[%s6 + $0xc] sm:$0xf]
      %v871 = vld [vmem:[%s6 + $0x10] sm:$0xf]
      %v872 = vld [vmem:[%s6 + $0x14] sm:$0xf]
      %v873 = vld [vmem:[%s6 + $0x18] sm:$0xf]
      %v874 = vld [vmem:[%s6 + $0x1c] sm:$0xf]
      %v875 = vld [vmem:[%s6 + $0x20] sm:$0xf]
      %v876 = vld [vmem:[%s6 + $0x24] sm:$0xf]
      %v877 = vld [vmem:[%s6 + $0x28] sm:$0xf]
      %v878 = vld [vmem:[%s6 + $0x2c] sm:$0xf]
      %v879 = vld [vmem:[%s6 + $0x30] sm:$0xf]
      %v880 = vld [vmem:[%s6 + $0x34] sm:$0xf]
      %v881 = vld [vmem:[%s6 + $0x38] sm:$0xf]
      %v882 = vld [vmem:[%s6 + $0x3c] sm:$0xf]
      %v883 = vld [vmem:[%s6 + $0x40] sm:$0xf]
      %v884 = vld [vmem:[%s6 + $0x44] sm:$0xf]
      %v885 = vld [vmem:[%s6 + $0x48] sm:$0xf]
      %v886 = vld [vmem:[%s6 + $0x4c] sm:$0xf]
      %v887 = vld [vmem:[%s6 + $0x50] sm:$0xf]
      %v888 = vld [vmem:[%s6 + $0x54] sm:$0xf]
      %v889 = vld [vmem:[%s6 + $0x58] sm:$0xf]
      %v890 = vld [vmem:[%s6 + $0x5c] sm:$0xf]
      %v891 = vld [vmem:[%s6 + $0x60] sm:$0xf]
      %v892 = vld [vmem:[%s6 + $0x64] sm:$0xf]
      %v893 = vld [vmem:[%s6 + $0x68] sm:$0xf]
      %v894 = vld [vmem:[%s6 + $0x6c] sm:$0xf]
      %v895 = vld [vmem:[%s6 + $0x70] sm:$0xf]
      %v896 = vld [vmem:[%s6 + $0x74] sm:$0xf]
      %v897 = vld [vmem:[%s6 + $0x78] sm:$0xf]
      %v898 = vld [vmem:[%s6 + $0x7c] sm:$0xf]
      %v899 = vunpack.c.l.bf16 %v867
      %v900 = vunpack.c.l.bf16 %v868
      %v901 = vunpack.c.l.bf16 %v869
      %v902 = vunpack.c.l.bf16 %v870
      %v903 = vunpack.c.l.bf16 %v871
      %v904 = vunpack.c.l.bf16 %v872
      %v905 = vunpack.c.l.bf16 %v873
      %v906 = vunpack.c.l.bf16 %v874
      %v907 = vunpack.c.l.bf16 %v875
      %v908 = vunpack.c.l.bf16 %v876
      %v909 = vunpack.c.l.bf16 %v877
      %v910 = vunpack.c.l.bf16 %v878
      %v911 = vunpack.c.l.bf16 %v879
      %v912 = vunpack.c.l.bf16 %v880
      %v913 = vunpack.c.l.bf16 %v881
      %v914 = vunpack.c.l.bf16 %v882
      %v915 = vunpack.c.l.bf16 %v883
      %v916 = vunpack.c.l.bf16 %v884
      %v917 = vunpack.c.l.bf16 %v885
      %v918 = vunpack.c.l.bf16 %v886
      %v919 = vunpack.c.l.bf16 %v887
      %v920 = vunpack.c.l.bf16 %v888
      %v921 = vunpack.c.l.bf16 %v889
      %v922 = vunpack.c.l.bf16 %v890
      %v923 = vunpack.c.l.bf16 %v891
      %v924 = vunpack.c.l.bf16 %v892
      %v925 = vunpack.c.l.bf16 %v893
      %v926 = vunpack.c.l.bf16 %v894
      %v927 = vunpack.c.l.bf16 %v895
      %v928 = vunpack.c.l.bf16 %v896
      %v929 = vunpack.c.l.bf16 %v897
      %v930 = vunpack.c.l.bf16 %v898
      %963 = vrot.lane.b32.xlu0 %v899, 32
      %v964 = vpop.permute.xlu0 %963
      %965 = vrot.lane.b32.xlu0 %v900, 32
      %v966 = vpop.permute.xlu0 %965
      %967 = vrot.lane.b32.xlu0 %v901, 32
      %v968 = vpop.permute.xlu0 %967
      %969 = vrot.lane.b32.xlu0 %v902, 32
      %v970 = vpop.permute.xlu0 %969
      %971 = vrot.lane.b32.xlu0 %v903, 32
      %v972 = vpop.permute.xlu0 %971
      %973 = vrot.lane.b32.xlu0 %v904, 32
      %v974 = vpop.permute.xlu0 %973
      %975 = vrot.lane.b32.xlu0 %v905, 32
      %v976 = vpop.permute.xlu0 %975
      %977 = vrot.lane.b32.xlu0 %v906, 32
      %v978 = vpop.permute.xlu0 %977
      %979 = vrot.lane.b32.xlu0 %v907, 32
      %v980 = vpop.permute.xlu0 %979
      %981 = vrot.lane.b32.xlu0 %v908, 32
      %v982 = vpop.permute.xlu0 %981
      %983 = vrot.lane.b32.xlu0 %v909, 32
      %v984 = vpop.permute.xlu0 %983
      %985 = vrot.lane.b32.xlu0 %v910, 32
      %v986 = vpop.permute.xlu0 %985
      %987 = vrot.lane.b32.xlu0 %v911, 32
      %v988 = vpop.permute.xlu0 %987
      %989 = vrot.lane.b32.xlu0 %v912, 32
      %v990 = vpop.permute.xlu0 %989
      %991 = vrot.lane.b32.xlu0 %v913, 32
      %v992 = vpop.permute.xlu0 %991
      %993 = vrot.lane.b32.xlu0 %v914, 32
      %v994 = vpop.permute.xlu0 %993
      %995 = vrot.lane.b32.xlu0 %v915, 32
      %v996 = vpop.permute.xlu0 %995
      %997 = vrot.lane.b32.xlu0 %v916, 32
      %v998 = vpop.permute.xlu0 %997
      %999 = vrot.lane.b32.xlu0 %v917, 32
      %v1000 = vpop.permute.xlu0 %999
      %1001 = vrot.lane.b32.xlu0 %v918, 32
      %v1002 = vpop.permute.xlu0 %1001
      %1003 = vrot.lane.b32.xlu0 %v919, 32
      %v1004 = vpop.permute.xlu0 %1003
      %1005 = vrot.lane.b32.xlu0 %v920, 32
      %v1006 = vpop.permute.xlu0 %1005
      %1007 = vrot.lane.b32.xlu0 %v921, 32
      %v1008 = vpop.permute.xlu0 %1007
      %1009 = vrot.lane.b32.xlu0 %v922, 32
      %v1010 = vpop.permute.xlu0 %1009
      %1011 = vrot.lane.b32.xlu0 %v923, 32
      %v1012 = vpop.permute.xlu0 %1011
      %1013 = vrot.lane.b32.xlu0 %v924, 32
      %v1014 = vpop.permute.xlu0 %1013
      %1015 = vrot.lane.b32.xlu0 %v925, 32
      %v1016 = vpop.permute.xlu0 %1015
      %1017 = vrot.lane.b32.xlu0 %v926, 32
      %v1018 = vpop.permute.xlu0 %1017
      %1019 = vrot.lane.b32.xlu0 %v927, 32
      %v1020 = vpop.permute.xlu0 %1019
      %1021 = vrot.lane.b32.xlu0 %v928, 32
      %v1022 = vpop.permute.xlu0 %1021
      %1023 = vrot.lane.b32.xlu0 %v929, 32
      %v1024 = vpop.permute.xlu0 %1023
      %1025 = vrot.lane.b32.xlu0 %v930, 32
      %v1026 = vpop.permute.xlu0 %1025
      %v1059 = vadd.f32 %v713, %v964
      %v1060 = vadd.f32 %v713, %v966
      %v1061 = vadd.f32 %v713, %v968
      %v1062 = vadd.f32 %v713, %v970
      %v1063 = vadd.f32 %v713, %v972
      %v1064 = vadd.f32 %v713, %v974
      %v1065 = vadd.f32 %v713, %v976
      %v1066 = vadd.f32 %v713, %v978
      %v1067 = vadd.f32 %v713, %v980
      %v1068 = vadd.f32 %v713, %v982
      %v1069 = vadd.f32 %v713, %v984
      %v1070 = vadd.f32 %v713, %v986
      %v1071 = vadd.f32 %v713, %v988
      %v1072 = vadd.f32 %v713, %v990
      %v1073 = vadd.f32 %v713, %v992
      %v1074 = vadd.f32 %v713, %v994
      %v1075 = vadd.f32 %v714, %v996
      %v1076 = vadd.f32 %v714, %v998
      %v1077 = vadd.f32 %v714, %v1000
      %v1078 = vadd.f32 %v714, %v1002
      %v1079 = vadd.f32 %v714, %v1004
      %v1080 = vadd.f32 %v714, %v1006
      %v1081 = vadd.f32 %v714, %v1008
      %v1082 = vadd.f32 %v714, %v1010
      %v1083 = vadd.f32 %v714, %v1012
      %v1084 = vadd.f32 %v714, %v1014
      %v1085 = vadd.f32 %v714, %v1016
      %v1086 = vadd.f32 %v714, %v1018
      %v1087 = vadd.f32 %v714, %v1020
      %v1088 = vadd.f32 %v714, %v1022
      %v1089 = vadd.f32 %v714, %v1024
      %v1090 = vadd.f32 %v714, %v1026
      %v1091 = vtanh.pop %v1059
      %v1092 = vtanh.pop %v1060
      %v1093 = vtanh.pop %v1061
      %v1094 = vtanh.pop %v1062
      %v1095 = vtanh.pop %v1063
      %v1096 = vtanh.pop %v1064
      %v1097 = vtanh.pop %v1065
      %v1098 = vtanh.pop %v1066
      %v1099 = vtanh.pop %v1067
      %v1100 = vtanh.pop %v1068
      %v1101 = vtanh.pop %v1069
      %v1102 = vtanh.pop %v1070
      %v1103 = vtanh.pop %v1071
      %v1104 = vtanh.pop %v1072
      %v1105 = vtanh.pop %v1073
      %v1106 = vtanh.pop %v1074
      %v1107 = vtanh.pop %v1075
      %v1108 = vtanh.pop %v1076
      %v1109 = vtanh.pop %v1077
      %v1110 = vtanh.pop %v1078
      %v1111 = vtanh.pop %v1079
      %v1112 = vtanh.pop %v1080
      %v1113 = vtanh.pop %v1081
      %v1114 = vtanh.pop %v1082
      %v1115 = vtanh.pop %v1083
      %v1116 = vtanh.pop %v1084
      %v1117 = vtanh.pop %v1085
      %v1118 = vtanh.pop %v1086
      %v1119 = vtanh.pop %v1087
      %v1120 = vtanh.pop %v1088
      %v1121 = vtanh.pop %v1089
      %v1122 = vtanh.pop %v1090
      %v1123 = vld [vmem:[%s10] sm:$0x1]
      %v1124 = vunpack.c.l.bf16 %v1123
      %v1125 = vperm.slane %v1124, 0
      %1127 = vrot.lane.b32.xlu0 %v1125, 32
      %v1128 = vpop.permute.xlu0 %1127
      %v1130 = vmul.f32 %v1091, %v1128
      %v1131 = vmul.f32 %v1092, %v1128
      %v1132 = vmul.f32 %v1093, %v1128
      %v1133 = vmul.f32 %v1094, %v1128
      %v1134 = vmul.f32 %v1095, %v1128
      %v1135 = vmul.f32 %v1096, %v1128
      %v1136 = vmul.f32 %v1097, %v1128
      %v1137 = vmul.f32 %v1098, %v1128
      %v1138 = vmul.f32 %v1099, %v1128
      %v1139 = vmul.f32 %v1100, %v1128
      %v1140 = vmul.f32 %v1101, %v1128
      %v1141 = vmul.f32 %v1102, %v1128
      %v1142 = vmul.f32 %v1103, %v1128
      %v1143 = vmul.f32 %v1104, %v1128
      %v1144 = vmul.f32 %v1105, %v1128
      %v1145 = vmul.f32 %v1106, %v1128
      %v1146 = vmul.f32 %v1107, %v1128
      %v1147 = vmul.f32 %v1108, %v1128
      %v1148 = vmul.f32 %v1109, %v1128
      %v1149 = vmul.f32 %v1110, %v1128
      %v1150 = vmul.f32 %v1111, %v1128
      %v1151 = vmul.f32 %v1112, %v1128
      %v1152 = vmul.f32 %v1113, %v1128
      %v1153 = vmul.f32 %v1114, %v1128
      %v1154 = vmul.f32 %v1115, %v1128
      %v1155 = vmul.f32 %v1116, %v1128
      %v1156 = vmul.f32 %v1117, %v1128
      %v1157 = vmul.f32 %v1118, %v1128
      %v1158 = vmul.f32 %v1119, %v1128
      %v1159 = vmul.f32 %v1120, %v1128
      %v1160 = vmul.f32 %v1121, %v1128
      %v1161 = vmul.f32 %v1122, %v1128
      %1194 = vrot.lane.b32.xlu0 %v1130, 96
      %v1195 = vpop.permute.xlu0 %1194
      %1196 = vrot.lane.b32.xlu0 %v1131, 96
      %v1197 = vpop.permute.xlu0 %1196
      %1198 = vrot.lane.b32.xlu0 %v1132, 96
      %v1199 = vpop.permute.xlu0 %1198
      %1200 = vrot.lane.b32.xlu0 %v1133, 96
      %v1201 = vpop.permute.xlu0 %1200
      %1202 = vrot.lane.b32.xlu0 %v1134, 96
      %v1203 = vpop.permute.xlu0 %1202
      %1204 = vrot.lane.b32.xlu0 %v1135, 96
      %v1205 = vpop.permute.xlu0 %1204
      %1206 = vrot.lane.b32.xlu0 %v1136, 96
      %v1207 = vpop.permute.xlu0 %1206
      %1208 = vrot.lane.b32.xlu0 %v1137, 96
      %v1209 = vpop.permute.xlu0 %1208
      %1210 = vrot.lane.b32.xlu0 %v1138, 96
      %v1211 = vpop.permute.xlu0 %1210
      %1212 = vrot.lane.b32.xlu0 %v1139, 96
      %v1213 = vpop.permute.xlu0 %1212
      %1214 = vrot.lane.b32.xlu0 %v1140, 96
      %v1215 = vpop.permute.xlu0 %1214
      %1216 = vrot.lane.b32.xlu0 %v1141, 96
      %v1217 = vpop.permute.xlu0 %1216
      %1218 = vrot.lane.b32.xlu0 %v1142, 96
      %v1219 = vpop.permute.xlu0 %1218
      %1220 = vrot.lane.b32.xlu0 %v1143, 96
      %v1221 = vpop.permute.xlu0 %1220
      %1222 = vrot.lane.b32.xlu0 %v1144, 96
      %v1223 = vpop.permute.xlu0 %1222
      %1224 = vrot.lane.b32.xlu0 %v1145, 96
      %v1225 = vpop.permute.xlu0 %1224
      %1226 = vrot.lane.b32.xlu0 %v1146, 96
      %v1227 = vpop.permute.xlu0 %1226
      %1228 = vrot.lane.b32.xlu0 %v1147, 96
      %v1229 = vpop.permute.xlu0 %1228
      %1230 = vrot.lane.b32.xlu0 %v1148, 96
      %v1231 = vpop.permute.xlu0 %1230
      %1232 = vrot.lane.b32.xlu0 %v1149, 96
      %v1233 = vpop.permute.xlu0 %1232
      %1234 = vrot.lane.b32.xlu0 %v1150, 96
      %v1235 = vpop.permute.xlu0 %1234
      %1236 = vrot.lane.b32.xlu0 %v1151, 96
      %v1237 = vpop.permute.xlu0 %1236
      %1238 = vrot.lane.b32.xlu0 %v1152, 96
      %v1239 = vpop.permute.xlu0 %1238
      %1240 = vrot.lane.b32.xlu0 %v1153, 96
      %v1241 = vpop.permute.xlu0 %1240
      %1242 = vrot.lane.b32.xlu0 %v1154, 96
      %v1243 = vpop.permute.xlu0 %1242
      %1244 = vrot.lane.b32.xlu0 %v1155, 96
      %v1245 = vpop.permute.xlu0 %1244
      %1246 = vrot.lane.b32.xlu0 %v1156, 96
      %v1247 = vpop.permute.xlu0 %1246
      %1248 = vrot.lane.b32.xlu0 %v1157, 96
      %v1249 = vpop.permute.xlu0 %1248
      %1250 = vrot.lane.b32.xlu0 %v1158, 96
      %v1251 = vpop.permute.xlu0 %1250
      %1252 = vrot.lane.b32.xlu0 %v1159, 96
      %v1253 = vpop.permute.xlu0 %1252
      %1254 = vrot.lane.b32.xlu0 %v1160, 96
      %v1255 = vpop.permute.xlu0 %1254
      %1256 = vrot.lane.b32.xlu0 %v1161, 96
      %v1257 = vpop.permute.xlu0 %1256
      %v1290 = vsel %vm604, %v1195, 0.0
      %1291 = vadd.xlane.f32.xlu0 %v1290
      %v1292 = vpop.xlane.xlu0 %1291
      %v1293 = vsel %vm604, %v1197, 0.0
      %1294 = vadd.xlane.f32.xlu0 %v1293
      %v1295 = vpop.xlane.xlu0 %1294
      %v1296 = vsel %vm604, %v1199, 0.0
      %1297 = vadd.xlane.f32.xlu0 %v1296
      %v1298 = vpop.xlane.xlu0 %1297
      %v1299 = vsel %vm604, %v1201, 0.0
      %1300 = vadd.xlane.f32.xlu0 %v1299
      %v1301 = vpop.xlane.xlu0 %1300
      %v1302 = vsel %vm604, %v1203, 0.0
      %1303 = vadd.xlane.f32.xlu0 %v1302
      %v1304 = vpop.xlane.xlu0 %1303
      %v1305 = vsel %vm604, %v1205, 0.0
      %1306 = vadd.xlane.f32.xlu0 %v1305
      %v1307 = vpop.xlane.xlu0 %1306
      %v1308 = vsel %vm604, %v1207, 0.0
      %1309 = vadd.xlane.f32.xlu0 %v1308
      %v1310 = vpop.xlane.xlu0 %1309
      %v1311 = vsel %vm604, %v1209, 0.0
      %1312 = vadd.xlane.f32.xlu0 %v1311
      %v1313 = vpop.xlane.xlu0 %1312
      %v1314 = vsel %vm604, %v1211, 0.0
      %1315 = vadd.xlane.f32.xlu0 %v1314
      %v1316 = vpop.xlane.xlu0 %1315
      %v1317 = vsel %vm604, %v1213, 0.0
      %1318 = vadd.xlane.f32.xlu0 %v1317
      %v1319 = vpop.xlane.xlu0 %1318
      %v1320 = vsel %vm604, %v1215, 0.0
      %1321 = vadd.xlane.f32.xlu0 %v1320
      %v1322 = vpop.xlane.xlu0 %1321
      %v1323 = vsel %vm604, %v1217, 0.0
      %1324 = vadd.xlane.f32.xlu0 %v1323
      %v1325 = vpop.xlane.xlu0 %1324
      %v1326 = vsel %vm604, %v1219, 0.0
      %1327 = vadd.xlane.f32.xlu0 %v1326
      %v1328 = vpop.xlane.xlu0 %1327
      %v1329 = vsel %vm604, %v1221, 0.0
      %1330 = vadd.xlane.f32.xlu0 %v1329
      %v1331 = vpop.xlane.xlu0 %1330
      %v1332 = vsel %vm604, %v1223, 0.0
      %1333 = vadd.xlane.f32.xlu0 %v1332
      %v1334 = vpop.xlane.xlu0 %1333
      %v1335 = vsel %vm604, %v1225, 0.0
      %1336 = vadd.xlane.f32.xlu0 %v1335
      %v1337 = vpop.xlane.xlu0 %1336
      %v1338 = vsel %vm604, %v1227, 0.0
      %1339 = vadd.xlane.f32.xlu0 %v1338
      %v1340 = vpop.xlane.xlu0 %1339
      %v1341 = vsel %vm604, %v1229, 0.0
      %1342 = vadd.xlane.f32.xlu0 %v1341
      %v1343 = vpop.xlane.xlu0 %1342
      %v1344 = vsel %vm604, %v1231, 0.0
      %1345 = vadd.xlane.f32.xlu0 %v1344
      %v1346 = vpop.xlane.xlu0 %1345
      %v1347 = vsel %vm604, %v1233, 0.0
      %1348 = vadd.xlane.f32.xlu0 %v1347
      %v1349 = vpop.xlane.xlu0 %1348
      %v1350 = vsel %vm604, %v1235, 0.0
      %1351 = vadd.xlane.f32.xlu0 %v1350
      %v1352 = vpop.xlane.xlu0 %1351
      %v1353 = vsel %vm604, %v1237, 0.0
      %1354 = vadd.xlane.f32.xlu0 %v1353
      %v1355 = vpop.xlane.xlu0 %1354
      %v1356 = vsel %vm604, %v1239, 0.0
      %1357 = vadd.xlane.f32.xlu0 %v1356
      %v1358 = vpop.xlane.xlu0 %1357
      %v1359 = vsel %vm604, %v1241, 0.0
      %1360 = vadd.xlane.f32.xlu0 %v1359
      %v1361 = vpop.xlane.xlu0 %1360
      %v1362 = vsel %vm604, %v1243, 0.0
      %1363 = vadd.xlane.f32.xlu0 %v1362
      %v1364 = vpop.xlane.xlu0 %1363
      %v1365 = vsel %vm604, %v1245, 0.0
      %1366 = vadd.xlane.f32.xlu0 %v1365
      %v1367 = vpop.xlane.xlu0 %1366
      %v1368 = vsel %vm604, %v1247, 0.0
      %1369 = vadd.xlane.f32.xlu0 %v1368
      %v1370 = vpop.xlane.xlu0 %1369
      %v1371 = vsel %vm604, %v1249, 0.0
      %1372 = vadd.xlane.f32.xlu0 %v1371
      %v1373 = vpop.xlane.xlu0 %1372
      %v1374 = vsel %vm604, %v1251, 0.0
      %1375 = vadd.xlane.f32.xlu0 %v1374
      %v1376 = vpop.xlane.xlu0 %1375
      %v1377 = vsel %vm604, %v1253, 0.0
      %1378 = vadd.xlane.f32.xlu0 %v1377
      %v1379 = vpop.xlane.xlu0 %1378
      %v1380 = vsel %vm604, %v1255, 0.0
      %1381 = vadd.xlane.f32.xlu0 %v1380
      %v1382 = vpop.xlane.xlu0 %1381
      %v1383 = vsel %vm604, %v1257, 0.0
      %1384 = vadd.xlane.f32.xlu0 %v1383
      %v1385 = vpop.xlane.xlu0 %1384
      %v1387 = vperm.slane %v866, 0
      %v1388 = vlaneseq
      %v1389 = vshrl.u32 %v1388, 7
      %1391 = vset.pattern.permute.xlu0 %v1389
      %1392 = vperm.xlu0 %1391, %v1387
      %v1393 = vpop.permute.xlu0 %1392
      %v1394 = vlaneseq
      %v1395 = vshrl.u32 %v1394, 7
      %v1396 = vadd.s32 %v1395, 8
      %1397 = vset.pattern.permute.xlu0 %v1396
      %1398 = vperm.xlu0 %1397, %v1387
      %v1399 = vpop.permute.xlu0 %1398
      %v1400 = vlaneseq
      %v1401 = vshrl.u32 %v1400, 7
      %v1402 = vadd.s32 %v1401, 16
      %1403 = vset.pattern.permute.xlu0 %v1402
      %1404 = vperm.xlu0 %1403, %v1387
      %v1405 = vpop.permute.xlu0 %1404
      %v1406 = vlaneseq
      %v1407 = vshrl.u32 %v1406, 7
      %v1408 = vadd.s32 %v1407, 24
      %1409 = vset.pattern.permute.xlu0 %v1408
      %1410 = vperm.xlu0 %1409, %v1387
      %v1411 = vpop.permute.xlu0 %1410
      %v1412 = vlaneseq
      %v1413 = vshrl.u32 %v1412, 7
      %v1414 = vadd.s32 %v1413, 32
      %1415 = vset.pattern.permute.xlu0 %v1414
      %1416 = vperm.xlu0 %1415, %v1387
      %v1417 = vpop.permute.xlu0 %1416
      %v1418 = vlaneseq
      %v1419 = vshrl.u32 %v1418, 7
      %v1420 = vadd.s32 %v1419, 40
      %1421 = vset.pattern.permute.xlu0 %v1420
      %1422 = vperm.xlu0 %1421, %v1387
      %v1423 = vpop.permute.xlu0 %1422
      %v1424 = vlaneseq
      %v1425 = vshrl.u32 %v1424, 7
      %v1426 = vadd.s32 %v1425, 48
      %1427 = vset.pattern.permute.xlu0 %v1426
      %1428 = vperm.xlu0 %1427, %v1387
      %v1429 = vpop.permute.xlu0 %1428
      %v1430 = vlaneseq
      %v1431 = vshrl.u32 %v1430, 7
      %v1432 = vadd.s32 %v1431, 56
      %1433 = vset.pattern.permute.xlu0 %v1432
      %1434 = vperm.xlu0 %1433, %v1387
      %v1435 = vpop.permute.xlu0 %1434
      %v1436 = vlaneseq
      %v1437 = vshrl.u32 %v1436, 7
      %v1438 = vadd.s32 %v1437, 64
      %1439 = vset.pattern.permute.xlu0 %v1438
      %1440 = vperm.xlu0 %1439, %v1387
      %v1441 = vpop.permute.xlu0 %1440
      %v1442 = vlaneseq
      %v1443 = vshrl.u32 %v1442, 7
      %v1444 = vadd.s32 %v1443, 72
      %1445 = vset.pattern.permute.xlu0 %v1444
      %1446 = vperm.xlu0 %1445, %v1387
      %v1447 = vpop.permute.xlu0 %1446
      %v1448 = vlaneseq
      %v1449 = vshrl.u32 %v1448, 7
      %v1450 = vadd.s32 %v1449, 80
      %1451 = vset.pattern.permute.xlu0 %v1450
      %1452 = vperm.xlu0 %1451, %v1387
      %v1453 = vpop.permute.xlu0 %1452
      %v1454 = vlaneseq
      %v1455 = vshrl.u32 %v1454, 7
      %v1456 = vadd.s32 %v1455, 88
      %1457 = vset.pattern.permute.xlu0 %v1456
      %1458 = vperm.xlu0 %1457, %v1387
      %v1459 = vpop.permute.xlu0 %1458
      %v1460 = vlaneseq
      %v1461 = vshrl.u32 %v1460, 7
      %v1462 = vadd.s32 %v1461, 96
      %1463 = vset.pattern.permute.xlu0 %v1462
      %1464 = vperm.xlu0 %1463, %v1387
      %v1465 = vpop.permute.xlu0 %1464
      %v1466 = vlaneseq
      %v1467 = vshrl.u32 %v1466, 7
      %v1468 = vadd.s32 %v1467, 104
      %1469 = vset.pattern.permute.xlu0 %v1468
      %1470 = vperm.xlu0 %1469, %v1387
      %v1471 = vpop.permute.xlu0 %1470
      %v1472 = vlaneseq
      %v1473 = vshrl.u32 %v1472, 7
      %v1474 = vadd.s32 %v1473, 112
      %1475 = vset.pattern.permute.xlu0 %v1474
      %1476 = vperm.xlu0 %1475, %v1387
      %v1477 = vpop.permute.xlu0 %1476
      %v1478 = vlaneseq
      %v1479 = vshrl.u32 %v1478, 7
      %v1480 = vadd.s32 %v1479, 120
      %1481 = vset.pattern.permute.xlu0 %v1480
      %1482 = vperm.xlu0 %1481, %v1387
      %v1483 = vpop.permute.xlu0 %1482
      %v1500 = vadd.f32 %v1292, %v1393
      %v1501 = vadd.f32 %v1295, %v1399
      %v1502 = vadd.f32 %v1298, %v1405
      %v1503 = vadd.f32 %v1301, %v1411
      %v1504 = vadd.f32 %v1304, %v1417
      %v1505 = vadd.f32 %v1307, %v1423
      %v1506 = vadd.f32 %v1310, %v1429
      %v1507 = vadd.f32 %v1313, %v1435
      %v1508 = vadd.f32 %v1316, %v1441
      %v1509 = vadd.f32 %v1319, %v1447
      %v1510 = vadd.f32 %v1322, %v1453
      %v1511 = vadd.f32 %v1325, %v1459
      %v1512 = vadd.f32 %v1328, %v1465
      %v1513 = vadd.f32 %v1331, %v1471
      %v1514 = vadd.f32 %v1334, %v1477
      %v1515 = vadd.f32 %v1337, %v1483
      %v1516 = vadd.f32 %v1340, %v1393
      %v1517 = vadd.f32 %v1343, %v1399
      %v1518 = vadd.f32 %v1346, %v1405
      %v1519 = vadd.f32 %v1349, %v1411
      %v1520 = vadd.f32 %v1352, %v1417
      %v1521 = vadd.f32 %v1355, %v1423
      %v1522 = vadd.f32 %v1358, %v1429
      %v1523 = vadd.f32 %v1361, %v1435
      %v1524 = vadd.f32 %v1364, %v1441
      %v1525 = vadd.f32 %v1367, %v1447
      %v1526 = vadd.f32 %v1370, %v1453
      %v1527 = vadd.f32 %v1373, %v1459
      %v1528 = vadd.f32 %v1376, %v1465
      %v1529 = vadd.f32 %v1379, %v1471
      %v1530 = vadd.f32 %v1382, %v1477
      %v1531 = vadd.f32 %v1385, %v1483
      %1564 = vset.pattern.permute.xlu0 0
      %1565 = vperm.xlu0 %1564, %v1500
      %v1566 = vpop.permute.xlu0 %1565
      %1567 = vset.pattern.permute.xlu0 0
      %1568 = vperm.xlu0 %1567, %v1501
      %v1569 = vpop.permute.xlu0 %1568
      %1570 = vset.pattern.permute.xlu0 0
      %1571 = vperm.xlu0 %1570, %v1502
      %v1572 = vpop.permute.xlu0 %1571
      %1573 = vset.pattern.permute.xlu0 0
      %1574 = vperm.xlu0 %1573, %v1503
      %v1575 = vpop.permute.xlu0 %1574
      %1576 = vset.pattern.permute.xlu0 0
      %1577 = vperm.xlu0 %1576, %v1504
      %v1578 = vpop.permute.xlu0 %1577
      %1579 = vset.pattern.permute.xlu0 0
      %1580 = vperm.xlu0 %1579, %v1505
      %v1581 = vpop.permute.xlu0 %1580
      %1582 = vset.pattern.permute.xlu0 0
      %1583 = vperm.xlu0 %1582, %v1506
      %v1584 = vpop.permute.xlu0 %1583
      %1585 = vset.pattern.permute.xlu0 0
      %1586 = vperm.xlu0 %1585, %v1507
      %v1587 = vpop.permute.xlu0 %1586
      %1588 = vset.pattern.permute.xlu0 0
      %1589 = vperm.xlu0 %1588, %v1508
      %v1590 = vpop.permute.xlu0 %1589
      %1591 = vset.pattern.permute.xlu0 0
      %1592 = vperm.xlu0 %1591, %v1509
      %v1593 = vpop.permute.xlu0 %1592
      %1594 = vset.pattern.permute.xlu0 0
      %1595 = vperm.xlu0 %1594, %v1510
      %v1596 = vpop.permute.xlu0 %1595
      %1597 = vset.pattern.permute.xlu0 0
      %1598 = vperm.xlu0 %1597, %v1511
      %v1599 = vpop.permute.xlu0 %1598
      %1600 = vset.pattern.permute.xlu0 0
      %1601 = vperm.xlu0 %1600, %v1512
      %v1602 = vpop.permute.xlu0 %1601
      %1603 = vset.pattern.permute.xlu0 0
      %1604 = vperm.xlu0 %1603, %v1513
      %v1605 = vpop.permute.xlu0 %1604
      %1606 = vset.pattern.permute.xlu0 0
      %1607 = vperm.xlu0 %1606, %v1514
      %v1608 = vpop.permute.xlu0 %1607
      %1609 = vset.pattern.permute.xlu0 0
      %1610 = vperm.xlu0 %1609, %v1515
      %v1611 = vpop.permute.xlu0 %1610
      %1612 = vset.pattern.permute.xlu0 0
      %1613 = vperm.xlu0 %1612, %v1516
      %v1614 = vpop.permute.xlu0 %1613
      %1615 = vset.pattern.permute.xlu0 0
      %1616 = vperm.xlu0 %1615, %v1517
      %v1617 = vpop.permute.xlu0 %1616
      %1618 = vset.pattern.permute.xlu0 0
      %1619 = vperm.xlu0 %1618, %v1518
      %v1620 = vpop.permute.xlu0 %1619
      %1621 = vset.pattern.permute.xlu0 0
      %1622 = vperm.xlu0 %1621, %v1519
      %v1623 = vpop.permute.xlu0 %1622
      %1624 = vset.pattern.permute.xlu0 0
      %1625 = vperm.xlu0 %1624, %v1520
      %v1626 = vpop.permute.xlu0 %1625
      %1627 = vset.pattern.permute.xlu0 0
      %1628 = vperm.xlu0 %1627, %v1521
      %v1629 = vpop.permute.xlu0 %1628
      %1630 = vset.pattern.permute.xlu0 0
      %1631 = vperm.xlu0 %1630, %v1522
      %v1632 = vpop.permute.xlu0 %1631
      %1633 = vset.pattern.permute.xlu0 0
      %1634 = vperm.xlu0 %1633, %v1523
      %v1635 = vpop.permute.xlu0 %1634
      %1636 = vset.pattern.permute.xlu0 0
      %1637 = vperm.xlu0 %1636, %v1524
      %v1638 = vpop.permute.xlu0 %1637
      %1639 = vset.pattern.permute.xlu0 0
      %1640 = vperm.xlu0 %1639, %v1525
      %v1641 = vpop.permute.xlu0 %1640
      %1642 = vset.pattern.permute.xlu0 0
      %1643 = vperm.xlu0 %1642, %v1526
      %v1644 = vpop.permute.xlu0 %1643
      %1645 = vset.pattern.permute.xlu0 0
      %1646 = vperm.xlu0 %1645, %v1527
      %v1647 = vpop.permute.xlu0 %1646
      %1648 = vset.pattern.permute.xlu0 0
      %1649 = vperm.xlu0 %1648, %v1528
      %v1650 = vpop.permute.xlu0 %1649
      %1651 = vset.pattern.permute.xlu0 0
      %1652 = vperm.xlu0 %1651, %v1529
      %v1653 = vpop.permute.xlu0 %1652
      %1654 = vset.pattern.permute.xlu0 0
      %1655 = vperm.xlu0 %1654, %v1530
      %v1656 = vpop.permute.xlu0 %1655
      %1657 = vset.pattern.permute.xlu0 0
      %1658 = vperm.xlu0 %1657, %v1531
      %v1659 = vpop.permute.xlu0 %1658
      %v1660 = vperm.slane %v1566, %v760
      %v1661 = vadd.s32 %v760, 4294967288
      %v1662 = vperm.slane %v1569, %v1661
      %vm1663 = vcmask 130112
      %v1664 = vsel %vm1663, %v1662, %v1660
      %v1665 = vadd.s32 %v760, 4294967280
      %v1666 = vperm.slane %v1572, %v1665
      %vm1667 = vcmask 195712
      %v1668 = vsel %vm1667, %v1666, %v1664
      %v1669 = vadd.s32 %v760, 4294967272
      %v1670 = vperm.slane %v1575, %v1669
      %vm1671 = vcmask 261312
      %v1672 = vsel %vm1671, %v1670, %v1668
      %v1673 = vadd.s32 %v760, 4294967264
      %v1674 = vperm.slane %v1578, %v1673
      %vm1675 = vcmask 326912
      %v1676 = vsel %vm1675, %v1674, %v1672
      %v1677 = vadd.s32 %v760, 4294967256
      %v1678 = vperm.slane %v1581, %v1677
      %vm1679 = vcmask 392512
      %v1680 = vsel %vm1679, %v1678, %v1676
      %v1681 = vadd.s32 %v760, 4294967248
      %v1682 = vperm.slane %v1584, %v1681
      %vm1683 = vcmask 458112
      %v1684 = vsel %vm1683, %v1682, %v1680
      %v1685 = vadd.s32 %v760, 4294967240
      %v1686 = vperm.slane %v1587, %v1685
      %vm1687 = vcmask 523712
      %v1688 = vsel %vm1687, %v1686, %v1684
      %v1689 = vadd.s32 %v760, 4294967232
      %v1690 = vperm.slane %v1590, %v1689
      %vm1691 = vcmask 589312
      %v1692 = vsel %vm1691, %v1690, %v1688
      %v1693 = vadd.s32 %v760, 4294967224
      %v1694 = vperm.slane %v1593, %v1693
      %vm1695 = vcmask 654912
      %v1696 = vsel %vm1695, %v1694, %v1692
      %v1697 = vadd.s32 %v760, 4294967216
      %v1698 = vperm.slane %v1596, %v1697
      %vm1699 = vcmask 720512
      %v1700 = vsel %vm1699, %v1698, %v1696
      %v1701 = vadd.s32 %v760, 4294967208
      %v1702 = vperm.slane %v1599, %v1701
      %vm1703 = vcmask 786112
      %v1704 = vsel %vm1703, %v1702, %v1700
      %v1705 = vadd.s32 %v760, 4294967200
      %v1706 = vperm.slane %v1602, %v1705
      %vm1707 = vcmask 851712
      %v1708 = vsel %vm1707, %v1706, %v1704
      %v1709 = vadd.s32 %v760, 4294967192
      %v1710 = vperm.slane %v1605, %v1709
      %vm1711 = vcmask 917312
      %v1712 = vsel %vm1711, %v1710, %v1708
      %v1713 = vadd.s32 %v760, 4294967184
      %v1714 = vperm.slane %v1608, %v1713
      %vm1715 = vcmask 982912
      %v1716 = vsel %vm1715, %v1714, %v1712
      %v1717 = vadd.s32 %v760, 4294967176
      %v1718 = vperm.slane %v1611, %v1717
      %vm1719 = vcmask 1048512
      %v1720 = vsel %vm1719, %v1718, %v1716
      %v1721 = vperm.slane %v1614, %v760
      %v1722 = vperm.slane %v1617, %v1661
      %v1723 = vsel %vm1663, %v1722, %v1721
      %v1724 = vperm.slane %v1620, %v1665
      %v1725 = vsel %vm1667, %v1724, %v1723
      %v1726 = vperm.slane %v1623, %v1669
      %v1727 = vsel %vm1671, %v1726, %v1725
      %v1728 = vperm.slane %v1626, %v1673
      %v1729 = vsel %vm1675, %v1728, %v1727
      %v1730 = vperm.slane %v1629, %v1677
      %v1731 = vsel %vm1679, %v1730, %v1729
      %v1732 = vperm.slane %v1632, %v1681
      %v1733 = vsel %vm1683, %v1732, %v1731
      %v1734 = vperm.slane %v1635, %v1685
      %v1735 = vsel %vm1687, %v1734, %v1733
      %v1736 = vperm.slane %v1638, %v1689
      %v1737 = vsel %vm1691, %v1736, %v1735
      %v1738 = vperm.slane %v1641, %v1693
      %v1739 = vsel %vm1695, %v1738, %v1737
      %v1740 = vperm.slane %v1644, %v1697
      %v1741 = vsel %vm1699, %v1740, %v1739
      %v1742 = vperm.slane %v1647, %v1701
      %v1743 = vsel %vm1703, %v1742, %v1741
      %v1744 = vperm.slane %v1650, %v1705
      %v1745 = vsel %vm1707, %v1744, %v1743
      %v1746 = vperm.slane %v1653, %v1709
      %v1747 = vsel %vm1711, %v1746, %v1745
      %v1748 = vperm.slane %v1656, %v1713
      %v1749 = vsel %vm1715, %v1748, %v1747
      %v1750 = vperm.slane %v1659, %v1717
      %v1751 = vsel %vm1719, %v1750, %v1749
      %v1752 = vsel %vm763, %v1751, %v1720
      %vm1754 = vcmask 1041408
      %v1755 = vsel %vm1754, %v1752, -inf
      %1756 = vmax.xlane.f32.xlu0 %v1755
      %v1757 = vpop.xlane.xlu0 %1756
      %v1759 = vperm.slane %v1757, 0
      %v1760 = vperm.slane %v1757, 1
      %v1763 = vsub.f32 %v1500, %v1759
      %v1764 = vsub.f32 %v1501, %v1759
      %v1765 = vsub.f32 %v1502, %v1759
      %v1766 = vsub.f32 %v1503, %v1759
      %v1767 = vsub.f32 %v1504, %v1759
      %v1768 = vsub.f32 %v1505, %v1759
      %v1769 = vsub.f32 %v1506, %v1759
      %v1770 = vsub.f32 %v1507, %v1759
      %v1771 = vsub.f32 %v1508, %v1759
      %v1772 = vsub.f32 %v1509, %v1759
      %v1773 = vsub.f32 %v1510, %v1759
      %v1774 = vsub.f32 %v1511, %v1759
      %v1775 = vsub.f32 %v1512, %v1759
      %v1776 = vsub.f32 %v1513, %v1759
      %v1777 = vsub.f32 %v1514, %v1759
      %v1778 = vsub.f32 %v1515, %v1759
      %v1779 = vsub.f32 %v1516, %v1760
      %v1780 = vsub.f32 %v1517, %v1760
      %v1781 = vsub.f32 %v1518, %v1760
      %v1782 = vsub.f32 %v1519, %v1760
      %v1783 = vsub.f32 %v1520, %v1760
      %v1784 = vsub.f32 %v1521, %v1760
      %v1785 = vsub.f32 %v1522, %v1760
      %v1786 = vsub.f32 %v1523, %v1760
      %v1787 = vsub.f32 %v1524, %v1760
      %v1788 = vsub.f32 %v1525, %v1760
      %v1789 = vsub.f32 %v1526, %v1760
      %v1790 = vsub.f32 %v1527, %v1760
      %v1791 = vsub.f32 %v1528, %v1760
      %v1792 = vsub.f32 %v1529, %v1760
      %v1793 = vsub.f32 %v1530, %v1760
      %v1794 = vsub.f32 %v1531, %v1760
      %v1795 = vmul.f32 %v1763, 1.442695
      %v1796 = vpow.pop %v1795
      %v1797 = vmul.f32 %v1764, 1.442695
      %v1798 = vpow.pop %v1797
      %v1799 = vmul.f32 %v1765, 1.442695
      %v1800 = vpow.pop %v1799
      %v1801 = vmul.f32 %v1766, 1.442695
      %v1802 = vpow.pop %v1801
      %v1803 = vmul.f32 %v1767, 1.442695
      %v1804 = vpow.pop %v1803
      %v1805 = vmul.f32 %v1768, 1.442695
      %v1806 = vpow.pop %v1805
      %v1807 = vmul.f32 %v1769, 1.442695
      %v1808 = vpow.pop %v1807
      %v1809 = vmul.f32 %v1770, 1.442695
      %v1810 = vpow.pop %v1809
      %v1811 = vmul.f32 %v1771, 1.442695
      %v1812 = vpow.pop %v1811
      %v1813 = vmul.f32 %v1772, 1.442695
      %v1814 = vpow.pop %v1813
      %v1815 = vmul.f32 %v1773, 1.442695
      %v1816 = vpow.pop %v1815
      %v1817 = vmul.f32 %v1774, 1.442695
      %v1818 = vpow.pop %v1817
      %v1819 = vmul.f32 %v1775, 1.442695
      %v1820 = vpow.pop %v1819
      %v1821 = vmul.f32 %v1776, 1.442695
      %v1822 = vpow.pop %v1821
      %v1823 = vmul.f32 %v1777, 1.442695
      %v1824 = vpow.pop %v1823
      %v1825 = vmul.f32 %v1778, 1.442695
      %v1826 = vpow.pop %v1825
      %v1827 = vmul.f32 %v1779, 1.442695
      %v1828 = vpow.pop %v1827
      %v1829 = vmul.f32 %v1780, 1.442695
      %v1830 = vpow.pop %v1829
      %v1831 = vmul.f32 %v1781, 1.442695
      %v1832 = vpow.pop %v1831
      %v1833 = vmul.f32 %v1782, 1.442695
      %v1834 = vpow.pop %v1833
      %v1835 = vmul.f32 %v1783, 1.442695
      %v1836 = vpow.pop %v1835
      %v1837 = vmul.f32 %v1784, 1.442695
      %v1838 = vpow.pop %v1837
      %v1839 = vmul.f32 %v1785, 1.442695
      %v1840 = vpow.pop %v1839
      %v1841 = vmul.f32 %v1786, 1.442695
      %v1842 = vpow.pop %v1841
      %v1843 = vmul.f32 %v1787, 1.442695
      %v1844 = vpow.pop %v1843
      %v1845 = vmul.f32 %v1788, 1.442695
      %v1846 = vpow.pop %v1845
      %v1847 = vmul.f32 %v1789, 1.442695
      %v1848 = vpow.pop %v1847
      %v1849 = vmul.f32 %v1790, 1.442695
      %v1850 = vpow.pop %v1849
      %v1851 = vmul.f32 %v1791, 1.442695
      %v1852 = vpow.pop %v1851
      %v1853 = vmul.f32 %v1792, 1.442695
      %v1854 = vpow.pop %v1853
      %v1855 = vmul.f32 %v1793, 1.442695
      %v1856 = vpow.pop %v1855
      %v1857 = vmul.f32 %v1794, 1.442695
      %v1858 = vpow.pop %v1857
      %1891 = vset.pattern.permute.xlu0 0
      %1892 = vperm.xlu0 %1891, %v1796
      %v1893 = vpop.permute.xlu0 %1892
      %1894 = vset.pattern.permute.xlu0 0
      %1895 = vperm.xlu0 %1894, %v1798
      %v1896 = vpop.permute.xlu0 %1895
      %1897 = vset.pattern.permute.xlu0 0
      %1898 = vperm.xlu0 %1897, %v1800
      %v1899 = vpop.permute.xlu0 %1898
      %1900 = vset.pattern.permute.xlu0 0
      %1901 = vperm.xlu0 %1900, %v1802
      %v1902 = vpop.permute.xlu0 %1901
      %1903 = vset.pattern.permute.xlu0 0
      %1904 = vperm.xlu0 %1903, %v1804
      %v1905 = vpop.permute.xlu0 %1904
      %1906 = vset.pattern.permute.xlu0 0
      %1907 = vperm.xlu0 %1906, %v1806
      %v1908 = vpop.permute.xlu0 %1907
      %1909 = vset.pattern.permute.xlu0 0
      %1910 = vperm.xlu0 %1909, %v1808
      %v1911 = vpop.permute.xlu0 %1910
      %1912 = vset.pattern.permute.xlu0 0
      %1913 = vperm.xlu0 %1912, %v1810
      %v1914 = vpop.permute.xlu0 %1913
      %1915 = vset.pattern.permute.xlu0 0
      %1916 = vperm.xlu0 %1915, %v1812
      %v1917 = vpop.permute.xlu0 %1916
      %1918 = vset.pattern.permute.xlu0 0
      %1919 = vperm.xlu0 %1918, %v1814
      %v1920 = vpop.permute.xlu0 %1919
      %1921 = vset.pattern.permute.xlu0 0
      %1922 = vperm.xlu0 %1921, %v1816
      %v1923 = vpop.permute.xlu0 %1922
      %1924 = vset.pattern.permute.xlu0 0
      %1925 = vperm.xlu0 %1924, %v1818
      %v1926 = vpop.permute.xlu0 %1925
      %1927 = vset.pattern.permute.xlu0 0
      %1928 = vperm.xlu0 %1927, %v1820
      %v1929 = vpop.permute.xlu0 %1928
      %1930 = vset.pattern.permute.xlu0 0
      %1931 = vperm.xlu0 %1930, %v1822
      %v1932 = vpop.permute.xlu0 %1931
      %1933 = vset.pattern.permute.xlu0 0
      %1934 = vperm.xlu0 %1933, %v1824
      %v1935 = vpop.permute.xlu0 %1934
      %1936 = vset.pattern.permute.xlu0 0
      %1937 = vperm.xlu0 %1936, %v1826
      %v1938 = vpop.permute.xlu0 %1937
      %1939 = vset.pattern.permute.xlu0 0
      %1940 = vperm.xlu0 %1939, %v1828
      %v1941 = vpop.permute.xlu0 %1940
      %1942 = vset.pattern.permute.xlu0 0
      %1943 = vperm.xlu0 %1942, %v1830
      %v1944 = vpop.permute.xlu0 %1943
      %1945 = vset.pattern.permute.xlu0 0
      %1946 = vperm.xlu0 %1945, %v1832
      %v1947 = vpop.permute.xlu0 %1946
      %1948 = vset.pattern.permute.xlu0 0
      %1949 = vperm.xlu0 %1948, %v1834
      %v1950 = vpop.permute.xlu0 %1949
      %1951 = vset.pattern.permute.xlu0 0
      %1952 = vperm.xlu0 %1951, %v1836
      %v1953 = vpop.permute.xlu0 %1952
      %1954 = vset.pattern.permute.xlu0 0
      %1955 = vperm.xlu0 %1954, %v1838
      %v1956 = vpop.permute.xlu0 %1955
      %1957 = vset.pattern.permute.xlu0 0
      %1958 = vperm.xlu0 %1957, %v1840
      %v1959 = vpop.permute.xlu0 %1958
      %1960 = vset.pattern.permute.xlu0 0
      %1961 = vperm.xlu0 %1960, %v1842
      %v1962 = vpop.permute.xlu0 %1961
      %1963 = vset.pattern.permute.xlu0 0
      %1964 = vperm.xlu0 %1963, %v1844
      %v1965 = vpop.permute.xlu0 %1964
      %1966 = vset.pattern.permute.xlu0 0
      %1967 = vperm.xlu0 %1966, %v1846
      %v1968 = vpop.permute.xlu0 %1967
      %1969 = vset.pattern.permute.xlu0 0
      %1970 = vperm.xlu0 %1969, %v1848
      %v1971 = vpop.permute.xlu0 %1970
      %1972 = vset.pattern.permute.xlu0 0
      %1973 = vperm.xlu0 %1972, %v1850
      %v1974 = vpop.permute.xlu0 %1973
      %1975 = vset.pattern.permute.xlu0 0
      %1976 = vperm.xlu0 %1975, %v1852
      %v1977 = vpop.permute.xlu0 %1976
      %1978 = vset.pattern.permute.xlu0 0
      %1979 = vperm.xlu0 %1978, %v1854
      %v1980 = vpop.permute.xlu0 %1979
      %1981 = vset.pattern.permute.xlu0 0
      %1982 = vperm.xlu0 %1981, %v1856
      %v1983 = vpop.permute.xlu0 %1982
      %1984 = vset.pattern.permute.xlu0 0
      %1985 = vperm.xlu0 %1984, %v1858
      %v1986 = vpop.permute.xlu0 %1985
      %v1987 = vperm.slane %v1893, %v760
      %v1988 = vperm.slane %v1896, %v1661
      %v1989 = vsel %vm1663, %v1988, %v1987
      %v1990 = vperm.slane %v1899, %v1665
      %v1991 = vsel %vm1667, %v1990, %v1989
      %v1992 = vperm.slane %v1902, %v1669
      %v1993 = vsel %vm1671, %v1992, %v1991
      %v1994 = vperm.slane %v1905, %v1673
      %v1995 = vsel %vm1675, %v1994, %v1993
      %v1996 = vperm.slane %v1908, %v1677
      %v1997 = vsel %vm1679, %v1996, %v1995
      %v1998 = vperm.slane %v1911, %v1681
      %v1999 = vsel %vm1683, %v1998, %v1997
      %v2000 = vperm.slane %v1914, %v1685
      %v2001 = vsel %vm1687, %v2000, %v1999
      %v2002 = vperm.slane %v1917, %v1689
      %v2003 = vsel %vm1691, %v2002, %v2001
      %v2004 = vperm.slane %v1920, %v1693
      %v2005 = vsel %vm1695, %v2004, %v2003
      %v2006 = vperm.slane %v1923, %v1697
      %v2007 = vsel %vm1699, %v2006, %v2005
      %v2008 = vperm.slane %v1926, %v1701
      %v2009 = vsel %vm1703, %v2008, %v2007
      %v2010 = vperm.slane %v1929, %v1705
      %v2011 = vsel %vm1707, %v2010, %v2009
      %v2012 = vperm.slane %v1932, %v1709
      %v2013 = vsel %vm1711, %v2012, %v2011
      %v2014 = vperm.slane %v1935, %v1713
      %v2015 = vsel %vm1715, %v2014, %v2013
      %v2016 = vperm.slane %v1938, %v1717
      %v2017 = vsel %vm1719, %v2016, %v2015
      %v2018 = vperm.slane %v1941, %v760
      %v2019 = vperm.slane %v1944, %v1661
      %v2020 = vsel %vm1663, %v2019, %v2018
      %v2021 = vperm.slane %v1947, %v1665
      %v2022 = vsel %vm1667, %v2021, %v2020
      %v2023 = vperm.slane %v1950, %v1669
      %v2024 = vsel %vm1671, %v2023, %v2022
      %v2025 = vperm.slane %v1953, %v1673
      %v2026 = vsel %vm1675, %v2025, %v2024
      %v2027 = vperm.slane %v1956, %v1677
      %v2028 = vsel %vm1679, %v2027, %v2026
      %v2029 = vperm.slane %v1959, %v1681
      %v2030 = vsel %vm1683, %v2029, %v2028
      %v2031 = vperm.slane %v1962, %v1685
      %v2032 = vsel %vm1687, %v2031, %v2030
      %v2033 = vperm.slane %v1965, %v1689
      %v2034 = vsel %vm1691, %v2033, %v2032
      %v2035 = vperm.slane %v1968, %v1693
      %v2036 = vsel %vm1695, %v2035, %v2034
      %v2037 = vperm.slane %v1971, %v1697
      %v2038 = vsel %vm1699, %v2037, %v2036
      %v2039 = vperm.slane %v1974, %v1701
      %v2040 = vsel %vm1703, %v2039, %v2038
      %v2041 = vperm.slane %v1977, %v1705
      %v2042 = vsel %vm1707, %v2041, %v2040
      %v2043 = vperm.slane %v1980, %v1709
      %v2044 = vsel %vm1711, %v2043, %v2042
      %v2045 = vperm.slane %v1983, %v1713
      %v2046 = vsel %vm1715, %v2045, %v2044
      %v2047 = vperm.slane %v1986, %v1717
      %v2048 = vsel %vm1719, %v2047, %v2046
      %v2049 = vsel %vm763, %v2048, %v2017
      %v2051 = vsel %vm1754, %v2049, 0.0
      %2052 = vadd.xlane.f32.xlu0 %v2051
      %v2053 = vpop.xlane.xlu0 %2052
      %v2055 = vperm.slane %v2053, 0
      %v2056 = vperm.slane %v2053, 1
      %v2059 = vrcp.pop %v2055
      %v2060 = vmul.f32 %v2055, %v2059
      %v2061 = vsub.f32 1.0, %v2060
      %v2062 = vmul.f32 %v2059, %v2061
      %v2063 = vadd.f32 %v2059, %v2062
      %vm2064 = vweird.f32 %v2055
      %vm2065 = vweird.f32 %v2059
      %vm2066 = vmor %vm2064, %vm2065
      %v2067 = vsel %vm2066, %v2059, %v2063
      %v2068 = vand.u32 2147483647, %v2055
      %vm2069 = vcmp.eq.f32.partialorder %v2068, 8.507059e+37
      %v2070 = vand.u32 %v2055, 2147483648
      %v2071 = vor.u32 1.1754944e-38, %v2070
      %v2072 = vsel %vm2069, %v2071, %v2067
      %v2073 = vmul.f32 %v1796, %v2072
      %v2074 = vmul.f32 %v1798, %v2072
      %v2075 = vmul.f32 %v1800, %v2072
      %v2076 = vmul.f32 %v1802, %v2072
      %v2077 = vmul.f32 %v1804, %v2072
      %v2078 = vmul.f32 %v1806, %v2072
      %v2079 = vmul.f32 %v1808, %v2072
      %v2080 = vmul.f32 %v1810, %v2072
      %v2081 = vmul.f32 %v1812, %v2072
      %v2082 = vmul.f32 %v1814, %v2072
      %v2083 = vmul.f32 %v1816, %v2072
      %v2084 = vmul.f32 %v1818, %v2072
      %v2085 = vmul.f32 %v1820, %v2072
      %v2086 = vmul.f32 %v1822, %v2072
      %v2087 = vmul.f32 %v1824, %v2072
      %v2088 = vmul.f32 %v1826, %v2072
      %v2089 = vrcp.pop %v2056
      %v2090 = vmul.f32 %v2056, %v2089
      %v2091 = vsub.f32 1.0, %v2090
      %v2092 = vmul.f32 %v2089, %v2091
      %v2093 = vadd.f32 %v2089, %v2092
      %vm2094 = vweird.f32 %v2056
      %vm2095 = vweird.f32 %v2089
      %vm2096 = vmor %vm2094, %vm2095
      %v2097 = vsel %vm2096, %v2089, %v2093
      %v2098 = vand.u32 2147483647, %v2056
      %vm2099 = vcmp.eq.f32.partialorder %v2098, 8.507059e+37
      %v2100 = vand.u32 %v2056, 2147483648
      %v2101 = vor.u32 1.1754944e-38, %v2100
      %v2102 = vsel %vm2099, %v2101, %v2097
      %v2103 = vmul.f32 %v1828, %v2102
      %v2104 = vmul.f32 %v1830, %v2102
      %v2105 = vmul.f32 %v1832, %v2102
      %v2106 = vmul.f32 %v1834, %v2102
      %v2107 = vmul.f32 %v1836, %v2102
      %v2108 = vmul.f32 %v1838, %v2102
      %v2109 = vmul.f32 %v1840, %v2102
      %v2110 = vmul.f32 %v1842, %v2102
      %v2111 = vmul.f32 %v1844, %v2102
      %v2112 = vmul.f32 %v1846, %v2102
      %v2113 = vmul.f32 %v1848, %v2102
      %v2114 = vmul.f32 %v1850, %v2102
      %v2115 = vmul.f32 %v1852, %v2102
      %v2116 = vmul.f32 %v1854, %v2102
      %v2117 = vmul.f32 %v1856, %v2102
      %v2118 = vmul.f32 %v1858, %v2102
      %v2119 = vpack.c.bf16 %v2073, %v2073
      %v2120 = vpack.c.bf16 %v2074, %v2074
      %v2121 = vpack.c.bf16 %v2075, %v2075
      %v2122 = vpack.c.bf16 %v2076, %v2076
      %v2123 = vpack.c.bf16 %v2077, %v2077
      %v2124 = vpack.c.bf16 %v2078, %v2078
      %v2125 = vpack.c.bf16 %v2079, %v2079
      %v2126 = vpack.c.bf16 %v2080, %v2080
      %v2127 = vpack.c.bf16 %v2081, %v2081
      %v2128 = vpack.c.bf16 %v2082, %v2082
      %v2129 = vpack.c.bf16 %v2083, %v2083
      %v2130 = vpack.c.bf16 %v2084, %v2084
      %v2131 = vpack.c.bf16 %v2085, %v2085
      %v2132 = vpack.c.bf16 %v2086, %v2086
      %v2133 = vpack.c.bf16 %v2087, %v2087
      %v2134 = vpack.c.bf16 %v2088, %v2088
      %v2135 = vpack.c.bf16 %v2103, %v2103
      %v2136 = vpack.c.bf16 %v2104, %v2104
      %v2137 = vpack.c.bf16 %v2105, %v2105
      %v2138 = vpack.c.bf16 %v2106, %v2106
      %v2139 = vpack.c.bf16 %v2107, %v2107
      %v2140 = vpack.c.bf16 %v2108, %v2108
      %v2141 = vpack.c.bf16 %v2109, %v2109
      %v2142 = vpack.c.bf16 %v2110, %v2110
      %v2143 = vpack.c.bf16 %v2111, %v2111
      %v2144 = vpack.c.bf16 %v2112, %v2112
      %v2145 = vpack.c.bf16 %v2113, %v2113
      %v2146 = vpack.c.bf16 %v2114, %v2114
      %v2147 = vpack.c.bf16 %v2115, %v2115
      %v2148 = vpack.c.bf16 %v2116, %v2116
      %v2149 = vpack.c.bf16 %v2117, %v2117
      %v2150 = vpack.c.bf16 %v2118, %v2118
      %v2151 = vld [vmem:[%s5] sm:$0xf]
      %v2152 = vld [vmem:[%s5 + $0x4] sm:$0xf]
      %v2153 = vld [vmem:[%s5 + $0x8] sm:$0xf]
      %v2154 = vld [vmem:[%s5 + $0xc] sm:$0xf]
      %v2155 = vld [vmem:[%s5 + $0x10] sm:$0xf]
      %v2156 = vld [vmem:[%s5 + $0x14] sm:$0xf]
      %v2157 = vld [vmem:[%s5 + $0x18] sm:$0xf]
      %v2158 = vld [vmem:[%s5 + $0x1c] sm:$0xf]
      %v2159 = vld [vmem:[%s5 + $0x20] sm:$0xf]
      %v2160 = vld [vmem:[%s5 + $0x24] sm:$0xf]
      %v2161 = vld [vmem:[%s5 + $0x28] sm:$0xf]
      %v2162 = vld [vmem:[%s5 + $0x2c] sm:$0xf]
      %v2163 = vld [vmem:[%s5 + $0x30] sm:$0xf]
      %v2164 = vld [vmem:[%s5 + $0x34] sm:$0xf]
      %v2165 = vld [vmem:[%s5 + $0x38] sm:$0xf]
      %v2166 = vld [vmem:[%s5 + $0x3c] sm:$0xf]
      %v2167 = vld [vmem:[%s5 + $0x40] sm:$0xf]
      %v2168 = vld [vmem:[%s5 + $0x44] sm:$0xf]
      %v2169 = vld [vmem:[%s5 + $0x48] sm:$0xf]
      %v2170 = vld [vmem:[%s5 + $0x4c] sm:$0xf]
      %v2171 = vld [vmem:[%s5 + $0x50] sm:$0xf]
      %v2172 = vld [vmem:[%s5 + $0x54] sm:$0xf]
      %v2173 = vld [vmem:[%s5 + $0x58] sm:$0xf]
      %v2174 = vld [vmem:[%s5 + $0x5c] sm:$0xf]
      %v2175 = vld [vmem:[%s5 + $0x60] sm:$0xf]
      %v2176 = vld [vmem:[%s5 + $0x64] sm:$0xf]
      %v2177 = vld [vmem:[%s5 + $0x68] sm:$0xf]
      %v2178 = vld [vmem:[%s5 + $0x6c] sm:$0xf]
      %v2179 = vld [vmem:[%s5 + $0x70] sm:$0xf]
      %v2180 = vld [vmem:[%s5 + $0x74] sm:$0xf]
      %v2181 = vld [vmem:[%s5 + $0x78] sm:$0xf]
      %v2182 = vld [vmem:[%s5 + $0x7c] sm:$0xf]
      %v2199 = vunpack.c.l.b16 %v2119
      %v2200 = vunpack.c.l.b16 %v2120
      %v2201 = vunpack.c.l.b16 %v2121
      %v2202 = vunpack.c.l.b16 %v2122
      %v2203 = vunpack.c.l.b16 %v2123
      %v2204 = vunpack.c.l.b16 %v2124
      %v2205 = vunpack.c.l.b16 %v2125
      %v2206 = vunpack.c.l.b16 %v2126
      %v2207 = vunpack.c.l.b16 %v2127
      %v2208 = vunpack.c.l.b16 %v2128
      %v2209 = vunpack.c.l.b16 %v2129
      %v2210 = vunpack.c.l.b16 %v2130
      %v2211 = vunpack.c.l.b16 %v2131
      %v2212 = vunpack.c.l.b16 %v2132
      %v2213 = vunpack.c.l.b16 %v2133
      %v2214 = vunpack.c.l.b16 %v2134
      %v2215 = vpack.c.b16 %v2200, %v2199
      %v2216 = vpack.c.b16 %v2202, %v2201
      %v2217 = vpack.c.b16 %v2204, %v2203
      %v2218 = vpack.c.b16 %v2206, %v2205
      %v2219 = vpack.c.b16 %v2208, %v2207
      %v2220 = vpack.c.b16 %v2210, %v2209
      %v2221 = vpack.c.b16 %v2212, %v2211
      %v2222 = vpack.c.b16 %v2214, %v2213
      %v2223 = vunpack.c.l.b16 %v2215
      %v2224 = vunpack.c.h.b16 %v2215
      %v2225 = vunpack.c.l.b16 %v2216
      %v2226 = vunpack.c.h.b16 %v2216
      %v2227 = vunpack.c.l.b16 %v2217
      %v2228 = vunpack.c.h.b16 %v2217
      %v2229 = vunpack.c.l.b16 %v2218
      %v2230 = vunpack.c.h.b16 %v2218
      %v2231 = vunpack.c.l.b16 %v2219
      %v2232 = vunpack.c.h.b16 %v2219
      %v2233 = vunpack.c.l.b16 %v2220
      %v2234 = vunpack.c.h.b16 %v2220
      %v2235 = vunpack.c.l.b16 %v2221
      %v2236 = vunpack.c.h.b16 %v2221
      %v2237 = vunpack.c.l.b16 %v2222
      %v2238 = vunpack.c.h.b16 %v2222
      %2239 = vset.pattern.permute.xlu0 0
      %2240 = vperm.xlu0 %2239, %v2223
      %v2241 = vpop.permute.xlu0 %2240
      %2242 = vset.pattern.permute.xlu0 0
      %2243 = vperm.xlu0 %2242, %v2224
      %v2244 = vpop.permute.xlu0 %2243
      %2245 = vset.pattern.permute.xlu0 0
      %2246 = vperm.xlu0 %2245, %v2225
      %v2247 = vpop.permute.xlu0 %2246
      %2248 = vset.pattern.permute.xlu0 0
      %2249 = vperm.xlu0 %2248, %v2226
      %v2250 = vpop.permute.xlu0 %2249
      %2251 = vset.pattern.permute.xlu0 0
      %2252 = vperm.xlu0 %2251, %v2227
      %v2253 = vpop.permute.xlu0 %2252
      %2254 = vset.pattern.permute.xlu0 0
      %2255 = vperm.xlu0 %2254, %v2228
      %v2256 = vpop.permute.xlu0 %2255
      %2257 = vset.pattern.permute.xlu0 0
      %2258 = vperm.xlu0 %2257, %v2229
      %v2259 = vpop.permute.xlu0 %2258
      %2260 = vset.pattern.permute.xlu0 0
      %2261 = vperm.xlu0 %2260, %v2230
      %v2262 = vpop.permute.xlu0 %2261
      %2263 = vset.pattern.permute.xlu0 0
      %2264 = vperm.xlu0 %2263, %v2231
      %v2265 = vpop.permute.xlu0 %2264
      %2266 = vset.pattern.permute.xlu0 0
      %2267 = vperm.xlu0 %2266, %v2232
      %v2268 = vpop.permute.xlu0 %2267
      %2269 = vset.pattern.permute.xlu0 0
      %2270 = vperm.xlu0 %2269, %v2233
      %v2271 = vpop.permute.xlu0 %2270
      %2272 = vset.pattern.permute.xlu0 0
      %2273 = vperm.xlu0 %2272, %v2234
      %v2274 = vpop.permute.xlu0 %2273
      %2275 = vset.pattern.permute.xlu0 0
      %2276 = vperm.xlu0 %2275, %v2235
      %v2277 = vpop.permute.xlu0 %2276
      %2278 = vset.pattern.permute.xlu0 0
      %2279 = vperm.xlu0 %2278, %v2236
      %v2280 = vpop.permute.xlu0 %2279
      %2281 = vset.pattern.permute.xlu0 0
      %2282 = vperm.xlu0 %2281, %v2237
      %v2283 = vpop.permute.xlu0 %2282
      %2284 = vset.pattern.permute.xlu0 0
      %2285 = vperm.xlu0 %2284, %v2238
      %v2286 = vpop.permute.xlu0 %2285
      %v2287 = vperm.slane %v2241, %v760
      %v2288 = vperm.slane %v2244, %v1661
      %v2289 = vsel %vm1663, %v2288, %v2287
      %v2290 = vperm.slane %v2247, %v1665
      %v2291 = vsel %vm1667, %v2290, %v2289
      %v2292 = vperm.slane %v2250, %v1669
      %v2293 = vsel %vm1671, %v2292, %v2291
      %v2294 = vperm.slane %v2253, %v1673
      %v2295 = vsel %vm1675, %v2294, %v2293
      %v2296 = vperm.slane %v2256, %v1677
      %v2297 = vsel %vm1679, %v2296, %v2295
      %v2298 = vperm.slane %v2259, %v1681
      %v2299 = vsel %vm1683, %v2298, %v2297
      %v2300 = vperm.slane %v2262, %v1685
      %v2301 = vsel %vm1687, %v2300, %v2299
      %v2302 = vperm.slane %v2265, %v1689
      %v2303 = vsel %vm1691, %v2302, %v2301
      %v2304 = vperm.slane %v2268, %v1693
      %v2305 = vsel %vm1695, %v2304, %v2303
      %v2306 = vperm.slane %v2271, %v1697
      %v2307 = vsel %vm1699, %v2306, %v2305
      %v2308 = vperm.slane %v2274, %v1701
      %v2309 = vsel %vm1703, %v2308, %v2307
      %v2310 = vperm.slane %v2277, %v1705
      %v2311 = vsel %vm1707, %v2310, %v2309
      %v2312 = vperm.slane %v2280, %v1709
      %v2313 = vsel %vm1711, %v2312, %v2311
      %v2314 = vperm.slane %v2283, %v1713
      %v2315 = vsel %vm1715, %v2314, %v2313
      %v2316 = vperm.slane %v2286, %v1717
      %v2317 = vsel %vm1719, %v2316, %v2315
      %v2318 = vpack.c.b16 %v2317, %v2317
      %v2336 = vunpack.c.l.b16 %v2151
      %v2337 = vunpack.c.l.b16 %v2152
      %v2338 = vunpack.c.l.b16 %v2153
      %v2339 = vunpack.c.l.b16 %v2154
      %v2340 = vunpack.c.l.b16 %v2155
      %v2341 = vunpack.c.l.b16 %v2156
      %v2342 = vunpack.c.l.b16 %v2157
      %v2343 = vunpack.c.l.b16 %v2158
      %v2344 = vunpack.c.l.b16 %v2159
      %v2345 = vunpack.c.l.b16 %v2160
      %v2346 = vunpack.c.l.b16 %v2161
      %v2347 = vunpack.c.l.b16 %v2162
      %v2348 = vunpack.c.l.b16 %v2163
      %v2349 = vunpack.c.l.b16 %v2164
      %v2350 = vunpack.c.l.b16 %v2165
      %v2351 = vunpack.c.l.b16 %v2166
      %v2352 = vpack.c.b16 %v2337, %v2336
      %v2353 = vpack.c.b16 %v2339, %v2338
      %v2354 = vpack.c.b16 %v2341, %v2340
      %v2355 = vpack.c.b16 %v2343, %v2342
      %v2356 = vpack.c.b16 %v2345, %v2344
      %v2357 = vpack.c.b16 %v2347, %v2346
      %v2358 = vpack.c.b16 %v2349, %v2348
      %v2359 = vpack.c.b16 %v2351, %v2350
      %2368 = vmatpush.bf16.msra.mxu0 %v2359
      %2369 = vmatpush.bf16.msra.mxu0 %v2358
      %2370 = vmatpush.bf16.msra.mxu0 %v2357
      %2371 = vmatpush.bf16.msra.mxu0 %v2356
      %2372 = vmatpush.bf16.msra.mxu0 %v2355
      %2373 = vmatpush.bf16.msra.mxu0 %v2354
      %2374 = vmatpush.bf16.msra.mxu0 %v2353
      %2375 = vmatpush.bf16.msra.mxu0 %v2352
      %2376 = vmatmul.bf16.gmra.mxu0 %v2318
      %v2377 = vpop.f32.mrf.mxu0
      %v2378 = vadd.f32 0.0, %v2377
      %v2379 = vpop.f32.mrf.mxu0
      %2380 = vdwg.mxu0
      %v2397 = vunpack.c.l.b16 %v2135
      %v2398 = vunpack.c.l.b16 %v2136
      %v2399 = vunpack.c.l.b16 %v2137
      %v2400 = vunpack.c.l.b16 %v2138
      %v2401 = vunpack.c.l.b16 %v2139
      %v2402 = vunpack.c.l.b16 %v2140
      %v2403 = vunpack.c.l.b16 %v2141
      %v2404 = vunpack.c.l.b16 %v2142
      %v2405 = vunpack.c.l.b16 %v2143
      %v2406 = vunpack.c.l.b16 %v2144
      %v2407 = vunpack.c.l.b16 %v2145
      %v2408 = vunpack.c.l.b16 %v2146
      %v2409 = vunpack.c.l.b16 %v2147
      %v2410 = vunpack.c.l.b16 %v2148
      %v2411 = vunpack.c.l.b16 %v2149
      %v2412 = vunpack.c.l.b16 %v2150
      %v2413 = vpack.c.b16 %v2398, %v2397
      %v2414 = vpack.c.b16 %v2400, %v2399
      %v2415 = vpack.c.b16 %v2402, %v2401
      %v2416 = vpack.c.b16 %v2404, %v2403
      %v2417 = vpack.c.b16 %v2406, %v2405
      %v2418 = vpack.c.b16 %v2408, %v2407
      %v2419 = vpack.c.b16 %v2410, %v2409
      %v2420 = vpack.c.b16 %v2412, %v2411
      %v2421 = vunpack.c.l.b16 %v2413
      %v2422 = vunpack.c.h.b16 %v2413
      %v2423 = vunpack.c.l.b16 %v2414
      %v2424 = vunpack.c.h.b16 %v2414
      %v2425 = vunpack.c.l.b16 %v2415
      %v2426 = vunpack.c.h.b16 %v2415
      %v2427 = vunpack.c.l.b16 %v2416
      %v2428 = vunpack.c.h.b16 %v2416
      %v2429 = vunpack.c.l.b16 %v2417
      %v2430 = vunpack.c.h.b16 %v2417
      %v2431 = vunpack.c.l.b16 %v2418
      %v2432 = vunpack.c.h.b16 %v2418
      %v2433 = vunpack.c.l.b16 %v2419
      %v2434 = vunpack.c.h.b16 %v2419
      %v2435 = vunpack.c.l.b16 %v2420
      %v2436 = vunpack.c.h.b16 %v2420
      %2437 = vset.pattern.permute.xlu0 0
      %2438 = vperm.xlu0 %2437, %v2421
      %v2439 = vpop.permute.xlu0 %2438
      %2440 = vset.pattern.permute.xlu0 0
      %2441 = vperm.xlu0 %2440, %v2422
      %v2442 = vpop.permute.xlu0 %2441
      %2443 = vset.pattern.permute.xlu0 0
      %2444 = vperm.xlu0 %2443, %v2423
      %v2445 = vpop.permute.xlu0 %2444
      %2446 = vset.pattern.permute.xlu0 0
      %2447 = vperm.xlu0 %2446, %v2424
      %v2448 = vpop.permute.xlu0 %2447
      %2449 = vset.pattern.permute.xlu0 0
      %2450 = vperm.xlu0 %2449, %v2425
      %v2451 = vpop.permute.xlu0 %2450
      %2452 = vset.pattern.permute.xlu0 0
      %2453 = vperm.xlu0 %2452, %v2426
      %v2454 = vpop.permute.xlu0 %2453
      %2455 = vset.pattern.permute.xlu0 0
      %2456 = vperm.xlu0 %2455, %v2427
      %v2457 = vpop.permute.xlu0 %2456
      %2458 = vset.pattern.permute.xlu0 0
      %2459 = vperm.xlu0 %2458, %v2428
      %v2460 = vpop.permute.xlu0 %2459
      %2461 = vset.pattern.permute.xlu0 0
      %2462 = vperm.xlu0 %2461, %v2429
      %v2463 = vpop.permute.xlu0 %2462
      %2464 = vset.pattern.permute.xlu0 0
      %2465 = vperm.xlu0 %2464, %v2430
      %v2466 = vpop.permute.xlu0 %2465
      %2467 = vset.pattern.permute.xlu0 0
      %2468 = vperm.xlu0 %2467, %v2431
      %v2469 = vpop.permute.xlu0 %2468
      %2470 = vset.pattern.permute.xlu0 0
      %2471 = vperm.xlu0 %2470, %v2432
      %v2472 = vpop.permute.xlu0 %2471
      %2473 = vset.pattern.permute.xlu0 0
      %2474 = vperm.xlu0 %2473, %v2433
      %v2475 = vpop.permute.xlu0 %2474
      %2476 = vset.pattern.permute.xlu0 0
      %2477 = vperm.xlu0 %2476, %v2434
      %v2478 = vpop.permute.xlu0 %2477
      %2479 = vset.pattern.permute.xlu0 0
      %2480 = vperm.xlu0 %2479, %v2435
      %v2481 = vpop.permute.xlu0 %2480
      %2482 = vset.pattern.permute.xlu0 0
      %2483 = vperm.xlu0 %2482, %v2436
      %v2484 = vpop.permute.xlu0 %2483
      %v2485 = vperm.slane %v2439, %v760
      %v2486 = vperm.slane %v2442, %v1661
      %v2487 = vsel %vm1663, %v2486, %v2485
      %v2488 = vperm.slane %v2445, %v1665
      %v2489 = vsel %vm1667, %v2488, %v2487
      %v2490 = vperm.slane %v2448, %v1669
      %v2491 = vsel %vm1671, %v2490, %v2489
      %v2492 = vperm.slane %v2451, %v1673
      %v2493 = vsel %vm1675, %v2492, %v2491
      %v2494 = vperm.slane %v2454, %v1677
      %v2495 = vsel %vm1679, %v2494, %v2493
      %v2496 = vperm.slane %v2457, %v1681
      %v2497 = vsel %vm1683, %v2496, %v2495
      %v2498 = vperm.slane %v2460, %v1685
      %v2499 = vsel %vm1687, %v2498, %v2497
      %v2500 = vperm.slane %v2463, %v1689
      %v2501 = vsel %vm1691, %v2500, %v2499
      %v2502 = vperm.slane %v2466, %v1693
      %v2503 = vsel %vm1695, %v2502, %v2501
      %v2504 = vperm.slane %v2469, %v1697
      %v2505 = vsel %vm1699, %v2504, %v2503
      %v2506 = vperm.slane %v2472, %v1701
      %v2507 = vsel %vm1703, %v2506, %v2505
      %v2508 = vperm.slane %v2475, %v1705
      %v2509 = vsel %vm1707, %v2508, %v2507
      %v2510 = vperm.slane %v2478, %v1709
      %v2511 = vsel %vm1711, %v2510, %v2509
      %v2512 = vperm.slane %v2481, %v1713
      %v2513 = vsel %vm1715, %v2512, %v2511
      %v2514 = vperm.slane %v2484, %v1717
      %v2515 = vsel %vm1719, %v2514, %v2513
      %v2516 = vpack.c.b16 %v2515, %v2515
      %v2534 = vunpack.c.l.b16 %v2167
      %v2535 = vunpack.c.l.b16 %v2168
      %v2536 = vunpack.c.l.b16 %v2169
      %v2537 = vunpack.c.l.b16 %v2170
      %v2538 = vunpack.c.l.b16 %v2171
      %v2539 = vunpack.c.l.b16 %v2172
      %v2540 = vunpack.c.l.b16 %v2173
      %v2541 = vunpack.c.l.b16 %v2174
      %v2542 = vunpack.c.l.b16 %v2175
      %v2543 = vunpack.c.l.b16 %v2176
      %v2544 = vunpack.c.l.b16 %v2177
      %v2545 = vunpack.c.l.b16 %v2178
      %v2546 = vunpack.c.l.b16 %v2179
      %v2547 = vunpack.c.l.b16 %v2180
      %v2548 = vunpack.c.l.b16 %v2181
      %v2549 = vunpack.c.l.b16 %v2182
      %v2550 = vpack.c.b16 %v2535, %v2534
      %v2551 = vpack.c.b16 %v2537, %v2536
      %v2552 = vpack.c.b16 %v2539, %v2538
      %v2553 = vpack.c.b16 %v2541, %v2540
      %v2554 = vpack.c.b16 %v2543, %v2542
      %v2555 = vpack.c.b16 %v2545, %v2544
      %v2556 = vpack.c.b16 %v2547, %v2546
      %v2557 = vpack.c.b16 %v2549, %v2548
      %2566 = vmatpush.bf16.msra.mxu0 %v2557
      %2567 = vmatpush.bf16.msra.mxu0 %v2556
      %2568 = vmatpush.bf16.msra.mxu0 %v2555
      %2569 = vmatpush.bf16.msra.mxu0 %v2554
      %2570 = vmatpush.bf16.msra.mxu0 %v2553
      %2571 = vmatpush.bf16.msra.mxu0 %v2552
      %2572 = vmatpush.bf16.msra.mxu0 %v2551
      %2573 = vmatpush.bf16.msra.mxu0 %v2550
      %2574 = vmatmul.bf16.gmra.mxu0 %v2516
      %v2575 = vpop.f32.mrf.mxu0
      %v2576 = vadd.f32 0.0, %v2575
      %v2577 = vpop.f32.mrf.mxu0
      %2578 = vdwg.mxu0
      %v2579 = vpack.c.bf16 %v835, %v835
      %v2580 = vpack.c.bf16 %v863, %v863
      %v2581 = vld [vmem:[%s11] sm:$0xf]
      %v2582 = vld [vmem:[%s11 + $0x4] sm:$0xf]
      %v2583 = vld [vmem:[%s11 + $0x8] sm:$0xf]
      %v2584 = vld [vmem:[%s11 + $0xc] sm:$0xf]
      %v2585 = vld [vmem:[%s11 + $0x10] sm:$0xf]
      %v2586 = vld [vmem:[%s11 + $0x14] sm:$0xf]
      %v2587 = vld [vmem:[%s11 + $0x18] sm:$0xf]
      %v2588 = vld [vmem:[%s11 + $0x1c] sm:$0xf]
      %v2591 = vunpack.c.l.b16 %v2579
      %v2592 = vunpack.c.l.b16 %v2580
      %v2593 = vrot.slane %v2592, 7
      %v2594 = vsel %vm763, %v2593, %v2591
      %v2595 = vpack.c.b16 %v2594, %v2594
      %v2604 = vunpack.c.l.b16 %v2581
      %v2605 = vunpack.c.l.b16 %v2582
      %v2606 = vunpack.c.l.b16 %v2583
      %v2607 = vunpack.c.l.b16 %v2584
      %v2608 = vunpack.c.l.b16 %v2585
      %v2609 = vunpack.c.l.b16 %v2586
      %v2610 = vunpack.c.l.b16 %v2587
      %v2611 = vunpack.c.l.b16 %v2588
      %v2612 = vpack.c.b16 %v2605, %v2604
      %v2613 = vpack.c.b16 %v2607, %v2606
      %v2614 = vpack.c.b16 %v2609, %v2608
      %v2615 = vpack.c.b16 %v2611, %v2610
      %vm2620 = vcmask 523264
      %v2622 = vsel %vm2620, %v2595, 0
      %2624 = vmatpush.bf16.msra.mxu0 0
      %2625 = vmatpush.bf16.msra.mxu0 0
      %2626 = vmatpush.bf16.msra.mxu0 0
      %2627 = vmatpush.bf16.msra.mxu0 0
      %2628 = vmatpush.bf16.msra.mxu0 %v2615
      %2629 = vmatpush.bf16.msra.mxu0 %v2614
      %2630 = vmatpush.bf16.msra.mxu0 %v2613
      %2631 = vmatpush.bf16.msra.mxu0 %v2612
      %2632 = vmatmul.bf16.gmra.mxu0 %v2622
      %v2633 = vpop.f32.mrf.mxu0
      %v2634 = vadd.f32 0.0, %v2633
      %v2635 = vpop.f32.mrf.mxu0
      %2636 = vdwg.mxu0
      %2638 = vrot.lane.b32.xlu0 %v2634, 64
      %v2639 = vpop.permute.xlu0 %2638
      %v2641 = vadd.f32 %v703, %v2639
      %v2642 = vpack.c.bf16 %v2378, %v2378
      %v2643 = vpack.c.bf16 %v2576, %v2576
      %v2644 = vld [vmem:[%s12] sm:$0xf]
      %v2645 = vld [vmem:[%s12 + $0x4] sm:$0xf]
      %v2648 = vunpack.c.l.b16 %v2642
      %v2649 = vunpack.c.l.b16 %v2643
      %v2650 = vrot.slane %v2649, 7
      %v2651 = vsel %vm763, %v2650, %v2648
      %v2652 = vpack.c.b16 %v2651, %v2651
      %v2655 = vunpack.c.l.b16 %v2644
      %v2656 = vunpack.c.l.b16 %v2645
      %v2657 = vpack.c.b16 %v2656, %v2655
      %vm2659 = vcmask 130048
      %v2661 = vsel %vm2659, %v2652, 0
      %2663 = vmatpush.bf16.msra.mxu0 0
      %2664 = vmatpush.bf16.msra.mxu0 0
      %2665 = vmatpush.bf16.msra.mxu0 0
      %2666 = vmatpush.bf16.msra.mxu0 0
      %2667 = vmatpush.bf16.msra.mxu0 0
      %2668 = vmatpush.bf16.msra.mxu0 0
      %2669 = vmatpush.bf16.msra.mxu0 0
      %2670 = vmatpush.bf16.msra.mxu0 %v2657
      %2671 = vmatmul.bf16.gmra.mxu0 %v2661
      %v2672 = vpop.f32.mrf.mxu0
      %v2673 = vadd.f32 0.0, %v2672
      %v2674 = vpop.f32.mrf.mxu0
      %2675 = vdwg.mxu0
      %2677 = vrot.lane.b32.xlu0 %v2673, 64
      %v2678 = vpop.permute.xlu0 %2677
      %v2680 = vadd.f32 %v2641, %v2678
      %v2681 = vld [vmem:[%s13] sm:$0x3]
      %2683 = vrot.lane.b32.xlu0 %v2681, 64
      %v2684 = vpop.permute.xlu0 %2683
      %v2686 = vadd.f32 %v2680, %v2684
      %v2687 = vtanh.pop %v2686
      %v2688 = vxor.u32 %v2686, 2147483648
      %v2689 = vmul.f32 %v2688, 1.442695
      %v2690 = vpow.pop %v2689
      %v2691 = vadd.f32 %v2690, 1.0
      %v2692 = vrcp.pop %v2691
      %v2693 = vmul.f32 %v2691, %v2692
      %v2694 = vsub.f32 1.0, %v2693
      %v2695 = vmul.f32 %v2692, %v2694
      %v2696 = vadd.f32 %v2692, %v2695
      %vm2697 = vweird.f32 %v2691
      %vm2698 = vweird.f32 %v2692
      %vm2699 = vmor %vm2697, %vm2698
      %v2700 = vsel %vm2699, %v2692, %v2696
      %v2701 = vand.u32 2147483647, %v2691
      %vm2702 = vcmp.eq.f32.partialorder %v2701, 8.507059e+37
      %v2703 = vand.u32 %v2691, 2147483648
      %v2704 = vor.u32 1.1754944e-38, %v2703
      %v2705 = vsel %vm2702, %v2704, %v2700
      %v2706 = vmul.f32 1.0, %v2705
      %v2707 = vpack.c.bf16 %v2687, %v2687
      %v2708 = vld [vmem:[%s14] sm:$0xf]
      %v2709 = vld [vmem:[%s14 + $0x4] sm:$0xf]
      %v2710 = vld [vmem:[%s14 + $0x8] sm:$0xf]
      %v2711 = vld [vmem:[%s14 + $0xc] sm:$0xf]
      %v2712 = vld [vmem:[%s15] sm:$0x1]
      %v2714 = vperm.slane %v2712, 0
      %2717 = vrot.lane.b32.xlu0 %v2707, 64
      %v2718 = vpop.permute.xlu0 %2717
      %v2723 = vunpack.c.l.b16 %v2708
      %v2724 = vunpack.c.l.b16 %v2709
      %v2725 = vunpack.c.l.b16 %v2710
      %v2726 = vunpack.c.l.b16 %v2711
      %v2727 = vpack.c.b16 %v2724, %v2723
      %v2728 = vpack.c.b16 %v2726, %v2725
      %v2732 = vsel %vm604, %v2718, 0
      %2734 = vmatpush.bf16.msra.mxu0 0
      %2735 = vmatpush.bf16.msra.mxu0 0
      %2736 = vmatpush.bf16.msra.mxu0 0
      %2737 = vmatpush.bf16.msra.mxu0 0
      %2738 = vmatpush.bf16.msra.mxu0 0
      %2739 = vmatpush.bf16.msra.mxu0 0
      %2740 = vmatpush.bf16.msra.mxu0 %v2728
      %2741 = vmatpush.bf16.msra.mxu0 %v2727
      %2742 = vmatmul.bf16.gmra.mxu0 %v2732
      %v2743 = vpop.f32.mrf.mxu0
      %v2744 = vadd.f32 %v2714, %v2743
      %v2745 = vpop.f32.mrf.mxu0
      %2746 = vdwg.mxu0
      %v2747 = vsel %vm1754, %v2744, -inf
      %2748 = vmax.xlane.f32.xlu0 %v2747
      %v2749 = vpop.xlane.xlu0 %2748
      %v2750 = vsub.f32 %v2744, %v2749
      %v2751 = vmul.f32 %v2750, 1.442695
      %v2752 = vpow.pop %v2751
      %v2753 = vsel %vm1754, %v2752, 0.0
      %2754 = vadd.xlane.f32.xlu0 %v2753
      %v2755 = vpop.xlane.xlu0 %2754
      %v2756 = vrcp.pop %v2755
      %v2757 = vmul.f32 %v2755, %v2756
      %v2758 = vsub.f32 1.0, %v2757
      %v2759 = vmul.f32 %v2756, %v2758
      %v2760 = vadd.f32 %v2756, %v2759
      %vm2761 = vweird.f32 %v2755
      %vm2762 = vweird.f32 %v2756
      %vm2763 = vmor %vm2761, %vm2762
      %v2764 = vsel %vm2763, %v2756, %v2760
      %v2765 = vand.u32 2147483647, %v2755
      %vm2766 = vcmp.eq.f32.partialorder %v2765, 8.507059e+37
      %v2767 = vand.u32 %v2755, 2147483648
      %v2768 = vor.u32 1.1754944e-38, %v2767
      %v2769 = vsel %vm2766, %v2768, %v2764
      %v2770 = vmul.f32 %v2752, %v2769
      %v2771 = vsub.f32 1.0, %v2706
      %2773 = vset.pattern.permute.xlu0 96
      %2774 = vperm.xlu0 %2773, %v2771
      %v2775 = vpop.permute.xlu0 %2774
      %v2777 = vmul.f32 %v2775, %v2770
      %2779 = vset.pattern.permute.xlu0 96
      %2780 = vperm.xlu0 %2779, %v2706
      %v2781 = vpop.permute.xlu0 %2780
      %2815 = vset.pattern.permute.xlu0 0
      %2816 = vperm.xlu0 %2815, %v2073
      %v2817 = vpop.permute.xlu0 %2816
      %2818 = vset.pattern.permute.xlu0 0
      %2819 = vperm.xlu0 %2818, %v2074
      %v2820 = vpop.permute.xlu0 %2819
      %2821 = vset.pattern.permute.xlu0 0
      %2822 = vperm.xlu0 %2821, %v2075
      %v2823 = vpop.permute.xlu0 %2822
      %2824 = vset.pattern.permute.xlu0 0
      %2825 = vperm.xlu0 %2824, %v2076
      %v2826 = vpop.permute.xlu0 %2825
      %2827 = vset.pattern.permute.xlu0 0
      %2828 = vperm.xlu0 %2827, %v2077
      %v2829 = vpop.permute.xlu0 %2828
      %2830 = vset.pattern.permute.xlu0 0
      %2831 = vperm.xlu0 %2830, %v2078
      %v2832 = vpop.permute.xlu0 %2831
      %2833 = vset.pattern.permute.xlu0 0
      %2834 = vperm.xlu0 %2833, %v2079
      %v2835 = vpop.permute.xlu0 %2834
      %2836 = vset.pattern.permute.xlu0 0
      %2837 = vperm.xlu0 %2836, %v2080
      %v2838 = vpop.permute.xlu0 %2837
      %2839 = vset.pattern.permute.xlu0 0
      %2840 = vperm.xlu0 %2839, %v2081
      %v2841 = vpop.permute.xlu0 %2840
      %2842 = vset.pattern.permute.xlu0 0
      %2843 = vperm.xlu0 %2842, %v2082
      %v2844 = vpop.permute.xlu0 %2843
      %2845 = vset.pattern.permute.xlu0 0
      %2846 = vperm.xlu0 %2845, %v2083
      %v2847 = vpop.permute.xlu0 %2846
      %2848 = vset.pattern.permute.xlu0 0
      %2849 = vperm.xlu0 %2848, %v2084
      %v2850 = vpop.permute.xlu0 %2849
      %2851 = vset.pattern.permute.xlu0 0
      %2852 = vperm.xlu0 %2851, %v2085
      %v2853 = vpop.permute.xlu0 %2852
      %2854 = vset.pattern.permute.xlu0 0
      %2855 = vperm.xlu0 %2854, %v2086
      %v2856 = vpop.permute.xlu0 %2855
      %2857 = vset.pattern.permute.xlu0 0
      %2858 = vperm.xlu0 %2857, %v2087
      %v2859 = vpop.permute.xlu0 %2858
      %2860 = vset.pattern.permute.xlu0 0
      %2861 = vperm.xlu0 %2860, %v2088
      %v2862 = vpop.permute.xlu0 %2861
      %2863 = vset.pattern.permute.xlu0 0
      %2864 = vperm.xlu0 %2863, %v2103
      %v2865 = vpop.permute.xlu0 %2864
      %2866 = vset.pattern.permute.xlu0 0
      %2867 = vperm.xlu0 %2866, %v2104
      %v2868 = vpop.permute.xlu0 %2867
      %2869 = vset.pattern.permute.xlu0 0
      %2870 = vperm.xlu0 %2869, %v2105
      %v2871 = vpop.permute.xlu0 %2870
      %2872 = vset.pattern.permute.xlu0 0
      %2873 = vperm.xlu0 %2872, %v2106
      %v2874 = vpop.permute.xlu0 %2873
      %2875 = vset.pattern.permute.xlu0 0
      %2876 = vperm.xlu0 %2875, %v2107
      %v2877 = vpop.permute.xlu0 %2876
      %2878 = vset.pattern.permute.xlu0 0
      %2879 = vperm.xlu0 %2878, %v2108
      %v2880 = vpop.permute.xlu0 %2879
      %2881 = vset.pattern.permute.xlu0 0
      %2882 = vperm.xlu0 %2881, %v2109
      %v2883 = vpop.permute.xlu0 %2882
      %2884 = vset.pattern.permute.xlu0 0
      %2885 = vperm.xlu0 %2884, %v2110
      %v2886 = vpop.permute.xlu0 %2885
      %2887 = vset.pattern.permute.xlu0 0
      %2888 = vperm.xlu0 %2887, %v2111
      %v2889 = vpop.permute.xlu0 %2888
      %2890 = vset.pattern.permute.xlu0 0
      %2891 = vperm.xlu0 %2890, %v2112
      %v2892 = vpop.permute.xlu0 %2891
      %2893 = vset.pattern.permute.xlu0 0
      %2894 = vperm.xlu0 %2893, %v2113
      %v2895 = vpop.permute.xlu0 %2894
      %2896 = vset.pattern.permute.xlu0 0
      %2897 = vperm.xlu0 %2896, %v2114
      %v2898 = vpop.permute.xlu0 %2897
      %2899 = vset.pattern.permute.xlu0 0
      %2900 = vperm.xlu0 %2899, %v2115
      %v2901 = vpop.permute.xlu0 %2900
      %2902 = vset.pattern.permute.xlu0 0
      %2903 = vperm.xlu0 %2902, %v2116
      %v2904 = vpop.permute.xlu0 %2903
      %2905 = vset.pattern.permute.xlu0 0
      %2906 = vperm.xlu0 %2905, %v2117
      %v2907 = vpop.permute.xlu0 %2906
      %2908 = vset.pattern.permute.xlu0 0
      %2909 = vperm.xlu0 %2908, %v2118
      %v2910 = vpop.permute.xlu0 %2909
      %v2911 = vperm.slane %v2817, %v760
      %v2912 = vperm.slane %v2820, %v1661
      %v2913 = vsel %vm1663, %v2912, %v2911
      %v2914 = vperm.slane %v2823, %v1665
      %v2915 = vsel %vm1667, %v2914, %v2913
      %v2916 = vperm.slane %v2826, %v1669
      %v2917 = vsel %vm1671, %v2916, %v2915
      %v2918 = vperm.slane %v2829, %v1673
      %v2919 = vsel %vm1675, %v2918, %v2917
      %v2920 = vperm.slane %v2832, %v1677
      %v2921 = vsel %vm1679, %v2920, %v2919
      %v2922 = vperm.slane %v2835, %v1681
      %v2923 = vsel %vm1683, %v2922, %v2921
      %v2924 = vperm.slane %v2838, %v1685
      %v2925 = vsel %vm1687, %v2924, %v2923
      %v2926 = vperm.slane %v2841, %v1689
      %v2927 = vsel %vm1691, %v2926, %v2925
      %v2928 = vperm.slane %v2844, %v1693
      %v2929 = vsel %vm1695, %v2928, %v2927
      %v2930 = vperm.slane %v2847, %v1697
      %v2931 = vsel %vm1699, %v2930, %v2929
      %v2932 = vperm.slane %v2850, %v1701
      %v2933 = vsel %vm1703, %v2932, %v2931
      %v2934 = vperm.slane %v2853, %v1705
      %v2935 = vsel %vm1707, %v2934, %v2933
      %v2936 = vperm.slane %v2856, %v1709
      %v2937 = vsel %vm1711, %v2936, %v2935
      %v2938 = vperm.slane %v2859, %v1713
      %v2939 = vsel %vm1715, %v2938, %v2937
      %v2940 = vperm.slane %v2862, %v1717
      %v2941 = vsel %vm1719, %v2940, %v2939
      %v2942 = vperm.slane %v2865, %v760
      %v2943 = vperm.slane %v2868, %v1661
      %v2944 = vsel %vm1663, %v2943, %v2942
      %v2945 = vperm.slane %v2871, %v1665
      %v2946 = vsel %vm1667, %v2945, %v2944
      %v2947 = vperm.slane %v2874, %v1669
      %v2948 = vsel %vm1671, %v2947, %v2946
      %v2949 = vperm.slane %v2877, %v1673
      %v2950 = vsel %vm1675, %v2949, %v2948
      %v2951 = vperm.slane %v2880, %v1677
      %v2952 = vsel %vm1679, %v2951, %v2950
      %v2953 = vperm.slane %v2883, %v1681
      %v2954 = vsel %vm1683, %v2953, %v2952
      %v2955 = vperm.slane %v2886, %v1685
      %v2956 = vsel %vm1687, %v2955, %v2954
      %v2957 = vperm.slane %v2889, %v1689
      %v2958 = vsel %vm1691, %v2957, %v2956
      %v2959 = vperm.slane %v2892, %v1693
      %v2960 = vsel %vm1695, %v2959, %v2958
      %v2961 = vperm.slane %v2895, %v1697
      %v2962 = vsel %vm1699, %v2961, %v2960
      %v2963 = vperm.slane %v2898, %v1701
      %v2964 = vsel %vm1703, %v2963, %v2962
      %v2965 = vperm.slane %v2901, %v1705
      %v2966 = vsel %vm1707, %v2965, %v2964
      %v2967 = vperm.slane %v2904, %v1709
      %v2968 = vsel %vm1711, %v2967, %v2966
      %v2969 = vperm.slane %v2907, %v1713
      %v2970 = vsel %vm1715, %v2969, %v2968
      %v2971 = vperm.slane %v2910, %v1717
      %v2972 = vsel %vm1719, %v2971, %v2970
      %v2973 = vsel %vm763, %v2972, %v2941
      %v2975 = vmul.f32 %v2781, %v2973
      %v2978 = vrot.slane %v2975, 6
      %v2979 = vsel %vm1754, %v2777, %v2978
      %2981 = vst [vmem:[%s572] sm:$0xf] %v2979
      %p2982 = scmp.lt.s32.totalorder %s29, 3
      %s2983 = scalar_select %p2982, %s29, 3
      %s2984 = smul.addr %s2983, 2
      %s2985 = smul.addr %s2984, 2
      %s2986 = scalar_lea.vmem %s18, %s2985
      // Predicated region
      $region97: #{batch_nll_loss.13} parent=91 // pred_check
        %p2987 = pneg %p430
      $region98: #{batch_nll_loss.13} parent=91 // pred_check_branch
        %2989 = sbr.rel (%p2987) target = $region100
      $region99: #{batch_nll_loss.13} parent=91 // pred_region
        _
      $region100: #{batch_nll_loss.13} parent=91 // pred_fallthru
        _
    $region92: #{batch_nll_loss.13} parent=5 // pred_fallthru
      _
    %p2990 = scmp.le.s32.totalorder 2, %s24
    // Predicated region
    $region101: #{batch_nll_loss.13} parent=5 // pred_check
      %p2991 = pneg %p2990
    $region102: #{batch_nll_loss.13} parent=5 // pred_check_branch
      %2993 = sbr.rel (%p2991) target = $region104
    $region103: #{batch_nll_loss.13} parent=5 // pred_region
      %s2994 = ssub.s32 %s24, 2
      // Predicated region
      $region105: #{batch_nll_loss.13} parent=103 // pred_check
        %p2995 = pneg %p436
      $region106: #{batch_nll_loss.13} parent=103 // pred_check_branch
        %2997 = sbr.rel (%p2995) target = $region108
      $region107: #{batch_nll_loss.13} parent=103 // pred_region
        %p2998 = scmp.lt.s32.totalorder %s30, 3
        %s2999 = scalar_select %p2998, %s30, 3
        %s3000 = smul.addr %s2999, 2
        %s3001 = smul.addr %s3000, 2
        %s3002 = scalar_lea.vmem %s18, %s3001
      $region108: #{batch_nll_loss.13} parent=103 // pred_fallthru
        _
    $region104: #{batch_nll_loss.13} parent=5 // pred_fallthru
      _
  $region6: #{batch_nll_loss.13} parent=0 // loop_footer
    %s28 = sadd.s32 1, %s24
  $region7: #{batch_nll_loss.13} parent=0 // loop_footer_branch
    %23 = sbr.rel target = $region3
  $region8: #{batch_nll_loss.13} parent=0 // loop_exit
    _

</llo_original>
